<compile_context>
chip_gen: v5e
topology: v5e:2x2
jax: 0.10.0
libtpu: 0.0.40
codegen_flags: <defaults>
</compile_context>

<pallas_src>
import math
from functools import partial

import jax
import jax.numpy as jnp
from jax.experimental import pallas as pl
from jax.experimental.pallas import tpu as pltpu

# ----------------------- synthetic CLIP-text config -----------------------
VOCAB = 64
SEQ = 8            # L (context length)
D_MODEL = 32       # transformer width
N_HEADS = 4
D_HEAD = D_MODEL // N_HEADS
FFN = 64
N_LAYERS = 2
PROJ_HIDDEN = 64   # text.proj[0] hidden width
EMBED_DIM = 32     # logical output text-embedding dim
EMBED_PAD = 128    # lane-dense padded output width (wrapper slices back)
PAD_ID = 0
BOS_ID = 1
TEMPLATES = ["a photo of {}", "a picture of {}"]
NEG_INF = -1e9
CAT_BLOCK = 2      # categories per grid block (the "parallel" megacore axis)

LAYER_KEYS = ("ln1_g", "ln1_b", "wqkv", "bqkv", "wo", "bo",
              "ln2_g", "ln2_b", "w1", "b1", "w2", "b2")
EPI_KEYS = ("lnf_g", "lnf_b", "pw1", "pb1", "pw2", "pb2")


# ------------------------------ math helpers -------------------------------
def _layernorm(v, g, b, eps=1e-5):
    mu = jnp.mean(v, axis=-1, keepdims=True)
    var = jnp.mean(jnp.square(v - mu), axis=-1, keepdims=True)
    return (v - mu) * jax.lax.rsqrt(var + eps) * g + b


def _erf(x):
    # Abramowitz & Stegun 7.1.26 (|error| < 1.5e-7): exact-GELU semantics of
    # torch nn.GELU without relying on an erf primitive lowering in Mosaic.
    p = 0.3275911
    a1, a2, a3, a4, a5 = (0.254829592, -0.284496736, 1.421413741,
                          -1.453152027, 1.061405429)
    sgn = jnp.where(x >= 0, 1.0, -1.0)
    ax = jnp.abs(x)
    ti = 1.0 / (1.0 + p * ax)
    poly = ((((a5 * ti + a4) * ti + a3) * ti + a2) * ti + a1) * ti
    return sgn * (1.0 - poly * jnp.exp(-ax * ax))


def _gelu_exact(x):
    # torch nn.GELU default: x * Phi(x), erf formulation (not tanh-approx).
    return 0.5 * x * (1.0 + _erf(x * 0.7071067811865476))


# ---------------------- per-(category-block, layer) kernel -----------------
def _clip_text_block_kernel(x0_ref, ids_ref,
                            ln1_g, ln1_b, wqkv, bqkv, wo, bo,
                            ln2_g, ln2_b, w1, b1, w2, b2,
                            lnf_g, lnf_b, pw1, pb1, pw2, pb2,
                            o_ref, x_ref, *, n_templates):
    layer = pl.program_id(1)
    n_seq, _, seq_len = ids_ref.shape            # sequences in this block, 1, L
    rows, d_model = x_ref.shape                  # n_seq * L, D
    n_heads, d_head = N_HEADS, D_MODEL // N_HEADS
    scale = 1.0 / math.sqrt(d_head)

    # ---- layer 0: load this category block's embedded tokens into the carry ----
    @pl.when(layer == 0)
    def _():
        x_ref[...] = x0_ref[...]

    x = x_ref[...]                                               # [rows, D]

    # additive key-padding mask rebuilt in-kernel from ids (text != pad_id),
    # tiled head-major along the leading batch axis (matches q/k/v ordering).
    amask = jnp.where(ids_ref[...] == PAD_ID, NEG_INF, 0.0)      # [n_seq, 1, L]
    amask = jnp.concatenate([amask] * n_heads, axis=0)           # [H*n_seq,1,L]

    # ---- attention: fused QKV, all heads in one batched contraction ----
    h = _layernorm(x, ln1_g[...], ln1_b[...])
    qkv = jnp.dot(h, wqkv[...], preferred_element_type=jnp.float32) + bqkv[...]
    qkv3 = qkv.reshape(n_seq, seq_len, 3 * d_model)

    # Heads stacked into the leading batch axis -> ONE score einsum, ONE softmax
    # pipeline, ONE context einsum and ONE K=D Wo matmul per layer.
    # TODO(synk): a [B,L,H,Dh]->[B,H,L,Dh] transpose would also remove the
    # per-head lane slices, but is a Mosaic relayout risk at these packed toy
    # shapes, so the head split stays as static lane slices.
    def _heads(base):
        return jnp.concatenate(
            [qkv3[:, :, base + hh * d_head: base + (hh + 1) * d_head]
             for hh in range(n_heads)], axis=0)                  # [H*n_seq, L, Dh]

    q_bh, k_bh, v_bh = _heads(0), _heads(d_model), _heads(2 * d_model)

    s = jnp.einsum('bld,bmd->blm', q_bh, k_bh,
                   preferred_element_type=jnp.float32) * scale + amask
    s = s - jnp.max(s, axis=-1, keepdims=True)
    p = jnp.exp(s)
    p = p / jnp.sum(p, axis=-1, keepdims=True)   # exact softmax (torch parity)
    ctx = jnp.einsum('blm,bmd->bld', p, v_bh,
                     preferred_element_type=jnp.float32)         # [H*n_seq, L, Dh]

    # re-interleave heads along lanes -> [rows, D], then a single K=D Wo matmul
    ctx_full = jnp.concatenate(
        [ctx[hh * n_seq:(hh + 1) * n_seq].reshape(rows, d_head)
         for hh in range(n_heads)], axis=-1)
    x = x + jnp.dot(ctx_full, wo[...], preferred_element_type=jnp.float32) + bo[...]

    # ---- MLP ----
    h2 = _layernorm(x, ln2_g[...], ln2_b[...])
    m = _gelu_exact(jnp.dot(h2, w1[...], preferred_element_type=jnp.float32)
                    + b1[...])
    x = x + jnp.dot(m, w2[...], preferred_element_type=jnp.float32) + b2[...]
    x_ref[...] = x                               # carry to the next layer step

    # ---- last layer: pool, project, normalize, template-mean, normalize ----
    @pl.when(layer == pl.num_programs(1) - 1)
    def _():
        # ClsPooler (cls_token_position = 0) via a one-hot selector matmul.
        # TODO(synk): x.reshape(n_seq, L, D)[:, 0, :] would avoid the selector,
        # but the middle-dim squeeze is a Mosaic relayout risk at these shapes;
        # this runs once per block so it is off the critical path.
        col = jax.lax.broadcasted_iota(jnp.int32, (n_seq, rows), 1)
        row = jax.lax.broadcasted_iota(jnp.int32, (n_seq, rows), 0)
        sel = (col == row * seq_len).astype(jnp.float32)
        pooled = jnp.dot(sel, x, preferred_element_type=jnp.float32)  # [n_seq, D]

        pt = _layernorm(pooled, lnf_g[...], lnf_b[...])
        hp = _gelu_exact(jnp.dot(pt, pw1[...], preferred_element_type=jnp.float32)
                         + pb1[...])
        e = jnp.dot(hp, pw2[...], preferred_element_type=jnp.float32) + pb2[...]
        # F.normalize(dim=-1): clamp the norm at eps=1e-12 (torch semantics)
        e = e * jax.lax.rsqrt(
            jnp.maximum(jnp.sum(e * e, axis=-1, keepdims=True), 1e-24))

        # template mean as a tiny averaging matmul ([category, template] layout)
        n_cat = n_seq // n_templates
        rc = jax.lax.broadcasted_iota(jnp.int32, (n_cat, n_seq), 0)
        cs = jax.lax.broadcasted_iota(jnp.int32, (n_cat, n_seq), 1)
        avg = jnp.where((cs >= rc * n_templates) & (cs < (rc + 1) * n_templates),
                        1.0 / n_templates, 0.0)
        mean = jnp.dot(avg, e, preferred_element_type=jnp.float32)    # [n_cat, EP]
        # final L2 normalize (torch does a plain divide; clamp only guards 0)
        o_ref[...] = mean * jax.lax.rsqrt(
            jnp.maximum(jnp.sum(mean * mean, axis=-1, keepdims=True), 1e-24))


# ------------------------------ glue (plain JAX) ---------------------------
def _simple_tokenize(texts, seq_len=SEQ, vocab=VOCAB):
    """Deterministic stand-in for the CLIP tokenizer (string -> token ids)."""
    rows = []
    for t in texts:
        ids = [BOS_ID]
        for w in t.lower().split():
            h = sum((i + 1) * ord(c) for i, c in enumerate(w))
            ids.append(2 + h % (vocab - 2))
        ids = ids[:seq_len]
        ids = ids + [PAD_ID] * (seq_len - len(ids))
        rows.append(ids)
    return jnp.array(rows, dtype=jnp.int32)


def init_params(key):
    ks = jax.random.split(key, 8)
    init = lambda k, shape, s=0.02: (s * jax.random.normal(k, shape)).astype(jnp.float32)
    D, F, NL = D_MODEL, FFN, N_LAYERS
    # projection output zero-padded to EMBED_PAD lanes (exactly equivalent to an
    # EMBED_DIM-wide projection; the wrapper slices the result back).
    pw2 = jnp.zeros((PROJ_HIDDEN, EMBED_PAD), jnp.float32)
    pw2 = pw2.at[:, :EMBED_DIM].set(init(ks[3], (PROJ_HIDDEN, EMBED_DIM)))
    return {
        "tok_emb": init(ks[0], (VOCAB, D)),
        "pos_emb": init(ks[1], (SEQ, D)),
        "lnf_g": jnp.ones((1, D), jnp.float32),
        "lnf_b": jnp.zeros((1, D), jnp.float32),
        "pw1": init(ks[2], (D, PROJ_HIDDEN)),
        "pb1": jnp.zeros((1, PROJ_HIDDEN), jnp.float32),
        "pw2": pw2,
        "pb2": jnp.zeros((1, EMBED_PAD), jnp.float32),
        # per-layer weights stacked along a leading N_LAYERS axis (streamed
        # through the layer grid axis)
        "ln1_g": jnp.ones((NL, 1, D), jnp.float32),
        "ln1_b": jnp.zeros((NL, 1, D), jnp.float32),
        "wqkv": init(ks[4], (NL, D, 3 * D)),
        "bqkv": jnp.zeros((NL, 1, 3 * D), jnp.float32),
        "wo": init(ks[5], (NL, D, D)),
        "bo": jnp.zeros((NL, 1, D), jnp.float32),
        "ln2_g": jnp.ones((NL, 1, D), jnp.float32),
        "ln2_b": jnp.zeros((NL, 1, D), jnp.float32),
        "w1": init(ks[6], (NL, D, F)),
        "b1": jnp.zeros((NL, 1, F), jnp.float32),
        "w2": init(ks[7], (NL, F, D)),
        "b2": jnp.zeros((NL, 1, D), jnp.float32),
    }


def predefined_ov_classifier_forward(params, category_names):
    """Equivalent of PredefinedOvClassifier.forward(category_names)."""
    t = len(TEMPLATES)
    n = len(category_names)
    # pad the category list to a multiple of CAT_BLOCK so the category axis can
    # be a "parallel" grid axis (sharded across TensorCores on megacore parts).
    n_pad = pl.cdiv(n, CAT_BLOCK) * CAT_BLOCK
    names = list(category_names) + [category_names[-1]] * (n_pad - n)
    ncb = n_pad // CAT_BLOCK
    n_seq_blk = CAT_BLOCK * t
    rows_blk = n_seq_blk * SEQ

    # [category, template] batch layout: templates are contiguous per category
    # so the template-mean stays local to a category block.
    tok = jnp.stack([_simple_tokenize([tpl.format(nm) for nm in names])
                     for tpl in TEMPLATES])                       # [T, n_pad, L]
    tok = jnp.transpose(tok, (1, 0, 2)).reshape(n_pad * t, SEQ)   # [B, L]

    # Token-embedding gather + positional embedding in plain XLA: at real CLIP
    # vocab (49k) an in-kernel one-hot matmul is a multi-MiB VMEM / multi-GFLOP
    # liability; a gather is O(B*L*D) bytes and zero FLOPs.
    x0 = jnp.take(params["tok_emb"], tok, axis=0) + params["pos_emb"][None]
    x0 = x0.reshape(ncb, rows_blk, D_MODEL).astype(jnp.float32)
    ids = tok.reshape(ncb, n_seq_blk, 1, SEQ)

    def layer_spec(arr):
        zeros = (0,) * (arr.ndim - 1)
        return pl.BlockSpec((None,) + tuple(arr.shape[1:]),
                            lambda c, l: (l,) + zeros)

    in_specs = (
        [pl.BlockSpec((None, rows_blk, D_MODEL), lambda c, l: (c, 0, 0)),
         pl.BlockSpec((None, n_seq_blk, 1, SEQ), lambda c, l: (c, 0, 0, 0))]
        + [layer_spec(params[k]) for k in LAYER_KEYS]
        # grid-invariant epilogue weights: whole-array VMEM residents (not
        # double-buffered, no per-step DMA).
        + [pl.BlockSpec(memory_space=pltpu.MemorySpace.VMEM) for _ in EPI_KEYS])

    args = [x0, ids] + [params[k] for k in LAYER_KEYS] + [params[k] for k in EPI_KEYS]

    b_total, bl_total = n_pad * t, n_pad * t * SEQ
    flops = (N_LAYERS * (2 * bl_total * D_MODEL * 3 * D_MODEL
                         + 2 * 2 * b_total * N_HEADS * SEQ * SEQ * D_HEAD
                         + 2 * bl_total * D_MODEL * D_MODEL
                         + 2 * 2 * bl_total * D_MODEL * FFN)
             + 2 * b_total * rows_blk * D_MODEL
             + 2 * b_total * D_MODEL * PROJ_HIDDEN
             + 2 * b_total * PROJ_HIDDEN * EMBED_PAD)
    transcendentals = (N_LAYERS * (N_HEADS * b_total * SEQ * SEQ + bl_total * FFN)
                       + b_total * PROJ_HIDDEN)
    layer_bytes = sum(int(params[k].size) * params[k].dtype.itemsize
                      for k in LAYER_KEYS)
    bytes_accessed = (ncb * layer_bytes            # layer weights per cat block
                      + int(x0.size) * 4 + int(ids.size) * 4
                      + sum(int(params[k].size) * params[k].dtype.itemsize
                            for k in EPI_KEYS)
                      + ncb * CAT_BLOCK * EMBED_PAD * 4)

    out = pl.pallas_call(
        partial(_clip_text_block_kernel, n_templates=t),
        out_shape=jax.ShapeDtypeStruct((ncb, CAT_BLOCK, EMBED_PAD), jnp.float32),
        grid=(ncb, N_LAYERS),
        in_specs=in_specs,
        out_specs=pl.BlockSpec((None, CAT_BLOCK, EMBED_PAD), lambda c, l: (c, 0, 0)),
        scratch_shapes=[pltpu.VMEM((rows_blk, D_MODEL), jnp.float32)],
        compiler_params=pltpu.CompilerParams(
            dimension_semantics=("parallel", "arbitrary")),
        cost_estimate=pl.CostEstimate(flops=int(flops),
                                      transcendentals=int(transcendentals),
                                      bytes_accessed=int(bytes_accessed)),
    )(*args)
    return out.reshape(n_pad, EMBED_PAD)[:n, :EMBED_DIM]          # [N, EMBED_DIM]


# ------------------------- pure-JAX reference (checks) ----------------------
def _reference_encode_text(params, tok):
    b, l = tok.shape
    x = jnp.take(params["tok_emb"], tok, axis=0) + params["pos_emb"][None]
    mask = jnp.where(tok == PAD_ID, NEG_INF, 0.0)[:, None, None, :]
    for layer in range(N_LAYERS):
        h = _layernorm(x, params["ln1_g"][layer], params["ln1_b"][layer])
        qkv = h @ params["wqkv"][layer] + params["bqkv"][layer]
        q, k, v = jnp.split(qkv, 3, axis=-1)
        hd = lambda z: z.reshape(b, l, N_HEADS, D_HEAD).transpose(0, 2, 1, 3)
        q, k, v = hd(q), hd(k), hd(v)
        s = jnp.einsum('bhld,bhmd->bhlm', q, k) / math.sqrt(D_HEAD) + mask
        p = jax.nn.softmax(s, axis=-1)
        ctx = jnp.einsum('bhlm,bhmd->bhld', p, v).transpose(0, 2, 1, 3)
        ctx = ctx.reshape(b, l, D_MODEL)
        x = x + ctx @ params["wo"][layer] + params["bo"][layer]
        h2 = _layernorm(x, params["ln2_g"][layer], params["ln2_b"][layer])
        m = _gelu_exact(h2 @ params["w1"][layer] + params["b1"][layer])
        x = x + m @ params["w2"][layer] + params["b2"][layer]
    pooled = x[:, 0, :]                                   # ClsPooler, position 0
    pt = _layernorm(pooled, params["lnf_g"], params["lnf_b"])
    hp = _gelu_exact(pt @ params["pw1"] + params["pb1"])
    e = hp @ params["pw2"] + params["pb2"]
    return e / jnp.maximum(jnp.linalg.norm(e, axis=-1, keepdims=True), 1e-12)


def _reference_forward(params, category_names):
    bucket = []
    for tpl in TEMPLATES:
        tok = _simple_tokenize([tpl.format(nm) for nm in category_names])
        bucket.append(_reference_encode_text(params, tok))
    e = jnp.stack(bucket).mean(axis=0)
    e = e / jnp.linalg.norm(e, axis=-1, keepdims=True)
    return e[:, :EMBED_DIM]


if __name__ == "__main__":
    key = jax.random.PRNGKey(0)
    params = init_params(key)
    category_names = ["cat", "dog", "car", "tree"]
    emb = predefined_ov_classifier_forward(params, category_names)
    emb = jax.block_until_ready(emb)
    assert emb.shape == (len(category_names), EMBED_DIM), emb.shape
    assert bool(jnp.all(jnp.isfinite(emb)))
    # rows are L2-normalized
    assert bool(jnp.allclose(jnp.linalg.norm(emb, axis=-1), 1.0, atol=1e-3))
    # matches the pure-JAX reference of the torch forward()
    ref = _reference_forward(params, category_names)
    assert bool(jnp.allclose(emb, ref, atol=1e-3, rtol=1e-3)), (
        float(jnp.max(jnp.abs(emb - ref))))
    print("KERNEL_OK")
</pallas_src>

<mosaic_0001>
module attributes {stable_mosaic.version = 11 : i64} {
  func.func @_clip_text_block_kernel(%arg0: i32, %arg1: i32, %arg2: memref<1x32x32xf32, #tpu.memory_space<vmem>>, %arg3: memref<1x4x1x8xi32, #tpu.memory_space<vmem>>, %arg4: memref<1x1x32xf32, #tpu.memory_space<vmem>>, %arg5: memref<1x1x32xf32, #tpu.memory_space<vmem>>, %arg6: memref<1x32x96xf32, #tpu.memory_space<vmem>>, %arg7: memref<1x1x96xf32, #tpu.memory_space<vmem>>, %arg8: memref<1x32x32xf32, #tpu.memory_space<vmem>>, %arg9: memref<1x1x32xf32, #tpu.memory_space<vmem>>, %arg10: memref<1x1x32xf32, #tpu.memory_space<vmem>>, %arg11: memref<1x1x32xf32, #tpu.memory_space<vmem>>, %arg12: memref<1x32x64xf32, #tpu.memory_space<vmem>>, %arg13: memref<1x1x64xf32, #tpu.memory_space<vmem>>, %arg14: memref<1x64x32xf32, #tpu.memory_space<vmem>>, %arg15: memref<1x1x32xf32, #tpu.memory_space<vmem>>, %arg16: memref<1x32xf32, #tpu.memory_space<vmem>>, %arg17: memref<1x32xf32, #tpu.memory_space<vmem>>, %arg18: memref<32x64xf32, #tpu.memory_space<vmem>>, %arg19: memref<1x64xf32, #tpu.memory_space<vmem>>, %arg20: memref<64x128xf32, #tpu.memory_space<vmem>>, %arg21: memref<1x128xf32, #tpu.memory_space<vmem>>, %arg22: memref<1x2x128xf32, #tpu.memory_space<vmem>>, %arg23: memref<32x32xf32, #tpu.memory_space<vmem>>) attributes {dimension_semantics = [#tpu.dimension_semantics<parallel>, #tpu.dimension_semantics<arbitrary>], iteration_bounds = array<i64: 2, 2>, scalar_prefetch = 0 : i64, scratch_operands = 1 : i64, tpu.core_type = #tpu.core_type<tc>, window_params = [{transform_indices = @transform_0, window_bounds = array<i64: 1, 32, 32>}, {transform_indices = @transform_1, window_bounds = array<i64: 1, 4, 1, 8>}, {transform_indices = @transform_2, window_bounds = array<i64: 1, 1, 32>}, {transform_indices = @transform_3, window_bounds = array<i64: 1, 1, 32>}, {transform_indices = @transform_4, window_bounds = array<i64: 1, 32, 96>}, {transform_indices = @transform_5, window_bounds = array<i64: 1, 1, 96>}, {transform_indices = @transform_6, window_bounds = array<i64: 1, 32, 32>}, {transform_indices = @transform_7, window_bounds = array<i64: 1, 1, 32>}, {transform_indices = @transform_8, window_bounds = array<i64: 1, 1, 32>}, {transform_indices = @transform_9, window_bounds = array<i64: 1, 1, 32>}, {transform_indices = @transform_10, window_bounds = array<i64: 1, 32, 64>}, {transform_indices = @transform_11, window_bounds = array<i64: 1, 1, 64>}, {transform_indices = @transform_12, window_bounds = array<i64: 1, 64, 32>}, {transform_indices = @transform_13, window_bounds = array<i64: 1, 1, 32>}, {pipeline_mode = #tpu.pipeline_mode<synchronous>, transform_indices = @transform_14, window_bounds = array<i64: 1, 32>}, {pipeline_mode = #tpu.pipeline_mode<synchronous>, transform_indices = @transform_15, window_bounds = array<i64: 1, 32>}, {pipeline_mode = #tpu.pipeline_mode<synchronous>, transform_indices = @transform_16, window_bounds = array<i64: 32, 64>}, {pipeline_mode = #tpu.pipeline_mode<synchronous>, transform_indices = @transform_17, window_bounds = array<i64: 1, 64>}, {pipeline_mode = #tpu.pipeline_mode<synchronous>, transform_indices = @transform_18, window_bounds = array<i64: 64, 128>}, {pipeline_mode = #tpu.pipeline_mode<synchronous>, transform_indices = @transform_19, window_bounds = array<i64: 1, 128>}, {transform_indices = @transform_20, window_bounds = array<i64: 1, 2, 128>}]} {
    %c0_i32 = arith.constant 0 : i32
    %0 = arith.cmpi eq, %arg1, %c0_i32 : i32
    %1 = arith.extui %0 : i1 to i32
    %c0_i32_0 = arith.constant 0 : i32
    %2 = arith.cmpi ne, %1, %c0_i32_0 : i32
    scf.if %2 {
      %c0_82 = arith.constant 0 : index
      %c0_83 = arith.constant 0 : index
      %c0_84 = arith.constant 0 : index
      %179 = vector.load %arg2[%c0_82, %c0_83, %c0_84] : memref<1x32x32xf32, #tpu.memory_space<vmem>>, vector<1x32x32xf32>
      %180 = vector.shape_cast %179 : vector<1x32x32xf32> to vector<32x32xf32>
      %c0_85 = arith.constant 0 : index
      %c0_86 = arith.constant 0 : index
      %181 = vector.load %arg23[%c0_85, %c0_86] : memref<32x32xf32, #tpu.memory_space<vmem>>, vector<32x32xf32>
      tpu.vector_store %arg23[%c0_85, %c0_86], %180 {strides = array<i32>} : memref<32x32xf32, #tpu.memory_space<vmem>>, vector<32x32xf32>,
    } else {
    }
    %c0 = arith.constant 0 : index
    %c0_1 = arith.constant 0 : index
    %3 = vector.load %arg23[%c0, %c0_1] : memref<32x32xf32, #tpu.memory_space<vmem>>, vector<32x32xf32>
    %c0_2 = arith.constant 0 : index
    %c0_3 = arith.constant 0 : index
    %c0_4 = arith.constant 0 : index
    %c0_5 = arith.constant 0 : index
    %4 = vector.load %arg3[%c0_2, %c0_3, %c0_4, %c0_5] : memref<1x4x1x8xi32, #tpu.memory_space<vmem>>, vector<1x4x1x8xi32>
    %5 = vector.shape_cast %4 : vector<1x4x1x8xi32> to vector<4x1x8xi32>
    %c0_i32_6 = arith.constant 0 : i32
    %6 = vector.broadcast %c0_i32_6 : i32 to vector<4x1x8xi32>
    %7 = arith.cmpi eq, %5, %6 : vector<4x1x8xi32>
    %cst = arith.constant -1.000000e+09 : f32
    %cst_7 = arith.constant 0.000000e+00 : f32
    %8 = vector.broadcast %cst : f32 to vector<4x1x8xf32>
    %9 = vector.broadcast %cst_7 : f32 to vector<4x1x8xf32>
    %10 = arith.select %7, %8, %9 : vector<4x1x8xi1>, vector<4x1x8xf32>
    %11 = tpu.concatenate %10, %10, %10, %10 in 0 : vector<4x1x8xf32>, vector<4x1x8xf32>, vector<4x1x8xf32>, vector<4x1x8xf32> -> vector<16x1x8xf32>
    %c0_8 = arith.constant 0 : index
    %c0_9 = arith.constant 0 : index
    %c0_10 = arith.constant 0 : index
    %12 = vector.load %arg4[%c0_8, %c0_9, %c0_10] : memref<1x1x32xf32, #tpu.memory_space<vmem>>, vector<1x1x32xf32>
    %13 = vector.shape_cast %12 : vector<1x1x32xf32> to vector<1x32xf32>
    %c0_11 = arith.constant 0 : index
    %c0_12 = arith.constant 0 : index
    %c0_13 = arith.constant 0 : index
    %14 = vector.load %arg5[%c0_11, %c0_12, %c0_13] : memref<1x1x32xf32, #tpu.memory_space<vmem>>, vector<1x1x32xf32>
    %15 = vector.shape_cast %14 : vector<1x1x32xf32> to vector<1x32xf32>
    %cst_14 = arith.constant dense<0.000000e+00> : vector<32xf32>
    %16 = vector.multi_reduction <add>, %3, %cst_14 [1] : vector<32x32xf32> to vector<32xf32>
    %17 = vector.shape_cast %16 : vector<32xf32> to vector<32x1xf32>
    %cst_15 = arith.constant 3.200000e+01 : f32
    %18 = vector.broadcast %cst_15 : f32 to vector<32x1xf32>
    %19 = arith.divf %17, %18 : vector<32x1xf32>
    %20 = vector.broadcast %19 : vector<32x1xf32> to vector<32x32xf32>
    %21 = arith.subf %3, %20 : vector<32x32xf32>
    %22 = arith.mulf %21, %21 : vector<32x32xf32>
    %cst_16 = arith.constant dense<0.000000e+00> : vector<32xf32>
    %23 = vector.multi_reduction <add>, %22, %cst_16 [1] : vector<32x32xf32> to vector<32xf32>
    %24 = vector.shape_cast %23 : vector<32xf32> to vector<32x1xf32>
    %cst_17 = arith.constant 3.200000e+01 : f32
    %25 = vector.broadcast %cst_17 : f32 to vector<32x1xf32>
    %26 = arith.divf %24, %25 : vector<32x1xf32>
    %27 = vector.broadcast %19 : vector<32x1xf32> to vector<32x32xf32>
    %28 = arith.subf %3, %27 : vector<32x32xf32>
    %cst_18 = arith.constant 9.99999974E-6 : f32
    %29 = vector.broadcast %cst_18 : f32 to vector<32x1xf32>
    %30 = arith.addf %26, %29 : vector<32x1xf32>
    %31 = math.rsqrt %30 : vector<32x1xf32>
    %32 = vector.broadcast %31 : vector<32x1xf32> to vector<32x32xf32>
    %33 = arith.mulf %28, %32 : vector<32x32xf32>
    %34 = vector.broadcast %13 : vector<1x32xf32> to vector<32x32xf32>
    %35 = arith.mulf %33, %34 : vector<32x32xf32>
    %36 = vector.broadcast %15 : vector<1x32xf32> to vector<32x32xf32>
    %37 = arith.addf %35, %36 : vector<32x32xf32>
    %c0_19 = arith.constant 0 : index
    %c0_20 = arith.constant 0 : index
    %c0_21 = arith.constant 0 : index
    %38 = vector.load %arg6[%c0_19, %c0_20, %c0_21] : memref<1x32x96xf32, #tpu.memory_space<vmem>>, vector<1x32x96xf32>
    %39 = vector.shape_cast %38 : vector<1x32x96xf32> to vector<32x96xf32>
    %cst_22 = arith.constant dense<0.000000e+00> : vector<32x96xf32>
    %40 = tpu.matmul %37, %39, %cst_22 {dimension_numbers = #tpu.dot_dimension_numbers<[1], [0], [0], [1], [0, 0, 1, 1], [], []>} : vector<32x32xf32>, vector<32x96xf32>, vector<32x96xf32> -> vector<32x96xf32>
    %c0_23 = arith.constant 0 : index
    %c0_24 = arith.constant 0 : index
    %c0_25 = arith.constant 0 : index
    %41 = vector.load %arg7[%c0_23, %c0_24, %c0_25] : memref<1x1x96xf32, #tpu.memory_space<vmem>>, vector<1x1x96xf32>
    %42 = vector.shape_cast %41 : vector<1x1x96xf32> to vector<1x96xf32>
    %43 = vector.broadcast %42 : vector<1x96xf32> to vector<32x96xf32>
    %44 = arith.addf %40, %43 : vector<32x96xf32>
    %45 = vector.shape_cast %44 : vector<32x96xf32> to vector<4x8x96xf32>
    %46 = vector.extract_strided_slice %45 {offsets = [0, 0, 0], sizes = [4, 8, 8], strides = [1, 1, 1]} : vector<4x8x96xf32> to vector<4x8x8xf32>
    %47 = vector.extract_strided_slice %45 {offsets = [0, 0, 8], sizes = [4, 8, 8], strides = [1, 1, 1]} : vector<4x8x96xf32> to vector<4x8x8xf32>
    %48 = vector.extract_strided_slice %45 {offsets = [0, 0, 16], sizes = [4, 8, 8], strides = [1, 1, 1]} : vector<4x8x96xf32> to vector<4x8x8xf32>
    %49 = vector.extract_strided_slice %45 {offsets = [0, 0, 24], sizes = [4, 8, 8], strides = [1, 1, 1]} : vector<4x8x96xf32> to vector<4x8x8xf32>
    %50 = tpu.concatenate %46, %47, %48, %49 in 0 : vector<4x8x8xf32>, vector<4x8x8xf32>, vector<4x8x8xf32>, vector<4x8x8xf32> -> vector<16x8x8xf32>
    %51 = vector.extract_strided_slice %45 {offsets = [0, 0, 32], sizes = [4, 8, 8], strides = [1, 1, 1]} : vector<4x8x96xf32> to vector<4x8x8xf32>
    %52 = vector.extract_strided_slice %45 {offsets = [0, 0, 40], sizes = [4, 8, 8], strides = [1, 1, 1]} : vector<4x8x96xf32> to vector<4x8x8xf32>
    %53 = vector.extract_strided_slice %45 {offsets = [0, 0, 48], sizes = [4, 8, 8], strides = [1, 1, 1]} : vector<4x8x96xf32> to vector<4x8x8xf32>
    %54 = vector.extract_strided_slice %45 {offsets = [0, 0, 56], sizes = [4, 8, 8], strides = [1, 1, 1]} : vector<4x8x96xf32> to vector<4x8x8xf32>
    %55 = tpu.concatenate %51, %52, %53, %54 in 0 : vector<4x8x8xf32>, vector<4x8x8xf32>, vector<4x8x8xf32>, vector<4x8x8xf32> -> vector<16x8x8xf32>
    %56 = vector.extract_strided_slice %45 {offsets = [0, 0, 64], sizes = [4, 8, 8], strides = [1, 1, 1]} : vector<4x8x96xf32> to vector<4x8x8xf32>
    %57 = vector.extract_strided_slice %45 {offsets = [0, 0, 72], sizes = [4, 8, 8], strides = [1, 1, 1]} : vector<4x8x96xf32> to vector<4x8x8xf32>
    %58 = vector.extract_strided_slice %45 {offsets = [0, 0, 80], sizes = [4, 8, 8], strides = [1, 1, 1]} : vector<4x8x96xf32> to vector<4x8x8xf32>
    %59 = vector.extract_strided_slice %45 {offsets = [0, 0, 88], sizes = [4, 8, 8], strides = [1, 1, 1]} : vector<4x8x96xf32> to vector<4x8x8xf32>
    %60 = tpu.concatenate %56, %57, %58, %59 in 0 : vector<4x8x8xf32>, vector<4x8x8xf32>, vector<4x8x8xf32>, vector<4x8x8xf32> -> vector<16x8x8xf32>
    "tpu.trace_start"() <{level = 10 : i32, message = "bld,bmd->blm"}> : () -> ()
    %cst_26 = arith.constant dense<0.000000e+00> : vector<16x8x8xf32>
    %61 = tpu.matmul %50, %55, %cst_26 {dimension_numbers = #tpu.dot_dimension_numbers<[2], [2], [1], [1], [0, 0, 0, 1, 1, 1], [0], [0]>} : vector<16x8x8xf32>, vector<16x8x8xf32>, vector<16x8x8xf32> -> vector<16x8x8xf32>
    "tpu.trace_stop"() : () -> ()
    %cst_27 = arith.constant 0.353553385 : f32
    %62 = vector.broadcast %cst_27 : f32 to vector<16x8x8xf32>
    %63 = arith.mulf %61, %62 : vector<16x8x8xf32>
    %64 = vector.broadcast %11 : vector<16x1x8xf32> to vector<16x8x8xf32>
    %65 = arith.addf %63, %64 : vector<16x8x8xf32>
    %cst_28 = arith.constant dense<0xFF800000> : vector<16x8xf32>
    %66 = vector.multi_reduction <maximumf>, %65, %cst_28 [2] : vector<16x8x8xf32> to vector<16x8xf32>
    %67 = vector.shape_cast %66 : vector<16x8xf32> to vector<16x8x1xf32>
    %68 = vector.broadcast %67 : vector<16x8x1xf32> to vector<16x8x8xf32>
    %69 = arith.subf %65, %68 : vector<16x8x8xf32>
    %70 = math.exp %69 : vector<16x8x8xf32>
    %cst_29 = arith.constant dense<0.000000e+00> : vector<16x8xf32>
    %71 = vector.multi_reduction <add>, %70, %cst_29 [2] : vector<16x8x8xf32> to vector<16x8xf32>
    %72 = vector.shape_cast %71 : vector<16x8xf32> to vector<16x8x1xf32>
    %73 = vector.broadcast %72 : vector<16x8x1xf32> to vector<16x8x8xf32>
    %74 = arith.divf %70, %73 : vector<16x8x8xf32>
    "tpu.trace_start"() <{level = 10 : i32, message = "blm,bmd->bld"}> : () -> ()
    %cst_30 = arith.constant dense<0.000000e+00> : vector<16x8x8xf32>
    %75 = tpu.matmul %74, %60, %cst_30 {dimension_numbers = #tpu.dot_dimension_numbers<[2], [1], [1], [2], [0, 0, 0, 1, 1, 2], [0], [0]>} : vector<16x8x8xf32>, vector<16x8x8xf32>, vector<16x8x8xf32> -> vector<16x8x8xf32>
    "tpu.trace_stop"() : () -> ()
    %76 = vector.extract_strided_slice %75 {offsets = [0, 0, 0], sizes = [4, 8, 8], strides = [1, 1, 1]} : vector<16x8x8xf32> to vector<4x8x8xf32>
    %77 = vector.shape_cast %76 : vector<4x8x8xf32> to vector<32x8xf32>
    %78 = vector.extract_strided_slice %75 {offsets = [4, 0, 0], sizes = [4, 8, 8], strides = [1, 1, 1]} : vector<16x8x8xf32> to vector<4x8x8xf32>
    %79 = vector.shape_cast %78 : vector<4x8x8xf32> to vector<32x8xf32>
    %80 = vector.extract_strided_slice %75 {offsets = [8, 0, 0], sizes = [4, 8, 8], strides = [1, 1, 1]} : vector<16x8x8xf32> to vector<4x8x8xf32>
    %81 = vector.shape_cast %80 : vector<4x8x8xf32> to vector<32x8xf32>
    %82 = vector.extract_strided_slice %75 {offsets = [12, 0, 0], sizes = [4, 8, 8], strides = [1, 1, 1]} : vector<16x8x8xf32> to vector<4x8x8xf32>
    %83 = vector.shape_cast %82 : vector<4x8x8xf32> to vector<32x8xf32>
    %84 = tpu.concatenate %77, %79, %81, %83 in 1 : vector<32x8xf32>, vector<32x8xf32>, vector<32x8xf32>, vector<32x8xf32> -> vector<32x32xf32>
    %c0_31 = arith.constant 0 : index
    %c0_32 = arith.constant 0 : index
    %c0_33 = arith.constant 0 : index
    %85 = vector.load %arg8[%c0_31, %c0_32, %c0_33] : memref<1x32x32xf32, #tpu.memory_space<vmem>>, vector<1x32x32xf32>
    %86 = vector.shape_cast %85 : vector<1x32x32xf32> to vector<32x32xf32>
    %cst_34 = arith.constant dense<0.000000e+00> : vector<32x32xf32>
    %87 = tpu.matmul %84, %86, %cst_34 {dimension_numbers = #tpu.dot_dimension_numbers<[1], [0], [0], [1], [0, 0, 1, 1], [], []>} : vector<32x32xf32>, vector<32x32xf32>, vector<32x32xf32> -> vector<32x32xf32>
    %88 = arith.addf %3, %87 : vector<32x32xf32>
    %c0_35 = arith.constant 0 : index
    %c0_36 = arith.constant 0 : index
    %c0_37 = arith.constant 0 : index
    %89 = vector.load %arg9[%c0_35, %c0_36, %c0_37] : memref<1x1x32xf32, #tpu.memory_space<vmem>>, vector<1x1x32xf32>
    %90 = vector.shape_cast %89 : vector<1x1x32xf32> to vector<1x32xf32>
    %91 = vector.broadcast %90 : vector<1x32xf32> to vector<32x32xf32>
    %92 = arith.addf %88, %91 : vector<32x32xf32>
    %c0_38 = arith.constant 0 : index
    %c0_39 = arith.constant 0 : index
    %c0_40 = arith.constant 0 : index
    %93 = vector.load %arg10[%c0_38, %c0_39, %c0_40] : memref<1x1x32xf32, #tpu.memory_space<vmem>>, vector<1x1x32xf32>
    %94 = vector.shape_cast %93 : vector<1x1x32xf32> to vector<1x32xf32>
    %c0_41 = arith.constant 0 : index
    %c0_42 = arith.constant 0 : index
    %c0_43 = arith.constant 0 : index
    %95 = vector.load %arg11[%c0_41, %c0_42, %c0_43] : memref<1x1x32xf32, #tpu.memory_space<vmem>>, vector<1x1x32xf32>
    %96 = vector.shape_cast %95 : vector<1x1x32xf32> to vector<1x32xf32>
    %cst_44 = arith.constant dense<0.000000e+00> : vector<32xf32>
    %97 = vector.multi_reduction <add>, %92, %cst_44 [1] : vector<32x32xf32> to vector<32xf32>
    %98 = vector.shape_cast %97 : vector<32xf32> to vector<32x1xf32>
    %cst_45 = arith.constant 3.200000e+01 : f32
    %99 = vector.broadcast %cst_45 : f32 to vector<32x1xf32>
    %100 = arith.divf %98, %99 : vector<32x1xf32>
    %101 = vector.broadcast %100 : vector<32x1xf32> to vector<32x32xf32>
    %102 = arith.subf %92, %101 : vector<32x32xf32>
    %103 = arith.mulf %102, %102 : vector<32x32xf32>
    %cst_46 = arith.constant dense<0.000000e+00> : vector<32xf32>
    %104 = vector.multi_reduction <add>, %103, %cst_46 [1] : vector<32x32xf32> to vector<32xf32>
    %105 = vector.shape_cast %104 : vector<32xf32> to vector<32x1xf32>
    %cst_47 = arith.constant 3.200000e+01 : f32
    %106 = vector.broadcast %cst_47 : f32 to vector<32x1xf32>
    %107 = arith.divf %105, %106 : vector<32x1xf32>
    %108 = vector.broadcast %100 : vector<32x1xf32> to vector<32x32xf32>
    %109 = arith.subf %92, %108 : vector<32x32xf32>
    %cst_48 = arith.constant 9.99999974E-6 : f32
    %110 = vector.broadcast %cst_48 : f32 to vector<32x1xf32>
    %111 = arith.addf %107, %110 : vector<32x1xf32>
    %112 = math.rsqrt %111 : vector<32x1xf32>
    %113 = vector.broadcast %112 : vector<32x1xf32> to vector<32x32xf32>
    %114 = arith.mulf %109, %113 : vector<32x32xf32>
    %115 = vector.broadcast %94 : vector<1x32xf32> to vector<32x32xf32>
    %116 = arith.mulf %114, %115 : vector<32x32xf32>
    %117 = vector.broadcast %96 : vector<1x32xf32> to vector<32x32xf32>
    %118 = arith.addf %116, %117 : vector<32x32xf32>
    %c0_49 = arith.constant 0 : index
    %c0_50 = arith.constant 0 : index
    %c0_51 = arith.constant 0 : index
    %119 = vector.load %arg12[%c0_49, %c0_50, %c0_51] : memref<1x32x64xf32, #tpu.memory_space<vmem>>, vector<1x32x64xf32>
    %120 = vector.shape_cast %119 : vector<1x32x64xf32> to vector<32x64xf32>
    %cst_52 = arith.constant dense<0.000000e+00> : vector<32x64xf32>
    %121 = tpu.matmul %118, %120, %cst_52 {dimension_numbers = #tpu.dot_dimension_numbers<[1], [0], [0], [1], [0, 0, 1, 1], [], []>} : vector<32x32xf32>, vector<32x64xf32>, vector<32x64xf32> -> vector<32x64xf32>
    %c0_53 = arith.constant 0 : index
    %c0_54 = arith.constant 0 : index
    %c0_55 = arith.constant 0 : index
    %122 = vector.load %arg13[%c0_53, %c0_54, %c0_55] : memref<1x1x64xf32, #tpu.memory_space<vmem>>, vector<1x1x64xf32>
    %123 = vector.shape_cast %122 : vector<1x1x64xf32> to vector<1x64xf32>
    %124 = vector.broadcast %123 : vector<1x64xf32> to vector<32x64xf32>
    %125 = arith.addf %121, %124 : vector<32x64xf32>
    %cst_56 = arith.constant 5.000000e-01 : f32
    %126 = vector.broadcast %cst_56 : f32 to vector<32x64xf32>
    %127 = arith.mulf %126, %125 : vector<32x64xf32>
    %cst_57 = arith.constant 0.707106769 : f32
    %128 = vector.broadcast %cst_57 : f32 to vector<32x64xf32>
    %129 = arith.mulf %125, %128 : vector<32x64xf32>
    %cst_58 = arith.constant 0.000000e+00 : f32
    %130 = vector.broadcast %cst_58 : f32 to vector<32x64xf32>
    %131 = arith.cmpf oge, %129, %130 : vector<32x64xf32>
    %cst_59 = arith.constant 1.000000e+00 : f32
    %cst_60 = arith.constant -1.000000e+00 : f32
    %132 = vector.broadcast %cst_59 : f32 to vector<32x64xf32>
    %133 = vector.broadcast %cst_60 : f32 to vector<32x64xf32>
    %134 = arith.select %131, %132, %133 : vector<32x64xi1>, vector<32x64xf32>
    %135 = math.absf %129 : vector<32x64xf32>
    %cst_61 = arith.constant 0.327591091 : f32
    %136 = vector.broadcast %cst_61 : f32 to vector<32x64xf32>
    %137 = arith.mulf %136, %135 : vector<32x64xf32>
    %cst_62 = arith.constant 1.000000e+00 : f32
    %138 = vector.broadcast %cst_62 : f32 to vector<32x64xf32>
    %139 = arith.addf %138, %137 : vector<32x64xf32>
    %cst_63 = arith.constant 1.000000e+00 : f32
    %140 = vector.broadcast %cst_63 : f32 to vector<32x64xf32>
    %141 = arith.divf %140, %139 : vector<32x64xf32>
    %cst_64 = arith.constant 1.06140542 : f32
    %142 = vector.broadcast %cst_64 : f32 to vector<32x64xf32>
    %143 = arith.mulf %142, %141 : vector<32x64xf32>
    %cst_65 = arith.constant -1.45315206 : f32
    %144 = vector.broadcast %cst_65 : f32 to vector<32x64xf32>
    %145 = arith.addf %143, %144 : vector<32x64xf32>
    %146 = arith.mulf %145, %141 : vector<32x64xf32>
    %cst_66 = arith.constant 1.42141378 : f32
    %147 = vector.broadcast %cst_66 : f32 to vector<32x64xf32>
    %148 = arith.addf %146, %147 : vector<32x64xf32>
    %149 = arith.mulf %148, %141 : vector<32x64xf32>
    %cst_67 = arith.constant -0.284496725 : f32
    %150 = vector.broadcast %cst_67 : f32 to vector<32x64xf32>
    %151 = arith.addf %149, %150 : vector<32x64xf32>
    %152 = arith.mulf %151, %141 : vector<32x64xf32>
    %cst_68 = arith.constant 0.254829586 : f32
    %153 = vector.broadcast %cst_68 : f32 to vector<32x64xf32>
    %154 = arith.addf %152, %153 : vector<32x64xf32>
    %155 = arith.mulf %154, %141 : vector<32x64xf32>
    %cst_69 = arith.constant 0.000000e+00 : f32
    %156 = vector.broadcast %cst_69 : f32 to vector<32x64xf32>
    %157 = arith.subf %156, %135 : vector<32x64xf32>
    %158 = arith.mulf %157, %135 : vector<32x64xf32>
    %159 = math.exp %158 : vector<32x64xf32>
    %160 = arith.mulf %155, %159 : vector<32x64xf32>
    %cst_70 = arith.constant 1.000000e+00 : f32
    %161 = vector.broadcast %cst_70 : f32 to vector<32x64xf32>
    %162 = arith.subf %161, %160 : vector<32x64xf32>
    %163 = arith.mulf %134, %162 : vector<32x64xf32>
    %cst_71 = arith.constant 1.000000e+00 : f32
    %164 = vector.broadcast %cst_71 : f32 to vector<32x64xf32>
    %165 = arith.addf %164, %163 : vector<32x64xf32>
    %166 = arith.mulf %127, %165 : vector<32x64xf32>
    %c0_72 = arith.constant 0 : index
    %c0_73 = arith.constant 0 : index
    %c0_74 = arith.constant 0 : index
    %167 = vector.load %arg14[%c0_72, %c0_73, %c0_74] : memref<1x64x32xf32, #tpu.memory_space<vmem>>, vector<1x64x32xf32>
    %168 = vector.shape_cast %167 : vector<1x64x32xf32> to vector<64x32xf32>
    %cst_75 = arith.constant dense<0.000000e+00> : vector<32x32xf32>
    %169 = tpu.matmul %166, %168, %cst_75 {dimension_numbers = #tpu.dot_dimension_numbers<[1], [0], [0], [1], [0, 0, 1, 1], [], []>} : vector<32x64xf32>, vector<64x32xf32>, vector<32x32xf32> -> vector<32x32xf32>
    %170 = arith.addf %92, %169 : vector<32x32xf32>
    %c0_76 = arith.constant 0 : index
    %c0_77 = arith.constant 0 : index
    %c0_78 = arith.constant 0 : index
    %171 = vector.load %arg15[%c0_76, %c0_77, %c0_78] : memref<1x1x32xf32, #tpu.memory_space<vmem>>, vector<1x1x32xf32>
    %172 = vector.shape_cast %171 : vector<1x1x32xf32> to vector<1x32xf32>
    %173 = vector.broadcast %172 : vector<1x32xf32> to vector<32x32xf32>
    %174 = arith.addf %170, %173 : vector<32x32xf32>
    %c0_79 = arith.constant 0 : index
    %c0_80 = arith.constant 0 : index
    %175 = vector.load %arg23[%c0_79, %c0_80] : memref<32x32xf32, #tpu.memory_space<vmem>>, vector<32x32xf32>
    tpu.vector_store %arg23[%c0_79, %c0_80], %174 {strides = array<i32>} : memref<32x32xf32, #tpu.memory_space<vmem>>, vector<32x32xf32>,
    %c1_i32 = arith.constant 1 : i32
    %176 = arith.cmpi eq, %arg1, %c1_i32 : i32
    %177 = arith.extui %176 : i1 to i32
    %c0_i32_81 = arith.constant 0 : i32
    %178 = arith.cmpi ne, %177, %c0_i32_81 : i32
    scf.if %178 {
      %179 = tpu.iota {dimensions = array<i32: 1>} : vector<4x32xi32>
      %180 = tpu.iota {dimensions = array<i32: 0>} : vector<4x32xi32>
      %c8_i32 = arith.constant 8 : i32
      %181 = vector.broadcast %c8_i32 : i32 to vector<4x32xi32>
      %182 = arith.muli %180, %181 : vector<4x32xi32>
      %183 = arith.cmpi eq, %179, %182 : vector<4x32xi32>
      %184 = arith.extui %183 : vector<4x32xi1> to vector<4x32xi32>
      %185 = arith.sitofp %184 : vector<4x32xi32> to vector<4x32xf32>
      %cst_82 = arith.constant dense<0.000000e+00> : vector<4x32xf32>
      %186 = tpu.matmul %185, %174, %cst_82 {dimension_numbers = #tpu.dot_dimension_numbers<[1], [0], [0], [1], [0, 0, 1, 1], [], []>} : vector<4x32xf32>, vector<32x32xf32>, vector<4x32xf32> -> vector<4x32xf32>
      %c0_83 = arith.constant 0 : index
      %c0_84 = arith.constant 0 : index
      %187 = vector.load %arg16[%c0_83, %c0_84] : memref<1x32xf32, #tpu.memory_space<vmem>>, vector<1x32xf32>
      %c0_85 = arith.constant 0 : index
      %c0_86 = arith.constant 0 : index
      %188 = vector.load %arg17[%c0_85, %c0_86] : memref<1x32xf32, #tpu.memory_space<vmem>>, vector<1x32xf32>
      %cst_87 = arith.constant dense<0.000000e+00> : vector<4xf32>
      %189 = vector.multi_reduction <add>, %186, %cst_87 [1] : vector<4x32xf32> to vector<4xf32>
      %190 = vector.shape_cast %189 : vector<4xf32> to vector<4x1xf32>
      %cst_88 = arith.constant 3.200000e+01 : f32
      %191 = vector.broadcast %cst_88 : f32 to vector<4x1xf32>
      %192 = arith.divf %190, %191 : vector<4x1xf32>
      %193 = vector.broadcast %192 : vector<4x1xf32> to vector<4x32xf32>
      %194 = arith.subf %186, %193 : vector<4x32xf32>
      %195 = arith.mulf %194, %194 : vector<4x32xf32>
      %cst_89 = arith.constant dense<0.000000e+00> : vector<4xf32>
      %196 = vector.multi_reduction <add>, %195, %cst_89 [1] : vector<4x32xf32> to vector<4xf32>
      %197 = vector.shape_cast %196 : vector<4xf32> to vector<4x1xf32>
      %cst_90 = arith.constant 3.200000e+01 : f32
      %198 = vector.broadcast %cst_90 : f32 to vector<4x1xf32>
      %199 = arith.divf %197, %198 : vector<4x1xf32>
      %200 = vector.broadcast %192 : vector<4x1xf32> to vector<4x32xf32>
      %201 = arith.subf %186, %200 : vector<4x32xf32>
      %cst_91 = arith.constant 9.99999974E-6 : f32
      %202 = vector.broadcast %cst_91 : f32 to vector<4x1xf32>
      %203 = arith.addf %199, %202 : vector<4x1xf32>
      %204 = math.rsqrt %203 : vector<4x1xf32>
      %205 = vector.broadcast %204 : vector<4x1xf32> to vector<4x32xf32>
      %206 = arith.mulf %201, %205 : vector<4x32xf32>
      %207 = vector.broadcast %187 : vector<1x32xf32> to vector<4x32xf32>
      %208 = arith.mulf %206, %207 : vector<4x32xf32>
      %209 = vector.broadcast %188 : vector<1x32xf32> to vector<4x32xf32>
      %210 = arith.addf %208, %209 : vector<4x32xf32>
      %c0_92 = arith.constant 0 : index
      %c0_93 = arith.constant 0 : index
      %211 = vector.load %arg18[%c0_92, %c0_93] : memref<32x64xf32, #tpu.memory_space<vmem>>, vector<32x64xf32>
      %cst_94 = arith.constant dense<0.000000e+00> : vector<4x64xf32>
      %212 = tpu.matmul %210, %211, %cst_94 {dimension_numbers = #tpu.dot_dimension_numbers<[1], [0], [0], [1], [0, 0, 1, 1], [], []>} : vector<4x32xf32>, vector<32x64xf32>, vector<4x64xf32> -> vector<4x64xf32>
      %c0_95 = arith.constant 0 : index
      %c0_96 = arith.constant 0 : index
      %213 = vector.load %arg19[%c0_95, %c0_96] : memref<1x64xf32, #tpu.memory_space<vmem>>, vector<1x64xf32>
      %214 = vector.broadcast %213 : vector<1x64xf32> to vector<4x64xf32>
      %215 = arith.addf %212, %214 : vector<4x64xf32>
      %cst_97 = arith.constant 5.000000e-01 : f32
      %216 = vector.broadcast %cst_97 : f32 to vector<4x64xf32>
      %217 = arith.mulf %216, %215 : vector<4x64xf32>
      %cst_98 = arith.constant 0.707106769 : f32
      %218 = vector.broadcast %cst_98 : f32 to vector<4x64xf32>
      %219 = arith.mulf %215, %218 : vector<4x64xf32>
      %cst_99 = arith.constant 0.000000e+00 : f32
      %220 = vector.broadcast %cst_99 : f32 to vector<4x64xf32>
      %221 = arith.cmpf oge, %219, %220 : vector<4x64xf32>
      %cst_100 = arith.constant 1.000000e+00 : f32
      %cst_101 = arith.constant -1.000000e+00 : f32
      %222 = vector.broadcast %cst_100 : f32 to vector<4x64xf32>
      %223 = vector.broadcast %cst_101 : f32 to vector<4x64xf32>
      %224 = arith.select %221, %222, %223 : vector<4x64xi1>, vector<4x64xf32>
      %225 = math.absf %219 : vector<4x64xf32>
      %cst_102 = arith.constant 0.327591091 : f32
      %226 = vector.broadcast %cst_102 : f32 to vector<4x64xf32>
      %227 = arith.mulf %226, %225 : vector<4x64xf32>
      %cst_103 = arith.constant 1.000000e+00 : f32
      %228 = vector.broadcast %cst_103 : f32 to vector<4x64xf32>
      %229 = arith.addf %228, %227 : vector<4x64xf32>
      %cst_104 = arith.constant 1.000000e+00 : f32
      %230 = vector.broadcast %cst_104 : f32 to vector<4x64xf32>
      %231 = arith.divf %230, %229 : vector<4x64xf32>
      %cst_105 = arith.constant 1.06140542 : f32
      %232 = vector.broadcast %cst_105 : f32 to vector<4x64xf32>
      %233 = arith.mulf %232, %231 : vector<4x64xf32>
      %cst_106 = arith.constant -1.45315206 : f32
      %234 = vector.broadcast %cst_106 : f32 to vector<4x64xf32>
      %235 = arith.addf %233, %234 : vector<4x64xf32>
      %236 = arith.mulf %235, %231 : vector<4x64xf32>
      %cst_107 = arith.constant 1.42141378 : f32
      %237 = vector.broadcast %cst_107 : f32 to vector<4x64xf32>
      %238 = arith.addf %236, %237 : vector<4x64xf32>
      %239 = arith.mulf %238, %231 : vector<4x64xf32>
      %cst_108 = arith.constant -0.284496725 : f32
      %240 = vector.broadcast %cst_108 : f32 to vector<4x64xf32>
      %241 = arith.addf %239, %240 : vector<4x64xf32>
      %242 = arith.mulf %241, %231 : vector<4x64xf32>
      %cst_109 = arith.constant 0.254829586 : f32
      %243 = vector.broadcast %cst_109 : f32 to vector<4x64xf32>
      %244 = arith.addf %242, %243 : vector<4x64xf32>
      %245 = arith.mulf %244, %231 : vector<4x64xf32>
      %cst_110 = arith.constant 0.000000e+00 : f32
      %246 = vector.broadcast %cst_110 : f32 to vector<4x64xf32>
      %247 = arith.subf %246, %225 : vector<4x64xf32>
      %248 = arith.mulf %247, %225 : vector<4x64xf32>
      %249 = math.exp %248 : vector<4x64xf32>
      %250 = arith.mulf %245, %249 : vector<4x64xf32>
      %cst_111 = arith.constant 1.000000e+00 : f32
      %251 = vector.broadcast %cst_111 : f32 to vector<4x64xf32>
      %252 = arith.subf %251, %250 : vector<4x64xf32>
      %253 = arith.mulf %224, %252 : vector<4x64xf32>
      %cst_112 = arith.constant 1.000000e+00 : f32
      %254 = vector.broadcast %cst_112 : f32 to vector<4x64xf32>
      %255 = arith.addf %254, %253 : vector<4x64xf32>
      %256 = arith.mulf %217, %255 : vector<4x64xf32>
      %c0_113 = arith.constant 0 : index
      %c0_114 = arith.constant 0 : index
      %257 = vector.load %arg20[%c0_113, %c0_114] : memref<64x128xf32, #tpu.memory_space<vmem>>, vector<64x128xf32>
      %cst_115 = arith.constant dense<0.000000e+00> : vector<4x128xf32>
      %258 = tpu.matmul %256, %257, %cst_115 {dimension_numbers = #tpu.dot_dimension_numbers<[1], [0], [0], [1], [0, 0, 1, 1], [], []>} : vector<4x64xf32>, vector<64x128xf32>, vector<4x128xf32> -> vector<4x128xf32>
      %c0_116 = arith.constant 0 : index
      %c0_117 = arith.constant 0 : index
      %259 = vector.load %arg21[%c0_116, %c0_117] : memref<1x128xf32, #tpu.memory_space<vmem>>, vector<1x128xf32>
      %260 = vector.broadcast %259 : vector<1x128xf32> to vector<4x128xf32>
      %261 = arith.addf %258, %260 : vector<4x128xf32>
      %262 = arith.mulf %261, %261 : vector<4x128xf32>
      %cst_118 = arith.constant dense<0.000000e+00> : vector<4xf32>
      %263 = vector.multi_reduction <add>, %262, %cst_118 [1] : vector<4x128xf32> to vector<4xf32>
      %264 = vector.shape_cast %263 : vector<4xf32> to vector<4x1xf32>
      %cst_119 = arith.constant 1.000000e-24 : f32
      %265 = vector.broadcast %cst_119 : f32 to vector<4x1xf32>
      %266 = arith.maximumf %264, %265 : vector<4x1xf32>
      %267 = math.rsqrt %266 : vector<4x1xf32>
      %268 = vector.broadcast %267 : vector<4x1xf32> to vector<4x128xf32>
      %269 = arith.mulf %261, %268 : vector<4x128xf32>
      %270 = tpu.iota {dimensions = array<i32: 0>} : vector<2x4xi32>
      %271 = tpu.iota {dimensions = array<i32: 1>} : vector<2x4xi32>
      %c2_i32 = arith.constant 2 : i32
      %272 = vector.broadcast %c2_i32 : i32 to vector<2x4xi32>
      %273 = arith.muli %270, %272 : vector<2x4xi32>
      %274 = arith.cmpi sge, %271, %273 : vector<2x4xi32>
      %c1_i32_120 = arith.constant 1 : i32
      %275 = vector.broadcast %c1_i32_120 : i32 to vector<2x4xi32>
      %276 = arith.addi %270, %275 : vector<2x4xi32>
      %c2_i32_121 = arith.constant 2 : i32
      %277 = vector.broadcast %c2_i32_121 : i32 to vector<2x4xi32>
      %278 = arith.muli %276, %277 : vector<2x4xi32>
      %279 = arith.cmpi slt, %271, %278 : vector<2x4xi32>
      %280 = arith.andi %274, %279 : vector<2x4xi1>
      %cst_122 = arith.constant 5.000000e-01 : f32
      %cst_123 = arith.constant 0.000000e+00 : f32
      %281 = vector.broadcast %cst_122 : f32 to vector<2x4xf32>
      %282 = vector.broadcast %cst_123 : f32 to vector<2x4xf32>
      %283 = arith.select %280, %281, %282 : vector<2x4xi1>, vector<2x4xf32>
      %cst_124 = arith.constant dense<0.000000e+00> : vector<2x128xf32>
      %284 = tpu.matmul %283, %269, %cst_124 {dimension_numbers = #tpu.dot_dimension_numbers<[1], [0], [0], [1], [0, 0, 1, 1], [], []>} : vector<2x4xf32>, vector<4x128xf32>, vector<2x128xf32> -> vector<2x128xf32>
      %285 = arith.mulf %284, %284 : vector<2x128xf32>
      %cst_125 = arith.constant dense<0.000000e+00> : vector<2xf32>
      %286 = vector.multi_reduction <add>, %285, %cst_125 [1] : vector<2x128xf32> to vector<2xf32>
      %287 = vector.shape_cast %286 : vector<2xf32> to vector<2x1xf32>
      %cst_126 = arith.constant 1.000000e-24 : f32
      %288 = vector.broadcast %cst_126 : f32 to vector<2x1xf32>
      %289 = arith.maximumf %287, %288 : vector<2x1xf32>
      %290 = math.rsqrt %289 : vector<2x1xf32>
      %291 = vector.broadcast %290 : vector<2x1xf32> to vector<2x128xf32>
      %292 = arith.mulf %284, %291 : vector<2x128xf32>
      %c0_127 = arith.constant 0 : index
      %c0_128 = arith.constant 0 : index
      %c0_129 = arith.constant 0 : index
      %293 = vector.load %arg22[%c0_127, %c0_128, %c0_129] : memref<1x2x128xf32, #tpu.memory_space<vmem>>, vector<1x2x128xf32>
      %294 = vector.shape_cast %293 : vector<1x2x128xf32> to vector<2x128xf32>
      %295 = vector.shape_cast %292 : vector<2x128xf32> to vector<1x2x128xf32>
      tpu.vector_store %arg22[%c0_127, %c0_128, %c0_129], %295 {strides = array<i32>} : memref<1x2x128xf32, #tpu.memory_space<vmem>>, vector<1x2x128xf32>,
    } else {
    }
    return
  }
  func.func @transform_0(%arg0: i32, %arg1: i32) -> (i32, i32, i32) {
    %c0_i32 = arith.constant 0 : i32
    %c0_i32_0 = arith.constant 0 : i32
    %c0_i32_1 = arith.constant 0 : i32
    return %arg0, %c0_i32, %c0_i32_0 : i32, i32, i32
  }
  func.func @transform_1(%arg0: i32, %arg1: i32) -> (i32, i32, i32, i32) {
    %c0_i32 = arith.constant 0 : i32
    %c0_i32_0 = arith.constant 0 : i32
    %c0_i32_1 = arith.constant 0 : i32
    %c0_i32_2 = arith.constant 0 : i32
    return %arg0, %c0_i32, %c0_i32_0, %c0_i32_1 : i32, i32, i32, i32
  }
  func.func @transform_2(%arg0: i32, %arg1: i32) -> (i32, i32, i32) {
    %c0_i32 = arith.constant 0 : i32
    %c0_i32_0 = arith.constant 0 : i32
    %c0_i32_1 = arith.constant 0 : i32
    return %arg1, %c0_i32, %c0_i32_0 : i32, i32, i32
  }
  func.func @transform_3(%arg0: i32, %arg1: i32) -> (i32, i32, i32) {
    %c0_i32 = arith.constant 0 : i32
    %c0_i32_0 = arith.constant 0 : i32
    %c0_i32_1 = arith.constant 0 : i32
    return %arg1, %c0_i32, %c0_i32_0 : i32, i32, i32
  }
  func.func @transform_4(%arg0: i32, %arg1: i32) -> (i32, i32, i32) {
    %c0_i32 = arith.constant 0 : i32
    %c0_i32_0 = arith.constant 0 : i32
    %c0_i32_1 = arith.constant 0 : i32
    return %arg1, %c0_i32, %c0_i32_0 : i32, i32, i32
  }
  func.func @transform_5(%arg0: i32, %arg1: i32) -> (i32, i32, i32) {
    %c0_i32 = arith.constant 0 : i32
    %c0_i32_0 = arith.constant 0 : i32
    %c0_i32_1 = arith.constant 0 : i32
    return %arg1, %c0_i32, %c0_i32_0 : i32, i32, i32
  }
  func.func @transform_6(%arg0: i32, %arg1: i32) -> (i32, i32, i32) {
    %c0_i32 = arith.constant 0 : i32
    %c0_i32_0 = arith.constant 0 : i32
    %c0_i32_1 = arith.constant 0 : i32
    return %arg1, %c0_i32, %c0_i32_0 : i32, i32, i32
  }
  func.func @transform_7(%arg0: i32, %arg1: i32) -> (i32, i32, i32) {
    %c0_i32 = arith.constant 0 : i32
    %c0_i32_0 = arith.constant 0 : i32
    %c0_i32_1 = arith.constant 0 : i32
    return %arg1, %c0_i32, %c0_i32_0 : i32, i32, i32
  }
  func.func @transform_8(%arg0: i32, %arg1: i32) -> (i32, i32, i32) {
    %c0_i32 = arith.constant 0 : i32
    %c0_i32_0 = arith.constant 0 : i32
    %c0_i32_1 = arith.constant 0 : i32
    return %arg1, %c0_i32, %c0_i32_0 : i32, i32, i32
  }
  func.func @transform_9(%arg0: i32, %arg1: i32) -> (i32, i32, i32) {
    %c0_i32 = arith.constant 0 : i32
    %c0_i32_0 = arith.constant 0 : i32
    %c0_i32_1 = arith.constant 0 : i32
    return %arg1, %c0_i32, %c0_i32_0 : i32, i32, i32
  }
  func.func @transform_10(%arg0: i32, %arg1: i32) -> (i32, i32, i32) {
    %c0_i32 = arith.constant 0 : i32
    %c0_i32_0 = arith.constant 0 : i32
    %c0_i32_1 = arith.constant 0 : i32
    return %arg1, %c0_i32, %c0_i32_0 : i32, i32, i32
  }
  func.func @transform_11(%arg0: i32, %arg1: i32) -> (i32, i32, i32) {
    %c0_i32 = arith.constant 0 : i32
    %c0_i32_0 = arith.constant 0 : i32
    %c0_i32_1 = arith.constant 0 : i32
    return %arg1, %c0_i32, %c0_i32_0 : i32, i32, i32
  }
  func.func @transform_12(%arg0: i32, %arg1: i32) -> (i32, i32, i32) {
    %c0_i32 = arith.constant 0 : i32
    %c0_i32_0 = arith.constant 0 : i32
    %c0_i32_1 = arith.constant 0 : i32
    return %arg1, %c0_i32, %c0_i32_0 : i32, i32, i32
  }
  func.func @transform_13(%arg0: i32, %arg1: i32) -> (i32, i32, i32) {
    %c0_i32 = arith.constant 0 : i32
    %c0_i32_0 = arith.constant 0 : i32
    %c0_i32_1 = arith.constant 0 : i32
    return %arg1, %c0_i32, %c0_i32_0 : i32, i32, i32
  }
  func.func @transform_14(%arg0: i32, %arg1: i32) -> (i32, i32) {
    %c0_i32 = arith.constant 0 : i32
    %c0_i32_0 = arith.constant 0 : i32
    %c0_i32_1 = arith.constant 0 : i32
    return %c0_i32, %c0_i32_0 : i32, i32
  }
  func.func @transform_15(%arg0: i32, %arg1: i32) -> (i32, i32) {
    %c0_i32 = arith.constant 0 : i32
    %c0_i32_0 = arith.constant 0 : i32
    %c0_i32_1 = arith.constant 0 : i32
    return %c0_i32, %c0_i32_0 : i32, i32
  }
  func.func @transform_16(%arg0: i32, %arg1: i32) -> (i32, i32) {
    %c0_i32 = arith.constant 0 : i32
    %c0_i32_0 = arith.constant 0 : i32
    %c0_i32_1 = arith.constant 0 : i32
    return %c0_i32, %c0_i32_0 : i32, i32
  }
  func.func @transform_17(%arg0: i32, %arg1: i32) -> (i32, i32) {
    %c0_i32 = arith.constant 0 : i32
    %c0_i32_0 = arith.constant 0 : i32
    %c0_i32_1 = arith.constant 0 : i32
    return %c0_i32, %c0_i32_0 : i32, i32
  }
  func.func @transform_18(%arg0: i32, %arg1: i32) -> (i32, i32) {
    %c0_i32 = arith.constant 0 : i32
    %c0_i32_0 = arith.constant 0 : i32
    %c0_i32_1 = arith.constant 0 : i32
    return %c0_i32, %c0_i32_0 : i32, i32
  }
  func.func @transform_19(%arg0: i32, %arg1: i32) -> (i32, i32) {
    %c0_i32 = arith.constant 0 : i32
    %c0_i32_0 = arith.constant 0 : i32
    %c0_i32_1 = arith.constant 0 : i32
    return %c0_i32, %c0_i32_0 : i32, i32
  }
  func.func @transform_20(%arg0: i32, %arg1: i32) -> (i32, i32, i32) {
    %c0_i32 = arith.constant 0 : i32
    %c0_i32_0 = arith.constant 0 : i32
    %c0_i32_1 = arith.constant 0 : i32
    return %arg0, %c0_i32, %c0_i32_0 : i32, i32, i32
  }
}

</mosaic_0001>

<llo_original>
// kernel: tpu_custom_call.1
$region0: #{tpu_custom_call.1}
  #allocation0 [shape = 'u32[]', space=smem, size = 0x4, offset = 0x4, fixed_abs, tag = 'smem constant byte address 0x4 - core index']
  #allocation1 [shape = 'u32[72,128]{1,0:T(1,128)}', space=vmem, size = 0x9000, scoped, tag = 'internal scratch']
  #allocation2 [shape = 'f32[32,32]{1,0:T(8,128)}', space=vmem, size = 0x4000, scoped, tag = 'scratch operand']
  %s0 = inlined_call_operand.vmem [shape: f32[2,32,32], index: 0, kind: input, shape index: {}]
  %s1 = inlined_call_operand.hbm [shape: s32[2,4,1,8], index: 1, kind: input, shape index: {}]
  %s2 = inlined_call_operand.hbm [shape: f32[2,1,32], index: 2, kind: input, shape index: {}]
  %s3 = inlined_call_operand.vmem [shape: f32[2,1,32], index: 3, kind: input, shape index: {}]
  %s4 = inlined_call_operand.vmem [shape: f32[2,32,96], index: 4, kind: input, shape index: {}]
  %s5 = inlined_call_operand.hbm [shape: f32[2,1,96], index: 5, kind: input, shape index: {}]
  %s6 = inlined_call_operand.vmem [shape: f32[2,32,32], index: 6, kind: input, shape index: {}]
  %s7 = inlined_call_operand.vmem [shape: f32[2,1,32], index: 7, kind: input, shape index: {}]
  %s8 = inlined_call_operand.hbm [shape: f32[2,1,32], index: 8, kind: input, shape index: {}]
  %s9 = inlined_call_operand.vmem [shape: f32[2,1,32], index: 9, kind: input, shape index: {}]
  %s10 = inlined_call_operand.hbm [shape: f32[2,32,64], index: 10, kind: input, shape index: {}]
  %s11 = inlined_call_operand.vmem [shape: f32[2,1,64], index: 11, kind: input, shape index: {}]
  %s12 = inlined_call_operand.vmem [shape: f32[2,64,32], index: 12, kind: input, shape index: {}]
  %s13 = inlined_call_operand.vmem [shape: f32[2,1,32], index: 13, kind: input, shape index: {}]
  %s14 = inlined_call_operand.vmem [shape: f32[1,32], index: 14, kind: input, shape index: {}]
  %s15 = inlined_call_operand.vmem [shape: f32[1,32], index: 15, kind: input, shape index: {}]
  %s16 = inlined_call_operand.hbm [shape: f32[32,64], index: 16, kind: input, shape index: {}]
  %s17 = inlined_call_operand.vmem [shape: f32[1,64], index: 17, kind: input, shape index: {}]
  %s18 = inlined_call_operand.hbm [shape: f32[64,128], index: 18, kind: input, shape index: {}]
  %s19 = inlined_call_operand.vmem [shape: f32[1,128], index: 19, kind: input, shape index: {}]
  %s20 = inlined_call_operand.hbm [shape: f32[2,2,128], index: 20, kind: output, shape index: {}]
  %s21 = sld [smem:[#allocation0]]
  $region149: #{tpu_custom_call.1} parent=0
    _
  %s23 = ssub.s32 1, %s21
  %s24 = scalar_select 0, %s23, %s21
  $region1: #{tpu_custom_call.1} parent=0
    #allocation3 [shape = 'u8[4096]{0}', space=vmem, size = 0x1000, scoped, tag = 'input window, operand 1']
    #allocation4 [shape = 's32[2]{0}', space=sflag, size = 0x8, scoped, tag = 'scoped memory for tpu_custom_call.1']
    #allocation5 [shape = 's32[2]{0}', space=sflag, size = 0x8, scoped, tag = 'scoped memory for tpu_custom_call.1']
    #allocation6 [shape = 'u8[1024]{0}', space=vmem, size = 0x400, scoped, tag = 'input window, operand 2']
    #allocation7 [shape = 's32[2]{0}', space=sflag, size = 0x8, scoped, tag = 'scoped memory for tpu_custom_call.1']
    #allocation8 [shape = 'u8[1024]{0}', space=vmem, size = 0x400, scoped, tag = 'input window, operand 5']
    #allocation9 [shape = 'u8[1024]{0}', space=vmem, size = 0x400, scoped, tag = 'input window, operand 8']
    #allocation10 [shape = 's32[2]{0}', space=sflag, size = 0x8, scoped, tag = 'scoped memory for tpu_custom_call.1']
    #allocation11 [shape = 'u8[32768]{0}', space=vmem, size = 0x8000, scoped, tag = 'input window, operand 10']
    #allocation12 [shape = 'u8[16384]{0}', space=vmem, size = 0x4000, scoped, tag = 'input window, operand 16, single buffered']
    #allocation13 [shape = 's32[1]{0}', space=sflag, size = 0x4, scoped, tag = 'scoped memory for tpu_custom_call.1']
    #allocation14 [shape = 'u8[32768]{0}', space=vmem, size = 0x8000, scoped, tag = 'input window, operand 18, single buffered']
    #allocation15 [shape = 'u8[2048]{0}', space=vmem, size = 0x800, scoped, tag = 'output window, operand 0']
    %25 = vsyncpa [#allocation4], 0
    %s26 = scalar_lea.sflag [#allocation4], 1
    %27 = vsyncpa %s26, 0
    %28 = vsyncpa [#allocation7], 0
    %s29 = scalar_lea.sflag [#allocation7], 1
    %30 = vsyncpa %s29, 0
    %31 = vsyncpa [#allocation10], 0
    %s32 = scalar_lea.sflag [#allocation10], 1
    %33 = vsyncpa %s32, 0
    %34 = vsyncpa [#allocation13], 0
    %35 = vsyncpa [#allocation5], 0
    %s36 = scalar_lea.sflag [#allocation5], 1
    %37 = vsyncpa %s36, 0
    loop: start=0, step=1, limit=6
    $region2: #{tpu_custom_call.1} parent=1 // loop_pre_header
      _
    $region3: #{tpu_custom_call.1} parent=1 // loop_header
      %s39 = sphi 0, %s43
      %p40 = scmp.ge.s32.totalorder %s39, 6
      %s46 = sphi 0, %s58
      %s47 = sphi 0, %s54
      %s48 = sphi 0, %s46
      %s49 = sphi 0, %s47
      %s50 = sphi 0, %s48
      %s51 = sphi 0, %s49
      %s61 = sphi 0, %s63
      %s64 = sphi 0, %s61
      %s65 = sphi 0, %s64
      %s81 = sphi 0, %s65
      %s87 = sphi 0, %s89
      %s90 = sphi 0, %s87
      %s91 = sphi 0, %s90
      %s107 = sphi 0, %s91
      %s113 = sphi 0, %s115
      %s116 = sphi 0, %s113
      %s117 = sphi 0, %s116
      %s133 = sphi 0, %s117
      %s139 = sphi 0, %s141
      %s142 = sphi 0, %s139
      %s143 = sphi 0, %s142
      %s159 = sphi 0, %s143
      %s165 = sphi 0, %s167
      %s168 = sphi 0, %s165
      %s169 = sphi 0, %s168
      %s185 = sphi 0, %s169
      %s191 = sphi 0, %s193
      %s194 = sphi 0, %s191
      %s195 = sphi 0, %s194
      %s211 = sphi 0, %s195
      %s217 = sphi 0, %s219
      %s220 = sphi 0, %s217
      %s221 = sphi 0, %s220
      %s237 = sphi 0, %s221
      %s243 = sphi 0, %s245
      %s246 = sphi 0, %s243
      %s247 = sphi 0, %s246
      %s263 = sphi 0, %s247
      %s269 = sphi 0, %s271
      %s272 = sphi 0, %s269
      %s273 = sphi 0, %s272
      %s289 = sphi 0, %s273
      %s295 = sphi 0, %s297
      %s298 = sphi 0, %s295
      %s299 = sphi 0, %s298
      %s315 = sphi 0, %s299
      %s321 = sphi 0, %s323
      %s324 = sphi 0, %s321
      %s325 = sphi 0, %s324
      %s341 = sphi 0, %s325
      %s347 = sphi 0, %s349
      %s350 = sphi 0, %s347
      %s351 = sphi 0, %s350
      %s367 = sphi 0, %s351
      %s373 = sphi 0, %s375
      %s376 = sphi 0, %s373
      %s377 = sphi 0, %s376
      %s393 = sphi 0, %s377
      %s399 = sphi 0, %s401
      %s402 = sphi 0, %s399
      %s403 = sphi 0, %s402
      %s419 = sphi 0, %s403
      %s423 = sphi 0, %s423
      %s425 = sphi 0, %s423
      %s426 = sphi 0, %s425
      %s440 = sphi 0, %s426
      %s444 = sphi 0, %s444
      %s446 = sphi 0, %s444
      %s447 = sphi 0, %s446
      %s461 = sphi 0, %s447
      %s465 = sphi 0, %s465
      %s467 = sphi 0, %s465
      %s468 = sphi 0, %s467
      %s482 = sphi 0, %s468
      %s486 = sphi 0, %s486
      %s488 = sphi 0, %s486
      %s489 = sphi 0, %s488
      %s503 = sphi 0, %s489
      %s507 = sphi 0, %s507
      %s509 = sphi 0, %s507
      %s510 = sphi 0, %s509
      %s524 = sphi 0, %s510
      %s528 = sphi 0, %s528
      %s530 = sphi 0, %s528
      %s531 = sphi 0, %s530
      %s545 = sphi 0, %s531
      %s551 = sphi 0, %s553
      %s554 = sphi 0, %s551
      %s555 = sphi 0, %s554
      %s571 = sphi 0, %s555
    $region4: #{tpu_custom_call.1} parent=1 // loop_header_branch
      %42 = sbr.rel (%p40) target = $region8
    $region5: #{tpu_custom_call.1} parent=1 // loop_body
      %s44 = ssub.s32 %s39, 1
      %s45 = ssub.s32 %s39, 2
      %s52 = sadd.s32 1, %s47
      %p53 = scmp.ge.s32.totalorder %s52, 2
      %s54 = scalar_select %p53, 0, %s52
      %s55 = sadd.s32 1, %s46
      %s56 = scalar_select %p53, %s55, %s46
      %p57 = scmp.ge.s32.totalorder %s56, 2
      %s58 = scalar_select %p57, 0, %s56
      %s59 = ssub.s32 %s46, %s58
      %p60 = scmp.eq.s32.totalorder %s59, 0
      %s62 = sadd.s32 %s61, 1
      %s63 = scalar_select %p60, %s61, %s62
      %p66 = pneg %p60
      %p67 = scmp.eq.s32.totalorder %s39, 3
      %p68 = por %p66, %p67
      %p69 = scmp.ne.s32.totalorder %s61, %s64
      %p70 = scmp.eq.s32.totalorder %s39, 0
      %p71 = por %p69, %p70
      %p72 = scmp.ne.s32.totalorder %s61, %s64
      %p73 = scmp.eq.s32.totalorder %s44, 3
      %p74 = por %p72, %p73
      %p75 = scmp.ne.s32.totalorder %s64, %s65
      %p76 = scmp.eq.s32.totalorder %s44, 0
      %p77 = por %p75, %p76
      %p78 = scmp.ne.s32.totalorder %s64, %s65
      %p79 = scmp.eq.s32.totalorder %s45, 3
      %p80 = por %p78, %p79
      %p82 = scmp.ne.s32.totalorder %s65, %s81
      %p83 = scmp.eq.s32.totalorder %s45, 0
      %p84 = por %p82, %p83
      %s85 = ssub.s32 %s46, %s58
      %p86 = scmp.eq.s32.totalorder %s85, 0
      %s88 = sadd.s32 %s87, 1
      %s89 = scalar_select %p86, %s87, %s88
      %p92 = pneg %p86
      %p93 = scmp.eq.s32.totalorder %s39, 3
      %p94 = por %p92, %p93
      %p95 = scmp.ne.s32.totalorder %s87, %s90
      %p96 = scmp.eq.s32.totalorder %s39, 0
      %p97 = por %p95, %p96
      %p98 = scmp.ne.s32.totalorder %s87, %s90
      %p99 = scmp.eq.s32.totalorder %s44, 3
      %p100 = por %p98, %p99
      %p101 = scmp.ne.s32.totalorder %s90, %s91
      %p102 = scmp.eq.s32.totalorder %s44, 0
      %p103 = por %p101, %p102
      %p104 = scmp.ne.s32.totalorder %s90, %s91
      %p105 = scmp.eq.s32.totalorder %s45, 3
      %p106 = por %p104, %p105
      %p108 = scmp.ne.s32.totalorder %s91, %s107
      %p109 = scmp.eq.s32.totalorder %s45, 0
      %p110 = por %p108, %p109
      %s111 = ssub.s32 %s47, %s54
      %p112 = scmp.eq.s32.totalorder %s111, 0
      %s114 = sadd.s32 %s113, 1
      %s115 = scalar_select %p112, %s113, %s114
      %p118 = pneg %p112
      %p119 = scmp.eq.s32.totalorder %s39, 3
      %p120 = por %p118, %p119
      %p121 = scmp.ne.s32.totalorder %s113, %s116
      %p122 = scmp.eq.s32.totalorder %s39, 0
      %p123 = por %p121, %p122
      %p124 = scmp.ne.s32.totalorder %s113, %s116
      %p125 = scmp.eq.s32.totalorder %s44, 3
      %p126 = por %p124, %p125
      %p127 = scmp.ne.s32.totalorder %s116, %s117
      %p128 = scmp.eq.s32.totalorder %s44, 0
      %p129 = por %p127, %p128
      %p130 = scmp.ne.s32.totalorder %s116, %s117
      %p131 = scmp.eq.s32.totalorder %s45, 3
      %p132 = por %p130, %p131
      %p134 = scmp.ne.s32.totalorder %s117, %s133
      %p135 = scmp.eq.s32.totalorder %s45, 0
      %p136 = por %p134, %p135
      %s137 = ssub.s32 %s47, %s54
      %p138 = scmp.eq.s32.totalorder %s137, 0
      %s140 = sadd.s32 %s139, 1
      %s141 = scalar_select %p138, %s139, %s140
      %p144 = pneg %p138
      %p145 = scmp.eq.s32.totalorder %s39, 3
      %p146 = por %p144, %p145
      %p147 = scmp.ne.s32.totalorder %s139, %s142
      %p148 = scmp.eq.s32.totalorder %s39, 0
      %p149 = por %p147, %p148
      %p150 = scmp.ne.s32.totalorder %s139, %s142
      %p151 = scmp.eq.s32.totalorder %s44, 3
      %p152 = por %p150, %p151
      %p153 = scmp.ne.s32.totalorder %s142, %s143
      %p154 = scmp.eq.s32.totalorder %s44, 0
      %p155 = por %p153, %p154
      %p156 = scmp.ne.s32.totalorder %s142, %s143
      %p157 = scmp.eq.s32.totalorder %s45, 3
      %p158 = por %p156, %p157
      %p160 = scmp.ne.s32.totalorder %s143, %s159
      %p161 = scmp.eq.s32.totalorder %s45, 0
      %p162 = por %p160, %p161
      %s163 = ssub.s32 %s47, %s54
      %p164 = scmp.eq.s32.totalorder %s163, 0
      %s166 = sadd.s32 %s165, 1
      %s167 = scalar_select %p164, %s165, %s166
      %p170 = pneg %p164
      %p171 = scmp.eq.s32.totalorder %s39, 3
      %p172 = por %p170, %p171
      %p173 = scmp.ne.s32.totalorder %s165, %s168
      %p174 = scmp.eq.s32.totalorder %s39, 0
      %p175 = por %p173, %p174
      %p176 = scmp.ne.s32.totalorder %s165, %s168
      %p177 = scmp.eq.s32.totalorder %s44, 3
      %p178 = por %p176, %p177
      %p179 = scmp.ne.s32.totalorder %s168, %s169
      %p180 = scmp.eq.s32.totalorder %s44, 0
      %p181 = por %p179, %p180
      %p182 = scmp.ne.s32.totalorder %s168, %s169
      %p183 = scmp.eq.s32.totalorder %s45, 3
      %p184 = por %p182, %p183
      %p186 = scmp.ne.s32.totalorder %s169, %s185
      %p187 = scmp.eq.s32.totalorder %s45, 0
      %p188 = por %p186, %p187
      %s189 = ssub.s32 %s47, %s54
      %p190 = scmp.eq.s32.totalorder %s189, 0
      %s192 = sadd.s32 %s191, 1
      %s193 = scalar_select %p190, %s191, %s192
      %p196 = pneg %p190
      %p197 = scmp.eq.s32.totalorder %s39, 3
      %p198 = por %p196, %p197
      %p199 = scmp.ne.s32.totalorder %s191, %s194
      %p200 = scmp.eq.s32.totalorder %s39, 0
      %p201 = por %p199, %p200
      %p202 = scmp.ne.s32.totalorder %s191, %s194
      %p203 = scmp.eq.s32.totalorder %s44, 3
      %p204 = por %p202, %p203
      %p205 = scmp.ne.s32.totalorder %s194, %s195
      %p206 = scmp.eq.s32.totalorder %s44, 0
      %p207 = por %p205, %p206
      %p208 = scmp.ne.s32.totalorder %s194, %s195
      %p209 = scmp.eq.s32.totalorder %s45, 3
      %p210 = por %p208, %p209
      %p212 = scmp.ne.s32.totalorder %s195, %s211
      %p213 = scmp.eq.s32.totalorder %s45, 0
      %p214 = por %p212, %p213
      %s215 = ssub.s32 %s47, %s54
      %p216 = scmp.eq.s32.totalorder %s215, 0
      %s218 = sadd.s32 %s217, 1
      %s219 = scalar_select %p216, %s217, %s218
      %p222 = pneg %p216
      %p223 = scmp.eq.s32.totalorder %s39, 3
      %p224 = por %p222, %p223
      %p225 = scmp.ne.s32.totalorder %s217, %s220
      %p226 = scmp.eq.s32.totalorder %s39, 0
      %p227 = por %p225, %p226
      %p228 = scmp.ne.s32.totalorder %s217, %s220
      %p229 = scmp.eq.s32.totalorder %s44, 3
      %p230 = por %p228, %p229
      %p231 = scmp.ne.s32.totalorder %s220, %s221
      %p232 = scmp.eq.s32.totalorder %s44, 0
      %p233 = por %p231, %p232
      %p234 = scmp.ne.s32.totalorder %s220, %s221
      %p235 = scmp.eq.s32.totalorder %s45, 3
      %p236 = por %p234, %p235
      %p238 = scmp.ne.s32.totalorder %s221, %s237
      %p239 = scmp.eq.s32.totalorder %s45, 0
      %p240 = por %p238, %p239
      %s241 = ssub.s32 %s47, %s54
      %p242 = scmp.eq.s32.totalorder %s241, 0
      %s244 = sadd.s32 %s243, 1
      %s245 = scalar_select %p242, %s243, %s244
      %p248 = pneg %p242
      %p249 = scmp.eq.s32.totalorder %s39, 3
      %p250 = por %p248, %p249
      %p251 = scmp.ne.s32.totalorder %s243, %s246
      %p252 = scmp.eq.s32.totalorder %s39, 0
      %p253 = por %p251, %p252
      %p254 = scmp.ne.s32.totalorder %s243, %s246
      %p255 = scmp.eq.s32.totalorder %s44, 3
      %p256 = por %p254, %p255
      %p257 = scmp.ne.s32.totalorder %s246, %s247
      %p258 = scmp.eq.s32.totalorder %s44, 0
      %p259 = por %p257, %p258
      %p260 = scmp.ne.s32.totalorder %s246, %s247
      %p261 = scmp.eq.s32.totalorder %s45, 3
      %p262 = por %p260, %p261
      %p264 = scmp.ne.s32.totalorder %s247, %s263
      %p265 = scmp.eq.s32.totalorder %s45, 0
      %p266 = por %p264, %p265
      %s267 = ssub.s32 %s47, %s54
      %p268 = scmp.eq.s32.totalorder %s267, 0
      %s270 = sadd.s32 %s269, 1
      %s271 = scalar_select %p268, %s269, %s270
      %p274 = pneg %p268
      %p275 = scmp.eq.s32.totalorder %s39, 3
      %p276 = por %p274, %p275
      %p277 = scmp.ne.s32.totalorder %s269, %s272
      %p278 = scmp.eq.s32.totalorder %s39, 0
      %p279 = por %p277, %p278
      %p280 = scmp.ne.s32.totalorder %s269, %s272
      %p281 = scmp.eq.s32.totalorder %s44, 3
      %p282 = por %p280, %p281
      %p283 = scmp.ne.s32.totalorder %s272, %s273
      %p284 = scmp.eq.s32.totalorder %s44, 0
      %p285 = por %p283, %p284
      %p286 = scmp.ne.s32.totalorder %s272, %s273
      %p287 = scmp.eq.s32.totalorder %s45, 3
      %p288 = por %p286, %p287
      %p290 = scmp.ne.s32.totalorder %s273, %s289
      %p291 = scmp.eq.s32.totalorder %s45, 0
      %p292 = por %p290, %p291
      %s293 = ssub.s32 %s47, %s54
      %p294 = scmp.eq.s32.totalorder %s293, 0
      %s296 = sadd.s32 %s295, 1
      %s297 = scalar_select %p294, %s295, %s296
      %p300 = pneg %p294
      %p301 = scmp.eq.s32.totalorder %s39, 3
      %p302 = por %p300, %p301
      %p303 = scmp.ne.s32.totalorder %s295, %s298
      %p304 = scmp.eq.s32.totalorder %s39, 0
      %p305 = por %p303, %p304
      %p306 = scmp.ne.s32.totalorder %s295, %s298
      %p307 = scmp.eq.s32.totalorder %s44, 3
      %p308 = por %p306, %p307
      %p309 = scmp.ne.s32.totalorder %s298, %s299
      %p310 = scmp.eq.s32.totalorder %s44, 0
      %p311 = por %p309, %p310
      %p312 = scmp.ne.s32.totalorder %s298, %s299
      %p313 = scmp.eq.s32.totalorder %s45, 3
      %p314 = por %p312, %p313
      %p316 = scmp.ne.s32.totalorder %s299, %s315
      %p317 = scmp.eq.s32.totalorder %s45, 0
      %p318 = por %p316, %p317
      %s319 = ssub.s32 %s47, %s54
      %p320 = scmp.eq.s32.totalorder %s319, 0
      %s322 = sadd.s32 %s321, 1
      %s323 = scalar_select %p320, %s321, %s322
      %p326 = pneg %p320
      %p327 = scmp.eq.s32.totalorder %s39, 3
      %p328 = por %p326, %p327
      %p329 = scmp.ne.s32.totalorder %s321, %s324
      %p330 = scmp.eq.s32.totalorder %s39, 0
      %p331 = por %p329, %p330
      %p332 = scmp.ne.s32.totalorder %s321, %s324
      %p333 = scmp.eq.s32.totalorder %s44, 3
      %p334 = por %p332, %p333
      %p335 = scmp.ne.s32.totalorder %s324, %s325
      %p336 = scmp.eq.s32.totalorder %s44, 0
      %p337 = por %p335, %p336
      %p338 = scmp.ne.s32.totalorder %s324, %s325
      %p339 = scmp.eq.s32.totalorder %s45, 3
      %p340 = por %p338, %p339
      %p342 = scmp.ne.s32.totalorder %s325, %s341
      %p343 = scmp.eq.s32.totalorder %s45, 0
      %p344 = por %p342, %p343
      %s345 = ssub.s32 %s47, %s54
      %p346 = scmp.eq.s32.totalorder %s345, 0
      %s348 = sadd.s32 %s347, 1
      %s349 = scalar_select %p346, %s347, %s348
      %p352 = pneg %p346
      %p353 = scmp.eq.s32.totalorder %s39, 3
      %p354 = por %p352, %p353
      %p355 = scmp.ne.s32.totalorder %s347, %s350
      %p356 = scmp.eq.s32.totalorder %s39, 0
      %p357 = por %p355, %p356
      %p358 = scmp.ne.s32.totalorder %s347, %s350
      %p359 = scmp.eq.s32.totalorder %s44, 3
      %p360 = por %p358, %p359
      %p361 = scmp.ne.s32.totalorder %s350, %s351
      %p362 = scmp.eq.s32.totalorder %s44, 0
      %p363 = por %p361, %p362
      %p364 = scmp.ne.s32.totalorder %s350, %s351
      %p365 = scmp.eq.s32.totalorder %s45, 3
      %p366 = por %p364, %p365
      %p368 = scmp.ne.s32.totalorder %s351, %s367
      %p369 = scmp.eq.s32.totalorder %s45, 0
      %p370 = por %p368, %p369
      %s371 = ssub.s32 %s47, %s54
      %p372 = scmp.eq.s32.totalorder %s371, 0
      %s374 = sadd.s32 %s373, 1
      %s375 = scalar_select %p372, %s373, %s374
      %p378 = pneg %p372
      %p379 = scmp.eq.s32.totalorder %s39, 3
      %p380 = por %p378, %p379
      %p381 = scmp.ne.s32.totalorder %s373, %s376
      %p382 = scmp.eq.s32.totalorder %s39, 0
      %p383 = por %p381, %p382
      %p384 = scmp.ne.s32.totalorder %s373, %s376
      %p385 = scmp.eq.s32.totalorder %s44, 3
      %p386 = por %p384, %p385
      %p387 = scmp.ne.s32.totalorder %s376, %s377
      %p388 = scmp.eq.s32.totalorder %s44, 0
      %p389 = por %p387, %p388
      %p390 = scmp.ne.s32.totalorder %s376, %s377
      %p391 = scmp.eq.s32.totalorder %s45, 3
      %p392 = por %p390, %p391
      %p394 = scmp.ne.s32.totalorder %s377, %s393
      %p395 = scmp.eq.s32.totalorder %s45, 0
      %p396 = por %p394, %p395
      %s397 = ssub.s32 %s47, %s54
      %p398 = scmp.eq.s32.totalorder %s397, 0
      %s400 = sadd.s32 %s399, 1
      %s401 = scalar_select %p398, %s399, %s400
      %p404 = pneg %p398
      %p405 = scmp.eq.s32.totalorder %s39, 3
      %p406 = por %p404, %p405
      %p407 = scmp.ne.s32.totalorder %s399, %s402
      %p408 = scmp.eq.s32.totalorder %s39, 0
      %p409 = por %p407, %p408
      %p410 = scmp.ne.s32.totalorder %s399, %s402
      %p411 = scmp.eq.s32.totalorder %s44, 3
      %p412 = por %p410, %p411
      %p413 = scmp.ne.s32.totalorder %s402, %s403
      %p414 = scmp.eq.s32.totalorder %s44, 0
      %p415 = por %p413, %p414
      %p416 = scmp.ne.s32.totalorder %s402, %s403
      %p417 = scmp.eq.s32.totalorder %s45, 3
      %p418 = por %p416, %p417
      %p420 = scmp.ne.s32.totalorder %s403, %s419
      %p421 = scmp.eq.s32.totalorder %s45, 0
      %p422 = por %p420, %p421
      %s424 = sadd.s32 %s423, 1
      %p427 = scmp.eq.s32.totalorder %s39, 3
      %p428 = scmp.ne.s32.totalorder %s423, %s425
      %p429 = scmp.eq.s32.totalorder %s39, 0
      %p430 = por %p428, %p429
      %p431 = scmp.ne.s32.totalorder %s423, %s425
      %p432 = scmp.eq.s32.totalorder %s44, 3
      %p433 = por %p431, %p432
      %p434 = scmp.ne.s32.totalorder %s425, %s426
      %p435 = scmp.eq.s32.totalorder %s44, 0
      %p436 = por %p434, %p435
      %p437 = scmp.ne.s32.totalorder %s425, %s426
      %p438 = scmp.eq.s32.totalorder %s45, 3
      %p439 = por %p437, %p438
      %p441 = scmp.ne.s32.totalorder %s426, %s440
      %p442 = scmp.eq.s32.totalorder %s45, 0
      %p443 = por %p441, %p442
      %s445 = sadd.s32 %s444, 1
      %p448 = scmp.eq.s32.totalorder %s39, 3
      %p449 = scmp.ne.s32.totalorder %s444, %s446
      %p450 = scmp.eq.s32.totalorder %s39, 0
      %p451 = por %p449, %p450
      %p452 = scmp.ne.s32.totalorder %s444, %s446
      %p453 = scmp.eq.s32.totalorder %s44, 3
      %p454 = por %p452, %p453
      %p455 = scmp.ne.s32.totalorder %s446, %s447
      %p456 = scmp.eq.s32.totalorder %s44, 0
      %p457 = por %p455, %p456
      %p458 = scmp.ne.s32.totalorder %s446, %s447
      %p459 = scmp.eq.s32.totalorder %s45, 3
      %p460 = por %p458, %p459
      %p462 = scmp.ne.s32.totalorder %s447, %s461
      %p463 = scmp.eq.s32.totalorder %s45, 0
      %p464 = por %p462, %p463
      %s466 = sadd.s32 %s465, 1
      %p469 = scmp.eq.s32.totalorder %s39, 3
      %p470 = scmp.ne.s32.totalorder %s465, %s467
      %p471 = scmp.eq.s32.totalorder %s39, 0
      %p472 = por %p470, %p471
      %p473 = scmp.ne.s32.totalorder %s465, %s467
      %p474 = scmp.eq.s32.totalorder %s44, 3
      %p475 = por %p473, %p474
      %p476 = scmp.ne.s32.totalorder %s467, %s468
      %p477 = scmp.eq.s32.totalorder %s44, 0
      %p478 = por %p476, %p477
      %p479 = scmp.ne.s32.totalorder %s467, %s468
      %p480 = scmp.eq.s32.totalorder %s45, 3
      %p481 = por %p479, %p480
      %p483 = scmp.ne.s32.totalorder %s468, %s482
      %p484 = scmp.eq.s32.totalorder %s45, 0
      %p485 = por %p483, %p484
      %s487 = sadd.s32 %s486, 1
      %p490 = scmp.eq.s32.totalorder %s39, 3
      %p491 = scmp.ne.s32.totalorder %s486, %s488
      %p492 = scmp.eq.s32.totalorder %s39, 0
      %p493 = por %p491, %p492
      %p494 = scmp.ne.s32.totalorder %s486, %s488
      %p495 = scmp.eq.s32.totalorder %s44, 3
      %p496 = por %p494, %p495
      %p497 = scmp.ne.s32.totalorder %s488, %s489
      %p498 = scmp.eq.s32.totalorder %s44, 0
      %p499 = por %p497, %p498
      %p500 = scmp.ne.s32.totalorder %s488, %s489
      %p501 = scmp.eq.s32.totalorder %s45, 3
      %p502 = por %p500, %p501
      %p504 = scmp.ne.s32.totalorder %s489, %s503
      %p505 = scmp.eq.s32.totalorder %s45, 0
      %p506 = por %p504, %p505
      %s508 = sadd.s32 %s507, 1
      %p511 = scmp.eq.s32.totalorder %s39, 3
      %p512 = scmp.ne.s32.totalorder %s507, %s509
      %p513 = scmp.eq.s32.totalorder %s39, 0
      %p514 = por %p512, %p513
      %p515 = scmp.ne.s32.totalorder %s507, %s509
      %p516 = scmp.eq.s32.totalorder %s44, 3
      %p517 = por %p515, %p516
      %p518 = scmp.ne.s32.totalorder %s509, %s510
      %p519 = scmp.eq.s32.totalorder %s44, 0
      %p520 = por %p518, %p519
      %p521 = scmp.ne.s32.totalorder %s509, %s510
      %p522 = scmp.eq.s32.totalorder %s45, 3
      %p523 = por %p521, %p522
      %p525 = scmp.ne.s32.totalorder %s510, %s524
      %p526 = scmp.eq.s32.totalorder %s45, 0
      %p527 = por %p525, %p526
      %s529 = sadd.s32 %s528, 1
      %p532 = scmp.eq.s32.totalorder %s39, 3
      %p533 = scmp.ne.s32.totalorder %s528, %s530
      %p534 = scmp.eq.s32.totalorder %s39, 0
      %p535 = por %p533, %p534
      %p536 = scmp.ne.s32.totalorder %s528, %s530
      %p537 = scmp.eq.s32.totalorder %s44, 3
      %p538 = por %p536, %p537
      %p539 = scmp.ne.s32.totalorder %s530, %s531
      %p540 = scmp.eq.s32.totalorder %s44, 0
      %p541 = por %p539, %p540
      %p542 = scmp.ne.s32.totalorder %s530, %s531
      %p543 = scmp.eq.s32.totalorder %s45, 3
      %p544 = por %p542, %p543
      %p546 = scmp.ne.s32.totalorder %s531, %s545
      %p547 = scmp.eq.s32.totalorder %s45, 0
      %p548 = por %p546, %p547
      %s549 = ssub.s32 %s46, %s58
      %p550 = scmp.eq.s32.totalorder %s549, 0
      %s552 = sadd.s32 %s551, 1
      %s553 = scalar_select %p550, %s551, %s552
      %p556 = pneg %p550
      %p557 = scmp.eq.s32.totalorder %s39, 3
      %p558 = por %p556, %p557
      %p559 = scmp.ne.s32.totalorder %s551, %s554
      %p560 = scmp.eq.s32.totalorder %s39, 0
      %p561 = por %p559, %p560
      %p562 = scmp.ne.s32.totalorder %s551, %s554
      %p563 = scmp.eq.s32.totalorder %s44, 3
      %p564 = por %p562, %p563
      %p565 = scmp.ne.s32.totalorder %s554, %s555
      %p566 = scmp.eq.s32.totalorder %s44, 0
      %p567 = por %p565, %p566
      %p568 = scmp.ne.s32.totalorder %s554, %s555
      %p569 = scmp.eq.s32.totalorder %s45, 3
      %p570 = por %p568, %p569
      %p572 = scmp.ne.s32.totalorder %s555, %s571
      %p573 = scmp.eq.s32.totalorder %s45, 0
      %p574 = por %p572, %p573
      %p575 = scmp.le.s32.totalorder 1, %s39
      %p576 = scmp.lt.s32.totalorder %s39, 5
      %p577 = pnand %p575, %p576
      %p578 = pneg %p577
      // Predicated region
      $region9: #{tpu_custom_call.1} parent=5 // pred_check
        _
      $region10: #{tpu_custom_call.1} parent=5 // pred_check_branch
        %580 = sbr.rel (%p577) target = $region12
      $region11: #{tpu_custom_call.1} parent=5 // pred_region
        %s581 = ssub.s32 %s39, 1
        // Predicated region
        $region13: #{tpu_custom_call.1} parent=11 // pred_check
          %p582 = pneg %p436
        $region14: #{tpu_custom_call.1} parent=11 // pred_check_branch
          %584 = sbr.rel (%p582) target = $region16
        $region15: #{tpu_custom_call.1} parent=11 // pred_region
          _
        $region16: #{tpu_custom_call.1} parent=11 // pred_fallthru
          _
        // Predicated region
        $region17: #{tpu_custom_call.1} parent=11 // pred_check
          %p585 = pneg %p457
        $region18: #{tpu_custom_call.1} parent=11 // pred_check_branch
          %587 = sbr.rel (%p585) target = $region20
        $region19: #{tpu_custom_call.1} parent=11 // pred_region
          _
        $region20: #{tpu_custom_call.1} parent=11 // pred_fallthru
          _
        // Predicated region
        $region21: #{tpu_custom_call.1} parent=11 // pred_check
          %p588 = pneg %p478
        $region22: #{tpu_custom_call.1} parent=11 // pred_check_branch
          %590 = sbr.rel (%p588) target = $region24
        $region23: #{tpu_custom_call.1} parent=11 // pred_region
          %592 = vsyncadd [#allocation13], 0
          %s593 = sshll.u32 %s16, 4
          %s594 = int_to_ptr.hbm [resolvable:$true] %s593
          %s595 = sshll.u32 [#allocation12], 4
          %s596 = int_to_ptr.vmem [resolvable:$true] %s595
          %601 = dma.hbm_to_vmem [thread:$0]  %s594, 512, %s596, [#allocation13], 128, 128, 8
        $region24: #{tpu_custom_call.1} parent=11 // pred_fallthru
          _
        // Predicated region
        $region25: #{tpu_custom_call.1} parent=11 // pred_check
          %p602 = pneg %p499
        $region26: #{tpu_custom_call.1} parent=11 // pred_check_branch
          %604 = sbr.rel (%p602) target = $region28
        $region27: #{tpu_custom_call.1} parent=11 // pred_region
          _
        $region28: #{tpu_custom_call.1} parent=11 // pred_fallthru
          _
        // Predicated region
        $region29: #{tpu_custom_call.1} parent=11 // pred_check
          %p605 = pneg %p520
        $region30: #{tpu_custom_call.1} parent=11 // pred_check_branch
          %607 = sbr.rel (%p605) target = $region32
        $region31: #{tpu_custom_call.1} parent=11 // pred_region
          %609 = vsyncadd [#allocation13], 0
          %s610 = sshll.u32 %s18, 4
          %s611 = int_to_ptr.hbm [resolvable:$true] %s610
          %s612 = sshll.u32 [#allocation14], 4
          %s613 = int_to_ptr.vmem [resolvable:$true] %s612
          %618 = dma.hbm_to_vmem [thread:$0]  %s611, 1024, %s613, [#allocation13], 128, 128, 8
        $region32: #{tpu_custom_call.1} parent=11 // pred_fallthru
          _
        // Predicated region
        $region33: #{tpu_custom_call.1} parent=11 // pred_check
          %p619 = pneg %p541
        $region34: #{tpu_custom_call.1} parent=11 // pred_check_branch
          %621 = sbr.rel (%p619) target = $region36
        $region35: #{tpu_custom_call.1} parent=11 // pred_region
          _
        $region36: #{tpu_custom_call.1} parent=11 // pred_fallthru
          _
      $region12: #{tpu_custom_call.1} parent=5 // pred_fallthru
        _
      %p622 = scmp.lt.s32.totalorder %s39, 4
      // Predicated region
      $region37: #{tpu_custom_call.1} parent=5 // pred_check
        %p623 = pneg %p622
      $region38: #{tpu_custom_call.1} parent=5 // pred_check_branch
        %625 = sbr.rel (%p623) target = $region40
      $region39: #{tpu_custom_call.1} parent=5 // pred_region
        // Predicated region
        $region41: #{tpu_custom_call.1} parent=39 // pred_check
          %p626 = pneg %p71
        $region42: #{tpu_custom_call.1} parent=39 // pred_check_branch
          %628 = sbr.rel (%p626) target = $region44
        $region43: #{tpu_custom_call.1} parent=39 // pred_region
          %p629 = scmp.lt.s32.totalorder %s46, 1
          %s630 = scalar_select %p629, %s46, 1
          %s631 = smul.addr %s630, 4
          %s632 = smul.addr %s631, 8
          %s633 = scalar_lea.vmem %s0, %s632
        $region44: #{tpu_custom_call.1} parent=39 // pred_fallthru
          _
        // Predicated region
        $region45: #{tpu_custom_call.1} parent=39 // pred_check
          %p634 = pneg %p97
        $region46: #{tpu_custom_call.1} parent=39 // pred_check_branch
          %636 = sbr.rel (%p634) target = $region48
        $region47: #{tpu_custom_call.1} parent=39 // pred_region
          %s637 = sand.u32 %s87, 1
          %s638 = scalar_lea.sflag [#allocation4], %s637
          %s639 = sand.u32 %s87, 1
          %s640 = smul.addr %s639, 4
          %s641 = scalar_lea.vmem [#allocation3], %s640
          %643 = vsyncadd %s638, 0
          %s644 = smul.addr %s46, 4
          %s645 = scalar_lea.hbm %s1, %s644
          %s646 = sshll.u32 %s645, 4
          %s647 = int_to_ptr.hbm [resolvable:$true] %s646
          %s648 = sshll.u32 %s641, 4
          %s649 = int_to_ptr.vmem [resolvable:$true] %s648
          %654 = dma.hbm_to_vmem [thread:$0]  %s647, 64, %s649, %s638, 16, 16, 1
        $region48: #{tpu_custom_call.1} parent=39 // pred_fallthru
          _
        // Predicated region
        $region49: #{tpu_custom_call.1} parent=39 // pred_check
          %p655 = pneg %p123
        $region50: #{tpu_custom_call.1} parent=39 // pred_check_branch
          %657 = sbr.rel (%p655) target = $region52
        $region51: #{tpu_custom_call.1} parent=39 // pred_region
          %s658 = sand.u32 %s39, 1
          %s659 = scalar_lea.sflag [#allocation7], %s658
          %s660 = sand.u32 %s113, 1
          %s661 = scalar_lea.vmem [#allocation6], %s660
          %663 = vsyncadd %s659, 0
          %s664 = scalar_lea.hbm %s2, %s47
          %s666 = sshll.u32 %s664, 4
          %s667 = int_to_ptr.hbm [resolvable:$true] %s666
          %s668 = sshll.u32 %s661, 4
          %s669 = int_to_ptr.vmem [resolvable:$true] %s668
          %671 = dma.hbm_to_vmem [thread:$0]  %s667, 16, %s669, %s659
        $region52: #{tpu_custom_call.1} parent=39 // pred_fallthru
          _
        // Predicated region
        $region53: #{tpu_custom_call.1} parent=39 // pred_check
          %p672 = pneg %p149
        $region54: #{tpu_custom_call.1} parent=39 // pred_check_branch
          %674 = sbr.rel (%p672) target = $region56
        $region55: #{tpu_custom_call.1} parent=39 // pred_region
          %p675 = scmp.lt.s32.totalorder %s47, 1
          %s676 = scalar_select %p675, %s47, 1
          %s677 = scalar_lea.vmem %s3, %s676
        $region56: #{tpu_custom_call.1} parent=39 // pred_fallthru
          _
        // Predicated region
        $region57: #{tpu_custom_call.1} parent=39 // pred_check
          %p678 = pneg %p175
        $region58: #{tpu_custom_call.1} parent=39 // pred_check_branch
          %680 = sbr.rel (%p678) target = $region60
        $region59: #{tpu_custom_call.1} parent=39 // pred_region
          %p681 = scmp.lt.s32.totalorder %s47, 1
          %s682 = scalar_select %p681, %s47, 1
          %s683 = smul.addr %s682, 4
          %s684 = smul.addr %s683, 8
          %s685 = scalar_lea.vmem %s4, %s684
        $region60: #{tpu_custom_call.1} parent=39 // pred_fallthru
          _
        // Predicated region
        $region61: #{tpu_custom_call.1} parent=39 // pred_check
          %p686 = pneg %p201
        $region62: #{tpu_custom_call.1} parent=39 // pred_check_branch
          %688 = sbr.rel (%p686) target = $region64
        $region63: #{tpu_custom_call.1} parent=39 // pred_region
          %s689 = sand.u32 %s39, 1
          %s690 = scalar_lea.sflag [#allocation7], %s689
          %s691 = sand.u32 %s191, 1
          %s692 = scalar_lea.vmem [#allocation8], %s691
          %694 = vsyncadd %s690, 0
          %s695 = scalar_lea.hbm %s5, %s47
          %s697 = sshll.u32 %s695, 4
          %s698 = int_to_ptr.hbm [resolvable:$true] %s697
          %s699 = sshll.u32 %s692, 4
          %s700 = int_to_ptr.vmem [resolvable:$true] %s699
          %702 = dma.hbm_to_vmem [thread:$0]  %s698, 16, %s700, %s690
        $region64: #{tpu_custom_call.1} parent=39 // pred_fallthru
          _
        // Predicated region
        $region65: #{tpu_custom_call.1} parent=39 // pred_check
          %p703 = pneg %p227
        $region66: #{tpu_custom_call.1} parent=39 // pred_check_branch
          %705 = sbr.rel (%p703) target = $region68
        $region67: #{tpu_custom_call.1} parent=39 // pred_region
          %p706 = scmp.lt.s32.totalorder %s47, 1
          %s707 = scalar_select %p706, %s47, 1
          %s708 = smul.addr %s707, 4
          %s709 = smul.addr %s708, 8
          %s710 = scalar_lea.vmem %s6, %s709
        $region68: #{tpu_custom_call.1} parent=39 // pred_fallthru
          _
        // Predicated region
        $region69: #{tpu_custom_call.1} parent=39 // pred_check
          %p711 = pneg %p253
        $region70: #{tpu_custom_call.1} parent=39 // pred_check_branch
          %713 = sbr.rel (%p711) target = $region72
        $region71: #{tpu_custom_call.1} parent=39 // pred_region
          %p714 = scmp.lt.s32.totalorder %s47, 1
          %s715 = scalar_select %p714, %s47, 1
          %s716 = scalar_lea.vmem %s7, %s715
        $region72: #{tpu_custom_call.1} parent=39 // pred_fallthru
          _
        // Predicated region
        $region73: #{tpu_custom_call.1} parent=39 // pred_check
          %p717 = pneg %p279
        $region74: #{tpu_custom_call.1} parent=39 // pred_check_branch
          %719 = sbr.rel (%p717) target = $region76
        $region75: #{tpu_custom_call.1} parent=39 // pred_region
          %s720 = sand.u32 %s39, 1
          %s721 = scalar_lea.sflag [#allocation10], %s720
          %s722 = sand.u32 %s269, 1
          %s723 = scalar_lea.vmem [#allocation9], %s722
          %725 = vsyncadd %s721, 0
          %s726 = scalar_lea.hbm %s8, %s47
          %s728 = sshll.u32 %s726, 4
          %s729 = int_to_ptr.hbm [resolvable:$true] %s728
          %s730 = sshll.u32 %s723, 4
          %s731 = int_to_ptr.vmem [resolvable:$true] %s730
          %733 = dma.hbm_to_vmem [thread:$0]  %s729, 16, %s731, %s721
        $region76: #{tpu_custom_call.1} parent=39 // pred_fallthru
          _
        // Predicated region
        $region77: #{tpu_custom_call.1} parent=39 // pred_check
          %p734 = pneg %p305
        $region78: #{tpu_custom_call.1} parent=39 // pred_check_branch
          %736 = sbr.rel (%p734) target = $region80
        $region79: #{tpu_custom_call.1} parent=39 // pred_region
          %p737 = scmp.lt.s32.totalorder %s47, 1
          %s738 = scalar_select %p737, %s47, 1
          %s739 = scalar_lea.vmem %s9, %s738
        $region80: #{tpu_custom_call.1} parent=39 // pred_fallthru
          _
        // Predicated region
        $region81: #{tpu_custom_call.1} parent=39 // pred_check
          %p740 = pneg %p331
        $region82: #{tpu_custom_call.1} parent=39 // pred_check_branch
          %742 = sbr.rel (%p740) target = $region84
        $region83: #{tpu_custom_call.1} parent=39 // pred_region
          %s743 = sand.u32 %s39, 1
          %s744 = scalar_lea.sflag [#allocation10], %s743
          %s745 = sand.u32 %s321, 1
          %s746 = smul.addr %s745, 32
          %s747 = scalar_lea.vmem [#allocation11], %s746
          %749 = vsyncadd %s744, 0
          %s750 = smul.addr %s47, 4
          %s751 = smul.addr %s750, 8
          %s752 = scalar_lea.hbm %s10, %s751
          %s753 = sshll.u32 %s752, 4
          %s754 = int_to_ptr.hbm [resolvable:$true] %s753
          %s755 = sshll.u32 %s747, 4
          %s756 = int_to_ptr.vmem [resolvable:$true] %s755
          %761 = dma.hbm_to_vmem [thread:$0]  %s754, 512, %s756, %s744, 128, 128, 8
        $region84: #{tpu_custom_call.1} parent=39 // pred_fallthru
          _
        // Predicated region
        $region85: #{tpu_custom_call.1} parent=39 // pred_check
          %p762 = pneg %p357
        $region86: #{tpu_custom_call.1} parent=39 // pred_check_branch
          %764 = sbr.rel (%p762) target = $region88
        $region87: #{tpu_custom_call.1} parent=39 // pred_region
          %p765 = scmp.lt.s32.totalorder %s47, 1
          %s766 = scalar_select %p765, %s47, 1
          %s767 = scalar_lea.vmem %s11, %s766
        $region88: #{tpu_custom_call.1} parent=39 // pred_fallthru
          _
        // Predicated region
        $region89: #{tpu_custom_call.1} parent=39 // pred_check
          %p768 = pneg %p383
        $region90: #{tpu_custom_call.1} parent=39 // pred_check_branch
          %770 = sbr.rel (%p768) target = $region92
        $region91: #{tpu_custom_call.1} parent=39 // pred_region
          %p771 = scmp.lt.s32.totalorder %s47, 1
          %s772 = scalar_select %p771, %s47, 1
          %s773 = smul.addr %s772, 8
          %s774 = smul.addr %s773, 8
          %s775 = scalar_lea.vmem %s12, %s774
        $region92: #{tpu_custom_call.1} parent=39 // pred_fallthru
          _
        // Predicated region
        $region93: #{tpu_custom_call.1} parent=39 // pred_check
          %p776 = pneg %p409
        $region94: #{tpu_custom_call.1} parent=39 // pred_check_branch
          %778 = sbr.rel (%p776) target = $region96
        $region95: #{tpu_custom_call.1} parent=39 // pred_region
          %p779 = scmp.lt.s32.totalorder %s47, 1
          %s780 = scalar_select %p779, %s47, 1
          %s781 = scalar_lea.vmem %s13, %s780
        $region96: #{tpu_custom_call.1} parent=39 // pred_fallthru
          _
      $region40: #{tpu_custom_call.1} parent=5 // pred_fallthru
        _
      %p782 = scmp.le.s32.totalorder 1, %s39
      %p783 = scmp.lt.s32.totalorder %s39, 5
      %p784 = pnand %p782, %p783
      %p785 = pneg %p784
      // Predicated region
      $region97: #{tpu_custom_call.1} parent=5 // pred_check
        _
      $region98: #{tpu_custom_call.1} parent=5 // pred_check_branch
        %787 = sbr.rel (%p784) target = $region100
      $region99: #{tpu_custom_call.1} parent=5 // pred_region
        %s788 = ssub.s32 %s39, 1
        %s789 = sand.u32 %s90, 1
        %s790 = scalar_lea.sflag [#allocation4], %s789
        %s791 = sand.u32 %s90, 1
        %s792 = smul.addr %s791, 4
        %s793 = scalar_lea.vmem [#allocation3], %s792
        // Predicated region
        $region101: #{tpu_custom_call.1} parent=99 // pred_check
          %p794 = pneg %p103
        $region102: #{tpu_custom_call.1} parent=99 // pred_check_branch
          %796 = sbr.rel (%p794) target = $region104
        $region103: #{tpu_custom_call.1} parent=99 // pred_region
          %798 = dma.done %s790, 64
        $region104: #{tpu_custom_call.1} parent=99 // pred_fallthru
          _
        %s799 = sand.u32 %s44, 1
        %s800 = scalar_lea.sflag [#allocation7], %s799
        %s801 = sand.u32 %s116, 1
        %s802 = scalar_lea.vmem [#allocation6], %s801
        // Predicated region
        $region105: #{tpu_custom_call.1} parent=99 // pred_check
          %p803 = pneg %p129
        $region106: #{tpu_custom_call.1} parent=99 // pred_check_branch
          %805 = sbr.rel (%p803) target = $region108
        $region107: #{tpu_custom_call.1} parent=99 // pred_region
          %807 = dma.done %s800, 16
        $region108: #{tpu_custom_call.1} parent=99 // pred_fallthru
          _
        %s808 = sand.u32 %s44, 1
        %s809 = scalar_lea.sflag [#allocation7], %s808
        %s810 = sand.u32 %s194, 1
        %s811 = scalar_lea.vmem [#allocation8], %s810
        // Predicated region
        $region109: #{tpu_custom_call.1} parent=99 // pred_check
          %p812 = pneg %p207
        $region110: #{tpu_custom_call.1} parent=99 // pred_check_branch
          %814 = sbr.rel (%p812) target = $region112
        $region111: #{tpu_custom_call.1} parent=99 // pred_region
          %816 = dma.done %s809, 16
        $region112: #{tpu_custom_call.1} parent=99 // pred_fallthru
          _
        %s817 = sand.u32 %s44, 1
        %s818 = scalar_lea.sflag [#allocation10], %s817
        %s819 = sand.u32 %s272, 1
        %s820 = scalar_lea.vmem [#allocation9], %s819
        // Predicated region
        $region113: #{tpu_custom_call.1} parent=99 // pred_check
          %p821 = pneg %p285
        $region114: #{tpu_custom_call.1} parent=99 // pred_check_branch
          %823 = sbr.rel (%p821) target = $region116
        $region115: #{tpu_custom_call.1} parent=99 // pred_region
          %825 = dma.done %s818, 16
        $region116: #{tpu_custom_call.1} parent=99 // pred_fallthru
          _
        %s826 = sand.u32 %s44, 1
        %s827 = scalar_lea.sflag [#allocation10], %s826
        %s828 = sand.u32 %s324, 1
        %s829 = smul.addr %s828, 32
        %s830 = scalar_lea.vmem [#allocation11], %s829
        // Predicated region
        $region117: #{tpu_custom_call.1} parent=99 // pred_check
          %p831 = pneg %p337
        $region118: #{tpu_custom_call.1} parent=99 // pred_check_branch
          %833 = sbr.rel (%p831) target = $region120
        $region119: #{tpu_custom_call.1} parent=99 // pred_region
          %835 = dma.done %s827, 512
        $region120: #{tpu_custom_call.1} parent=99 // pred_fallthru
          _
        // Predicated region
        $region121: #{tpu_custom_call.1} parent=99 // pred_check
          %p836 = pneg %p478
        $region122: #{tpu_custom_call.1} parent=99 // pred_check_branch
          %838 = sbr.rel (%p836) target = $region124
        $region123: #{tpu_custom_call.1} parent=99 // pred_region
          %840 = dma.done [#allocation13], 512
        $region124: #{tpu_custom_call.1} parent=99 // pred_fallthru
          _
        // Predicated region
        $region125: #{tpu_custom_call.1} parent=99 // pred_check
          %p841 = pneg %p520
        $region126: #{tpu_custom_call.1} parent=99 // pred_check_branch
          %843 = sbr.rel (%p841) target = $region128
        $region127: #{tpu_custom_call.1} parent=99 // pred_region
          %845 = dma.done [#allocation13], 1024
        $region128: #{tpu_custom_call.1} parent=99 // pred_fallthru
          _
        %p846 = scmp.lt.s32.totalorder %s48, 1
        %s847 = scalar_select %p846, %s48, 1
        %s848 = smul.addr %s847, 4
        %s849 = smul.addr %s848, 8
        %s850 = scalar_lea.vmem %s0, %s849
        %p851 = pneg %p77
        %p852 = pneg %p74
        %s853 = sand.u32 %s90, 1
        %s854 = scalar_lea.sflag [#allocation4], %s853
        %s855 = sand.u32 %s90, 1
        %s856 = smul.addr %s855, 4
        %s857 = scalar_lea.vmem [#allocation3], %s856
        %p858 = pneg %p103
        %p859 = pneg %p100
        %s860 = sand.u32 %s44, 1
        %s861 = scalar_lea.sflag [#allocation7], %s860
        %s862 = sand.u32 %s116, 1
        %s863 = scalar_lea.vmem [#allocation6], %s862
        %p864 = pneg %p129
        %p865 = pneg %p126
        %p866 = scmp.lt.s32.totalorder %s49, 1
        %s867 = scalar_select %p866, %s49, 1
        %s868 = scalar_lea.vmem %s3, %s867
        %p869 = pneg %p155
        %p870 = pneg %p152
        %p871 = scmp.lt.s32.totalorder %s49, 1
        %s872 = scalar_select %p871, %s49, 1
        %s873 = smul.addr %s872, 4
        %s874 = smul.addr %s873, 8
        %s875 = scalar_lea.vmem %s4, %s874
        %p876 = pneg %p181
        %p877 = pneg %p178
        %s878 = sand.u32 %s44, 1
        %s879 = scalar_lea.sflag [#allocation7], %s878
        %s880 = sand.u32 %s194, 1
        %s881 = scalar_lea.vmem [#allocation8], %s880
        %p882 = pneg %p207
        %p883 = pneg %p204
        %p884 = scmp.lt.s32.totalorder %s49, 1
        %s885 = scalar_select %p884, %s49, 1
        %s886 = smul.addr %s885, 4
        %s887 = smul.addr %s886, 8
        %s888 = scalar_lea.vmem %s6, %s887
        %p889 = pneg %p233
        %p890 = pneg %p230
        %p891 = scmp.lt.s32.totalorder %s49, 1
        %s892 = scalar_select %p891, %s49, 1
        %s893 = scalar_lea.vmem %s7, %s892
        %p894 = pneg %p259
        %p895 = pneg %p256
        %s896 = sand.u32 %s44, 1
        %s897 = scalar_lea.sflag [#allocation10], %s896
        %s898 = sand.u32 %s272, 1
        %s899 = scalar_lea.vmem [#allocation9], %s898
        %p900 = pneg %p285
        %p901 = pneg %p282
        %p902 = scmp.lt.s32.totalorder %s49, 1
        %s903 = scalar_select %p902, %s49, 1
        %s904 = scalar_lea.vmem %s9, %s903
        %p905 = pneg %p311
        %p906 = pneg %p308
        %s907 = sand.u32 %s44, 1
        %s908 = scalar_lea.sflag [#allocation10], %s907
        %s909 = sand.u32 %s324, 1
        %s910 = smul.addr %s909, 32
        %s911 = scalar_lea.vmem [#allocation11], %s910
        %p912 = pneg %p337
        %p913 = pneg %p334
        %p914 = scmp.lt.s32.totalorder %s49, 1
        %s915 = scalar_select %p914, %s49, 1
        %s916 = scalar_lea.vmem %s11, %s915
        %p917 = pneg %p363
        %p918 = pneg %p360
        %p919 = scmp.lt.s32.totalorder %s49, 1
        %s920 = scalar_select %p919, %s49, 1
        %s921 = smul.addr %s920, 8
        %s922 = smul.addr %s921, 8
        %s923 = scalar_lea.vmem %s12, %s922
        %p924 = pneg %p389
        %p925 = pneg %p386
        %p926 = scmp.lt.s32.totalorder %s49, 1
        %s927 = scalar_select %p926, %s49, 1
        %s928 = scalar_lea.vmem %s13, %s927
        %p929 = pneg %p415
        %p930 = pneg %p412
        %p931 = pneg %p436
        %p932 = pneg %p433
        %p933 = pneg %p457
        %p934 = pneg %p454
        %p935 = pneg %p478
        %p936 = pneg %p475
        %p937 = pneg %p499
        %p938 = pneg %p496
        %p939 = pneg %p520
        %p940 = pneg %p517
        %p941 = pneg %p541
        %p942 = pneg %p538
        %p943 = pneg %p567
        %p944 = pneg %p564
        %s945 = sand.u32 %s554, 1
        %s946 = scalar_lea.sflag [#allocation5], %s945
        %s947 = sand.u32 %s554, 1
        %s948 = smul.addr %s947, 2
        %s949 = scalar_lea.vmem [#allocation15], %s948
        %p950 = scmp.lt.s32.totalorder %s48, 1
        %s951 = scalar_select %p950, %s48, 1
        %s952 = smul.addr %s951, 4
        %s953 = smul.addr %s952, 8
        %s954 = scalar_lea.vmem %s0, %s953
        %p955 = scmp.lt.s32.totalorder %s49, 1
        %s956 = scalar_select %p955, %s49, 1
        %s957 = scalar_lea.vmem %s3, %s956
        %p958 = scmp.lt.s32.totalorder %s49, 1
        %s959 = scalar_select %p958, %s49, 1
        %s960 = smul.addr %s959, 4
        %s961 = smul.addr %s960, 8
        %s962 = scalar_lea.vmem %s4, %s961
        %p963 = scmp.lt.s32.totalorder %s49, 1
        %s964 = scalar_select %p963, %s49, 1
        %s965 = smul.addr %s964, 4
        %s966 = smul.addr %s965, 8
        %s967 = scalar_lea.vmem %s6, %s966
        %p968 = scmp.lt.s32.totalorder %s49, 1
        %s969 = scalar_select %p968, %s49, 1
        %s970 = scalar_lea.vmem %s7, %s969
        %p971 = scmp.lt.s32.totalorder %s49, 1
        %s972 = scalar_select %p971, %s49, 1
        %s973 = scalar_lea.vmem %s9, %s972
        %p974 = scmp.lt.s32.totalorder %s49, 1
        %s975 = scalar_select %p974, %s49, 1
        %s976 = scalar_lea.vmem %s11, %s975
        %p977 = scmp.lt.s32.totalorder %s49, 1
        %s978 = scalar_select %p977, %s49, 1
        %s979 = smul.addr %s978, 8
        %s980 = smul.addr %s979, 8
        %s981 = scalar_lea.vmem %s12, %s980
        %p982 = scmp.lt.s32.totalorder %s49, 1
        %s983 = scalar_select %p982, %s49, 1
        %s984 = scalar_lea.vmem %s13, %s983
        %p985 = scmp.eq.s32.totalorder %s49, 0
        // Predicated region
        $region129: #{tpu_custom_call.1} parent=99 // pred_check
          %p986 = pneg %p985
        $region130: #{tpu_custom_call.1} parent=99 // pred_check_branch
          %988 = sbr.rel (%p986) target = $region132
        $region131: #{tpu_custom_call.1} parent=99 // pred_region
          %v989 = vld [vmem:[%s954] sm:$0xff]
          %v990 = vld [vmem:[%s954 + $0x8] sm:$0xff]
          %v991 = vld [vmem:[%s954 + $0x10] sm:$0xff]
          %v992 = vld [vmem:[%s954 + $0x18] sm:$0xff]
          %vm993 = vcmask 261120
          %994 = vst.msk [vmem:[#allocation2] sm:$0xff] %vm993, %v989
          %995 = vst.msk [vmem:[#allocation2 + $0x8] sm:$0xff] %vm993, %v990
          %996 = vst.msk [vmem:[#allocation2 + $0x10] sm:$0xff] %vm993, %v991
          %997 = vst.msk [vmem:[#allocation2 + $0x18] sm:$0xff] %vm993, %v992
        $region132: #{tpu_custom_call.1} parent=99 // pred_fallthru
          _
        %v998 = vld [vmem:[#allocation2] sm:$0xff]
        %v999 = vld [vmem:[#allocation2 + $0x8] sm:$0xff]
        %v1000 = vld [vmem:[#allocation2 + $0x10] sm:$0xff]
        %v1001 = vld [vmem:[#allocation2 + $0x18] sm:$0xff]
        %v1002 = vld [vmem:[%s793] sm:$0x1]
        %v1003 = vld [vmem:[%s793 + $0x1] sm:$0x1]
        %v1004 = vld [vmem:[%s793 + $0x2] sm:$0x1]
        %v1005 = vld [vmem:[%s793 + $0x3] sm:$0x1]
        %vm1006 = vcmp.eq.s32.totalorder %v1002, 0
        %vm1007 = vcmp.eq.s32.totalorder %v1003, 0
        %vm1008 = vcmp.eq.s32.totalorder %v1004, 0
        %vm1009 = vcmp.eq.s32.totalorder %v1005, 0
        %v1010 = vsel %vm1006, -1e+09, 0.0
        %v1011 = vsel %vm1007, -1e+09, 0.0
        %v1012 = vsel %vm1008, -1e+09, 0.0
        %v1013 = vsel %vm1009, -1e+09, 0.0
        %v1014 = vld [vmem:[%s802] sm:$0x1]
        %v1015 = vld [vmem:[%s957] sm:$0x1]
        %vm1016 = vcmask 261120
        %v1017 = vsel %vm1016, %v998, 0.0
        %1018 = vadd.xlane.f32.xlu0 %v1017
        %v1019 = vpop.xlane.xlu0 %1018
        %v1020 = vsel %vm1016, %v999, 0.0
        %1021 = vadd.xlane.f32.xlu0 %v1020
        %v1022 = vpop.xlane.xlu0 %1021
        %v1023 = vsel %vm1016, %v1000, 0.0
        %1024 = vadd.xlane.f32.xlu0 %v1023
        %v1025 = vpop.xlane.xlu0 %1024
        %v1026 = vsel %vm1016, %v1001, 0.0
        %1027 = vadd.xlane.f32.xlu0 %v1026
        %v1028 = vpop.xlane.xlu0 %1027
        %v1029 = vrcp.pop 32.0
        %v1030 = vmul.f32 32.0, %v1029
        %v1031 = vsub.f32 1.0, %v1030
        %v1032 = vmul.f32 %v1029, %v1031
        %v1033 = vadd.f32 %v1029, %v1032
        %vm1034 = vweird.f32 %v1029
        %v1035 = vsel %vm1034, %v1029, %v1033
        %v1036 = vmul.f32 %v1019, %v1035
        %v1037 = vmul.f32 %v1022, %v1035
        %v1038 = vmul.f32 %v1025, %v1035
        %v1039 = vmul.f32 %v1028, %v1035
        %v1040 = vsub.f32 %v998, %v1036
        %v1041 = vsub.f32 %v999, %v1037
        %v1042 = vsub.f32 %v1000, %v1038
        %v1043 = vsub.f32 %v1001, %v1039
        %v1044 = vmul.f32 %v1040, %v1040
        %v1045 = vmul.f32 %v1041, %v1041
        %v1046 = vmul.f32 %v1042, %v1042
        %v1047 = vmul.f32 %v1043, %v1043
        %v1048 = vsel %vm1016, %v1044, 0.0
        %1049 = vadd.xlane.f32.xlu0 %v1048
        %v1050 = vpop.xlane.xlu0 %1049
        %v1051 = vsel %vm1016, %v1045, 0.0
        %1052 = vadd.xlane.f32.xlu0 %v1051
        %v1053 = vpop.xlane.xlu0 %1052
        %v1054 = vsel %vm1016, %v1046, 0.0
        %1055 = vadd.xlane.f32.xlu0 %v1054
        %v1056 = vpop.xlane.xlu0 %1055
        %v1057 = vsel %vm1016, %v1047, 0.0
        %1058 = vadd.xlane.f32.xlu0 %v1057
        %v1059 = vpop.xlane.xlu0 %1058
        %v1060 = vmul.f32 %v1050, %v1035
        %v1061 = vmul.f32 %v1053, %v1035
        %v1062 = vmul.f32 %v1056, %v1035
        %v1063 = vmul.f32 %v1059, %v1035
        %v1064 = vadd.f32 %v1060, 1e-05
        %v1065 = vadd.f32 %v1061, 1e-05
        %v1066 = vadd.f32 %v1062, 1e-05
        %v1067 = vadd.f32 %v1063, 1e-05
        %v1068 = vrsqrt.pop %v1064
        %v1069 = vmul.f32 %v1068, %v1064
        %v1070 = vmul.f32 %v1069, %v1068
        %v1071 = vmul.f32 0.5, %v1070
        %v1072 = vsub.f32 1.5, %v1071
        %v1073 = vmul.f32 %v1068, %v1072
        %vm1074 = vweird.f32 %v1064
        %vm1075 = vweird.f32 %v1068
        %vm1076 = vmor %vm1074, %vm1075
        %v1077 = vsel %vm1076, %v1068, %v1073
        %v1078 = vrsqrt.pop %v1065
        %v1079 = vmul.f32 %v1078, %v1065
        %v1080 = vmul.f32 %v1079, %v1078
        %v1081 = vmul.f32 0.5, %v1080
        %v1082 = vsub.f32 1.5, %v1081
        %v1083 = vmul.f32 %v1078, %v1082
        %vm1084 = vweird.f32 %v1065
        %vm1085 = vweird.f32 %v1078
        %vm1086 = vmor %vm1084, %vm1085
        %v1087 = vsel %vm1086, %v1078, %v1083
        %v1088 = vrsqrt.pop %v1066
        %v1089 = vmul.f32 %v1088, %v1066
        %v1090 = vmul.f32 %v1089, %v1088
        %v1091 = vmul.f32 0.5, %v1090
        %v1092 = vsub.f32 1.5, %v1091
        %v1093 = vmul.f32 %v1088, %v1092
        %vm1094 = vweird.f32 %v1066
        %vm1095 = vweird.f32 %v1088
        %vm1096 = vmor %vm1094, %vm1095
        %v1097 = vsel %vm1096, %v1088, %v1093
        %v1098 = vrsqrt.pop %v1067
        %v1099 = vmul.f32 %v1098, %v1067
        %v1100 = vmul.f32 %v1099, %v1098
        %v1101 = vmul.f32 0.5, %v1100
        %v1102 = vsub.f32 1.5, %v1101
        %v1103 = vmul.f32 %v1098, %v1102
        %vm1104 = vweird.f32 %v1067
        %vm1105 = vweird.f32 %v1098
        %vm1106 = vmor %vm1104, %vm1105
        %v1107 = vsel %vm1106, %v1098, %v1103
        %v1108 = vmul.f32 %v1040, %v1077
        %v1109 = vmul.f32 %v1041, %v1087
        %v1110 = vmul.f32 %v1042, %v1097
        %v1111 = vmul.f32 %v1043, %v1107
        %v1113 = vperm.slane %v1014, 0
        %v1115 = vmul.f32 %v1108, %v1113
        %v1116 = vmul.f32 %v1109, %v1113
        %v1117 = vmul.f32 %v1110, %v1113
        %v1118 = vmul.f32 %v1111, %v1113
        %v1120 = vperm.slane %v1015, 0
        %v1122 = vadd.f32 %v1115, %v1120
        %v1123 = vadd.f32 %v1116, %v1120
        %v1124 = vadd.f32 %v1117, %v1120
        %v1125 = vadd.f32 %v1118, %v1120
        %v1126 = vld [vmem:[%s962] sm:$0xff]
        %v1127 = vld [vmem:[%s962 + $0x8] sm:$0xff]
        %v1128 = vld [vmem:[%s962 + $0x10] sm:$0xff]
        %v1129 = vld [vmem:[%s962 + $0x18] sm:$0xff]
        %v1130 = vld [vmem:[%s811] sm:$0x1]
        %v1132 = vperm.slane %v1130, 0
        %v1135 = vsel %vm1016, %v1122, 0
        %v1138 = vsel %vm1016, %v1123, 0
        %v1141 = vsel %vm1016, %v1124, 0
        %v1144 = vsel %vm1016, %v1125, 0
        %1146 = vmatpush.msra.mxu0 0.0
        %1147 = vmatpush.msra.mxu0 0.0
        %1148 = vmatpush.msra.mxu0 0.0
        %1149 = vmatpush.msra.mxu0 0.0
        %1150 = vmatpush.msra.mxu0 0.0
        %1151 = vmatpush.msra.mxu0 0.0
        %1152 = vmatpush.msra.mxu0 0.0
        %1153 = vmatpush.msra.mxu0 0.0
        %1154 = vmatpush.msra.mxu0 0.0
        %1155 = vmatpush.msra.mxu0 0.0
        %1156 = vmatpush.msra.mxu0 0.0
        %1157 = vmatpush.msra.mxu0 0.0
        %1158 = vmatpush.msra.mxu0 %v1129
        %1159 = vmatpush.msra.mxu0 %v1128
        %1160 = vmatpush.msra.mxu0 %v1127
        %1161 = vmatpush.msra.mxu0 %v1126
        %1162 = vmatmul.f32.gmra.mxu0 %v1135
        %v1163 = vpop.f32.mrf.mxu0
        %v1164 = vadd.f32 %v1132, %v1163
        %1165 = vmatmul.f32.gmra.mxu0 %v1138
        %v1166 = vpop.f32.mrf.mxu0
        %v1167 = vadd.f32 %v1132, %v1166
        %1168 = vmatmul.f32.gmra.mxu0 %v1141
        %v1169 = vpop.f32.mrf.mxu0
        %v1170 = vadd.f32 %v1132, %v1169
        %1171 = vmatmul.f32.gmra.mxu0 %v1144
        %v1172 = vpop.f32.mrf.mxu0
        %v1173 = vadd.f32 %v1132, %v1172
        %1174 = vdwg.mxu0
        %1179 = vrot.lane.b32.xlu0 %v1164, 120
        %v1180 = vpop.permute.xlu0 %1179
        %1181 = vrot.lane.b32.xlu0 %v1167, 120
        %v1182 = vpop.permute.xlu0 %1181
        %1183 = vrot.lane.b32.xlu0 %v1170, 120
        %v1184 = vpop.permute.xlu0 %1183
        %1185 = vrot.lane.b32.xlu0 %v1173, 120
        %v1186 = vpop.permute.xlu0 %1185
        %1187 = vrot.lane.b32.xlu0 %v1164, 112
        %v1188 = vpop.permute.xlu0 %1187
        %1189 = vrot.lane.b32.xlu0 %v1167, 112
        %v1190 = vpop.permute.xlu0 %1189
        %1191 = vrot.lane.b32.xlu0 %v1170, 112
        %v1192 = vpop.permute.xlu0 %1191
        %1193 = vrot.lane.b32.xlu0 %v1173, 112
        %v1194 = vpop.permute.xlu0 %1193
        %1195 = vrot.lane.b32.xlu0 %v1164, 104
        %v1196 = vpop.permute.xlu0 %1195
        %1197 = vrot.lane.b32.xlu0 %v1167, 104
        %v1198 = vpop.permute.xlu0 %1197
        %1199 = vrot.lane.b32.xlu0 %v1170, 104
        %v1200 = vpop.permute.xlu0 %1199
        %1201 = vrot.lane.b32.xlu0 %v1173, 104
        %v1202 = vpop.permute.xlu0 %1201
        %1203 = vrot.lane.b32.xlu0 %v1164, 96
        %v1204 = vpop.permute.xlu0 %1203
        %vm1205 = vcmask 64512
        %v1206 = vsel %vm1205, %v1164, 0
        %v1208 = vsel %vm1205, %v1204, 0
        %1210 = vmatpush.xpose.msra.mxu0 0.0
        %1211 = vmatpush.xpose.msra.mxu0 0.0
        %1212 = vmatpush.xpose.msra.mxu0 0.0
        %1213 = vmatpush.xpose.msra.mxu0 0.0
        %1214 = vmatpush.xpose.msra.mxu0 0.0
        %1215 = vmatpush.xpose.msra.mxu0 0.0
        %1216 = vmatpush.xpose.msra.mxu0 0.0
        %1217 = vmatpush.xpose.msra.mxu0 0.0
        %1218 = vmatpush.xpose.msra.mxu0 0.0
        %1219 = vmatpush.xpose.msra.mxu0 0.0
        %1220 = vmatpush.xpose.msra.mxu0 0.0
        %1221 = vmatpush.xpose.msra.mxu0 0.0
        %1222 = vmatpush.xpose.msra.mxu0 0.0
        %1223 = vmatpush.xpose.msra.mxu0 0.0
        %1224 = vmatpush.xpose.msra.mxu0 0.0
        %1225 = vmatpush.xpose.msra.mxu0 %v1208
        %1226 = vmatmul.f32.gmra.mxu0 %v1206
        %v1227 = vpop.f32.mrf.mxu0
        %v1228 = vadd.f32 0.0, %v1227
        %1229 = vdwg.mxu0
        %1230 = vrot.lane.b32.xlu0 %v1167, 96
        %v1231 = vpop.permute.xlu0 %1230
        %v1232 = vsel %vm1205, %v1167, 0
        %v1234 = vsel %vm1205, %v1231, 0
        %1236 = vmatpush.xpose.msra.mxu0 0.0
        %1237 = vmatpush.xpose.msra.mxu0 0.0
        %1238 = vmatpush.xpose.msra.mxu0 0.0
        %1239 = vmatpush.xpose.msra.mxu0 0.0
        %1240 = vmatpush.xpose.msra.mxu0 0.0
        %1241 = vmatpush.xpose.msra.mxu0 0.0
        %1242 = vmatpush.xpose.msra.mxu0 0.0
        %1243 = vmatpush.xpose.msra.mxu0 0.0
        %1244 = vmatpush.xpose.msra.mxu0 0.0
        %1245 = vmatpush.xpose.msra.mxu0 0.0
        %1246 = vmatpush.xpose.msra.mxu0 0.0
        %1247 = vmatpush.xpose.msra.mxu0 0.0
        %1248 = vmatpush.xpose.msra.mxu0 0.0
        %1249 = vmatpush.xpose.msra.mxu0 0.0
        %1250 = vmatpush.xpose.msra.mxu0 0.0
        %1251 = vmatpush.xpose.msra.mxu0 %v1234
        %1252 = vmatmul.f32.gmra.mxu0 %v1232
        %v1253 = vpop.f32.mrf.mxu0
        %v1254 = vadd.f32 0.0, %v1253
        %1255 = vdwg.mxu0
        %1256 = vrot.lane.b32.xlu0 %v1170, 96
        %v1257 = vpop.permute.xlu0 %1256
        %v1258 = vsel %vm1205, %v1170, 0
        %v1260 = vsel %vm1205, %v1257, 0
        %1262 = vmatpush.xpose.msra.mxu0 0.0
        %1263 = vmatpush.xpose.msra.mxu0 0.0
        %1264 = vmatpush.xpose.msra.mxu0 0.0
        %1265 = vmatpush.xpose.msra.mxu0 0.0
        %1266 = vmatpush.xpose.msra.mxu0 0.0
        %1267 = vmatpush.xpose.msra.mxu0 0.0
        %1268 = vmatpush.xpose.msra.mxu0 0.0
        %1269 = vmatpush.xpose.msra.mxu0 0.0
        %1270 = vmatpush.xpose.msra.mxu0 0.0
        %1271 = vmatpush.xpose.msra.mxu0 0.0
        %1272 = vmatpush.xpose.msra.mxu0 0.0
        %1273 = vmatpush.xpose.msra.mxu0 0.0
        %1274 = vmatpush.xpose.msra.mxu0 0.0
        %1275 = vmatpush.xpose.msra.mxu0 0.0
        %1276 = vmatpush.xpose.msra.mxu0 0.0
        %1277 = vmatpush.xpose.msra.mxu0 %v1260
        %1278 = vmatmul.f32.gmra.mxu0 %v1258
        %v1279 = vpop.f32.mrf.mxu0
        %v1280 = vadd.f32 0.0, %v1279
        %1281 = vdwg.mxu0
        %1282 = vrot.lane.b32.xlu0 %v1173, 96
        %v1283 = vpop.permute.xlu0 %1282
        %v1284 = vsel %vm1205, %v1173, 0
        %v1286 = vsel %vm1205, %v1283, 0
        %1288 = vmatpush.xpose.msra.mxu0 0.0
        %1289 = vmatpush.xpose.msra.mxu0 0.0
        %1290 = vmatpush.xpose.msra.mxu0 0.0
        %1291 = vmatpush.xpose.msra.mxu0 0.0
        %1292 = vmatpush.xpose.msra.mxu0 0.0
        %1293 = vmatpush.xpose.msra.mxu0 0.0
        %1294 = vmatpush.xpose.msra.mxu0 0.0
        %1295 = vmatpush.xpose.msra.mxu0 0.0
        %1296 = vmatpush.xpose.msra.mxu0 0.0
        %1297 = vmatpush.xpose.msra.mxu0 0.0
        %1298 = vmatpush.xpose.msra.mxu0 0.0
        %1299 = vmatpush.xpose.msra.mxu0 0.0
        %1300 = vmatpush.xpose.msra.mxu0 0.0
        %1301 = vmatpush.xpose.msra.mxu0 0.0
        %1302 = vmatpush.xpose.msra.mxu0 0.0
        %1303 = vmatpush.xpose.msra.mxu0 %v1286
        %1304 = vmatmul.f32.gmra.mxu0 %v1284
        %v1305 = vpop.f32.mrf.mxu0
        %v1306 = vadd.f32 0.0, %v1305
        %1307 = vdwg.mxu0
        %1308 = vrot.lane.b32.xlu0 %v1180, 96
        %v1309 = vpop.permute.xlu0 %1308
        %v1310 = vsel %vm1205, %v1180, 0
        %v1312 = vsel %vm1205, %v1309, 0
        %1314 = vmatpush.xpose.msra.mxu0 0.0
        %1315 = vmatpush.xpose.msra.mxu0 0.0
        %1316 = vmatpush.xpose.msra.mxu0 0.0
        %1317 = vmatpush.xpose.msra.mxu0 0.0
        %1318 = vmatpush.xpose.msra.mxu0 0.0
        %1319 = vmatpush.xpose.msra.mxu0 0.0
        %1320 = vmatpush.xpose.msra.mxu0 0.0
        %1321 = vmatpush.xpose.msra.mxu0 0.0
        %1322 = vmatpush.xpose.msra.mxu0 0.0
        %1323 = vmatpush.xpose.msra.mxu0 0.0
        %1324 = vmatpush.xpose.msra.mxu0 0.0
        %1325 = vmatpush.xpose.msra.mxu0 0.0
        %1326 = vmatpush.xpose.msra.mxu0 0.0
        %1327 = vmatpush.xpose.msra.mxu0 0.0
        %1328 = vmatpush.xpose.msra.mxu0 0.0
        %1329 = vmatpush.xpose.msra.mxu0 %v1312
        %1330 = vmatmul.f32.gmra.mxu0 %v1310
        %v1331 = vpop.f32.mrf.mxu0
        %v1332 = vadd.f32 0.0, %v1331
        %1333 = vdwg.mxu0
        %1334 = vrot.lane.b32.xlu0 %v1182, 96
        %v1335 = vpop.permute.xlu0 %1334
        %v1336 = vsel %vm1205, %v1182, 0
        %v1338 = vsel %vm1205, %v1335, 0
        %1340 = vmatpush.xpose.msra.mxu0 0.0
        %1341 = vmatpush.xpose.msra.mxu0 0.0
        %1342 = vmatpush.xpose.msra.mxu0 0.0
        %1343 = vmatpush.xpose.msra.mxu0 0.0
        %1344 = vmatpush.xpose.msra.mxu0 0.0
        %1345 = vmatpush.xpose.msra.mxu0 0.0
        %1346 = vmatpush.xpose.msra.mxu0 0.0
        %1347 = vmatpush.xpose.msra.mxu0 0.0
        %1348 = vmatpush.xpose.msra.mxu0 0.0
        %1349 = vmatpush.xpose.msra.mxu0 0.0
        %1350 = vmatpush.xpose.msra.mxu0 0.0
        %1351 = vmatpush.xpose.msra.mxu0 0.0
        %1352 = vmatpush.xpose.msra.mxu0 0.0
        %1353 = vmatpush.xpose.msra.mxu0 0.0
        %1354 = vmatpush.xpose.msra.mxu0 0.0
        %1355 = vmatpush.xpose.msra.mxu0 %v1338
        %1356 = vmatmul.f32.gmra.mxu0 %v1336
        %v1357 = vpop.f32.mrf.mxu0
        %v1358 = vadd.f32 0.0, %v1357
        %1359 = vdwg.mxu0
        %1360 = vrot.lane.b32.xlu0 %v1184, 96
        %v1361 = vpop.permute.xlu0 %1360
        %v1362 = vsel %vm1205, %v1184, 0
        %v1364 = vsel %vm1205, %v1361, 0
        %1366 = vmatpush.xpose.msra.mxu0 0.0
        %1367 = vmatpush.xpose.msra.mxu0 0.0
        %1368 = vmatpush.xpose.msra.mxu0 0.0
        %1369 = vmatpush.xpose.msra.mxu0 0.0
        %1370 = vmatpush.xpose.msra.mxu0 0.0
        %1371 = vmatpush.xpose.msra.mxu0 0.0
        %1372 = vmatpush.xpose.msra.mxu0 0.0
        %1373 = vmatpush.xpose.msra.mxu0 0.0
        %1374 = vmatpush.xpose.msra.mxu0 0.0
        %1375 = vmatpush.xpose.msra.mxu0 0.0
        %1376 = vmatpush.xpose.msra.mxu0 0.0
        %1377 = vmatpush.xpose.msra.mxu0 0.0
        %1378 = vmatpush.xpose.msra.mxu0 0.0
        %1379 = vmatpush.xpose.msra.mxu0 0.0
        %1380 = vmatpush.xpose.msra.mxu0 0.0
        %1381 = vmatpush.xpose.msra.mxu0 %v1364
        %1382 = vmatmul.f32.gmra.mxu0 %v1362
        %v1383 = vpop.f32.mrf.mxu0
        %v1384 = vadd.f32 0.0, %v1383
        %1385 = vdwg.mxu0
        %1386 = vrot.lane.b32.xlu0 %v1186, 96
        %v1387 = vpop.permute.xlu0 %1386
        %v1388 = vsel %vm1205, %v1186, 0
        %v1390 = vsel %vm1205, %v1387, 0
        %1392 = vmatpush.xpose.msra.mxu0 0.0
        %1393 = vmatpush.xpose.msra.mxu0 0.0
        %1394 = vmatpush.xpose.msra.mxu0 0.0
        %1395 = vmatpush.xpose.msra.mxu0 0.0
        %1396 = vmatpush.xpose.msra.mxu0 0.0
        %1397 = vmatpush.xpose.msra.mxu0 0.0
        %1398 = vmatpush.xpose.msra.mxu0 0.0
        %1399 = vmatpush.xpose.msra.mxu0 0.0
        %1400 = vmatpush.xpose.msra.mxu0 0.0
        %1401 = vmatpush.xpose.msra.mxu0 0.0
        %1402 = vmatpush.xpose.msra.mxu0 0.0
        %1403 = vmatpush.xpose.msra.mxu0 0.0
        %1404 = vmatpush.xpose.msra.mxu0 0.0
        %1405 = vmatpush.xpose.msra.mxu0 0.0
        %1406 = vmatpush.xpose.msra.mxu0 0.0
        %1407 = vmatpush.xpose.msra.mxu0 %v1390
        %1408 = vmatmul.f32.gmra.mxu0 %v1388
        %v1409 = vpop.f32.mrf.mxu0
        %v1410 = vadd.f32 0.0, %v1409
        %1411 = vdwg.mxu0
        %1412 = vrot.lane.b32.xlu0 %v1188, 96
        %v1413 = vpop.permute.xlu0 %1412
        %v1414 = vsel %vm1205, %v1188, 0
        %v1416 = vsel %vm1205, %v1413, 0
        %1418 = vmatpush.xpose.msra.mxu0 0.0
        %1419 = vmatpush.xpose.msra.mxu0 0.0
        %1420 = vmatpush.xpose.msra.mxu0 0.0
        %1421 = vmatpush.xpose.msra.mxu0 0.0
        %1422 = vmatpush.xpose.msra.mxu0 0.0
        %1423 = vmatpush.xpose.msra.mxu0 0.0
        %1424 = vmatpush.xpose.msra.mxu0 0.0
        %1425 = vmatpush.xpose.msra.mxu0 0.0
        %1426 = vmatpush.xpose.msra.mxu0 0.0
        %1427 = vmatpush.xpose.msra.mxu0 0.0
        %1428 = vmatpush.xpose.msra.mxu0 0.0
        %1429 = vmatpush.xpose.msra.mxu0 0.0
        %1430 = vmatpush.xpose.msra.mxu0 0.0
        %1431 = vmatpush.xpose.msra.mxu0 0.0
        %1432 = vmatpush.xpose.msra.mxu0 0.0
        %1433 = vmatpush.xpose.msra.mxu0 %v1416
        %1434 = vmatmul.f32.gmra.mxu0 %v1414
        %v1435 = vpop.f32.mrf.mxu0
        %v1436 = vadd.f32 0.0, %v1435
        %1437 = vdwg.mxu0
        %1438 = vrot.lane.b32.xlu0 %v1190, 96
        %v1439 = vpop.permute.xlu0 %1438
        %v1440 = vsel %vm1205, %v1190, 0
        %v1442 = vsel %vm1205, %v1439, 0
        %1444 = vmatpush.xpose.msra.mxu0 0.0
        %1445 = vmatpush.xpose.msra.mxu0 0.0
        %1446 = vmatpush.xpose.msra.mxu0 0.0
        %1447 = vmatpush.xpose.msra.mxu0 0.0
        %1448 = vmatpush.xpose.msra.mxu0 0.0
        %1449 = vmatpush.xpose.msra.mxu0 0.0
        %1450 = vmatpush.xpose.msra.mxu0 0.0
        %1451 = vmatpush.xpose.msra.mxu0 0.0
        %1452 = vmatpush.xpose.msra.mxu0 0.0
        %1453 = vmatpush.xpose.msra.mxu0 0.0
        %1454 = vmatpush.xpose.msra.mxu0 0.0
        %1455 = vmatpush.xpose.msra.mxu0 0.0
        %1456 = vmatpush.xpose.msra.mxu0 0.0
        %1457 = vmatpush.xpose.msra.mxu0 0.0
        %1458 = vmatpush.xpose.msra.mxu0 0.0
        %1459 = vmatpush.xpose.msra.mxu0 %v1442
        %1460 = vmatmul.f32.gmra.mxu0 %v1440
        %v1461 = vpop.f32.mrf.mxu0
        %v1462 = vadd.f32 0.0, %v1461
        %1463 = vdwg.mxu0
        %1464 = vrot.lane.b32.xlu0 %v1192, 96
        %v1465 = vpop.permute.xlu0 %1464
        %v1466 = vsel %vm1205, %v1192, 0
        %v1468 = vsel %vm1205, %v1465, 0
        %1470 = vmatpush.xpose.msra.mxu0 0.0
        %1471 = vmatpush.xpose.msra.mxu0 0.0
        %1472 = vmatpush.xpose.msra.mxu0 0.0
        %1473 = vmatpush.xpose.msra.mxu0 0.0
        %1474 = vmatpush.xpose.msra.mxu0 0.0
        %1475 = vmatpush.xpose.msra.mxu0 0.0
        %1476 = vmatpush.xpose.msra.mxu0 0.0
        %1477 = vmatpush.xpose.msra.mxu0 0.0
        %1478 = vmatpush.xpose.msra.mxu0 0.0
        %1479 = vmatpush.xpose.msra.mxu0 0.0
        %1480 = vmatpush.xpose.msra.mxu0 0.0
        %1481 = vmatpush.xpose.msra.mxu0 0.0
        %1482 = vmatpush.xpose.msra.mxu0 0.0
        %1483 = vmatpush.xpose.msra.mxu0 0.0
        %1484 = vmatpush.xpose.msra.mxu0 0.0
        %1485 = vmatpush.xpose.msra.mxu0 %v1468
        %1486 = vmatmul.f32.gmra.mxu0 %v1466
        %v1487 = vpop.f32.mrf.mxu0
        %v1488 = vadd.f32 0.0, %v1487
        %1489 = vdwg.mxu0
        %1490 = vrot.lane.b32.xlu0 %v1194, 96
        %v1491 = vpop.permute.xlu0 %1490
        %v1492 = vsel %vm1205, %v1194, 0
        %v1494 = vsel %vm1205, %v1491, 0
        %1496 = vmatpush.xpose.msra.mxu0 0.0
        %1497 = vmatpush.xpose.msra.mxu0 0.0
        %1498 = vmatpush.xpose.msra.mxu0 0.0
        %1499 = vmatpush.xpose.msra.mxu0 0.0
        %1500 = vmatpush.xpose.msra.mxu0 0.0
        %1501 = vmatpush.xpose.msra.mxu0 0.0
        %1502 = vmatpush.xpose.msra.mxu0 0.0
        %1503 = vmatpush.xpose.msra.mxu0 0.0
        %1504 = vmatpush.xpose.msra.mxu0 0.0
        %1505 = vmatpush.xpose.msra.mxu0 0.0
        %1506 = vmatpush.xpose.msra.mxu0 0.0
        %1507 = vmatpush.xpose.msra.mxu0 0.0
        %1508 = vmatpush.xpose.msra.mxu0 0.0
        %1509 = vmatpush.xpose.msra.mxu0 0.0
        %1510 = vmatpush.xpose.msra.mxu0 0.0
        %1511 = vmatpush.xpose.msra.mxu0 %v1494
        %1512 = vmatmul.f32.gmra.mxu0 %v1492
        %v1513 = vpop.f32.mrf.mxu0
        %v1514 = vadd.f32 0.0, %v1513
        %1515 = vdwg.mxu0
        %1516 = vrot.lane.b32.xlu0 %v1196, 96
        %v1517 = vpop.permute.xlu0 %1516
        %v1518 = vsel %vm1205, %v1196, 0
        %v1520 = vsel %vm1205, %v1517, 0
        %1522 = vmatpush.xpose.msra.mxu0 0.0
        %1523 = vmatpush.xpose.msra.mxu0 0.0
        %1524 = vmatpush.xpose.msra.mxu0 0.0
        %1525 = vmatpush.xpose.msra.mxu0 0.0
        %1526 = vmatpush.xpose.msra.mxu0 0.0
        %1527 = vmatpush.xpose.msra.mxu0 0.0
        %1528 = vmatpush.xpose.msra.mxu0 0.0
        %1529 = vmatpush.xpose.msra.mxu0 0.0
        %1530 = vmatpush.xpose.msra.mxu0 0.0
        %1531 = vmatpush.xpose.msra.mxu0 0.0
        %1532 = vmatpush.xpose.msra.mxu0 0.0
        %1533 = vmatpush.xpose.msra.mxu0 0.0
        %1534 = vmatpush.xpose.msra.mxu0 0.0
        %1535 = vmatpush.xpose.msra.mxu0 0.0
        %1536 = vmatpush.xpose.msra.mxu0 0.0
        %1537 = vmatpush.xpose.msra.mxu0 %v1520
        %1538 = vmatmul.f32.gmra.mxu0 %v1518
        %v1539 = vpop.f32.mrf.mxu0
        %v1540 = vadd.f32 0.0, %v1539
        %1541 = vdwg.mxu0
        %1542 = vrot.lane.b32.xlu0 %v1198, 96
        %v1543 = vpop.permute.xlu0 %1542
        %v1544 = vsel %vm1205, %v1198, 0
        %v1546 = vsel %vm1205, %v1543, 0
        %1548 = vmatpush.xpose.msra.mxu0 0.0
        %1549 = vmatpush.xpose.msra.mxu0 0.0
        %1550 = vmatpush.xpose.msra.mxu0 0.0
        %1551 = vmatpush.xpose.msra.mxu0 0.0
        %1552 = vmatpush.xpose.msra.mxu0 0.0
        %1553 = vmatpush.xpose.msra.mxu0 0.0
        %1554 = vmatpush.xpose.msra.mxu0 0.0
        %1555 = vmatpush.xpose.msra.mxu0 0.0
        %1556 = vmatpush.xpose.msra.mxu0 0.0
        %1557 = vmatpush.xpose.msra.mxu0 0.0
        %1558 = vmatpush.xpose.msra.mxu0 0.0
        %1559 = vmatpush.xpose.msra.mxu0 0.0
        %1560 = vmatpush.xpose.msra.mxu0 0.0
        %1561 = vmatpush.xpose.msra.mxu0 0.0
        %1562 = vmatpush.xpose.msra.mxu0 0.0
        %1563 = vmatpush.xpose.msra.mxu0 %v1546
        %1564 = vmatmul.f32.gmra.mxu0 %v1544
        %v1565 = vpop.f32.mrf.mxu0
        %v1566 = vadd.f32 0.0, %v1565
        %1567 = vdwg.mxu0
        %1568 = vrot.lane.b32.xlu0 %v1200, 96
        %v1569 = vpop.permute.xlu0 %1568
        %v1570 = vsel %vm1205, %v1200, 0
        %v1572 = vsel %vm1205, %v1569, 0
        %1574 = vmatpush.xpose.msra.mxu0 0.0
        %1575 = vmatpush.xpose.msra.mxu0 0.0
        %1576 = vmatpush.xpose.msra.mxu0 0.0
        %1577 = vmatpush.xpose.msra.mxu0 0.0
        %1578 = vmatpush.xpose.msra.mxu0 0.0
        %1579 = vmatpush.xpose.msra.mxu0 0.0
        %1580 = vmatpush.xpose.msra.mxu0 0.0
        %1581 = vmatpush.xpose.msra.mxu0 0.0
        %1582 = vmatpush.xpose.msra.mxu0 0.0
        %1583 = vmatpush.xpose.msra.mxu0 0.0
        %1584 = vmatpush.xpose.msra.mxu0 0.0
        %1585 = vmatpush.xpose.msra.mxu0 0.0
        %1586 = vmatpush.xpose.msra.mxu0 0.0
        %1587 = vmatpush.xpose.msra.mxu0 0.0
        %1588 = vmatpush.xpose.msra.mxu0 0.0
        %1589 = vmatpush.xpose.msra.mxu0 %v1572
        %1590 = vmatmul.f32.gmra.mxu0 %v1570
        %v1591 = vpop.f32.mrf.mxu0
        %v1592 = vadd.f32 0.0, %v1591
        %1593 = vdwg.mxu0
        %1594 = vrot.lane.b32.xlu0 %v1202, 96
        %v1595 = vpop.permute.xlu0 %1594
        %v1596 = vsel %vm1205, %v1202, 0
        %v1598 = vsel %vm1205, %v1595, 0
        %1600 = vmatpush.xpose.msra.mxu0 0.0
        %1601 = vmatpush.xpose.msra.mxu0 0.0
        %1602 = vmatpush.xpose.msra.mxu0 0.0
        %1603 = vmatpush.xpose.msra.mxu0 0.0
        %1604 = vmatpush.xpose.msra.mxu0 0.0
        %1605 = vmatpush.xpose.msra.mxu0 0.0
        %1606 = vmatpush.xpose.msra.mxu0 0.0
        %1607 = vmatpush.xpose.msra.mxu0 0.0
        %1608 = vmatpush.xpose.msra.mxu0 0.0
        %1609 = vmatpush.xpose.msra.mxu0 0.0
        %1610 = vmatpush.xpose.msra.mxu0 0.0
        %1611 = vmatpush.xpose.msra.mxu0 0.0
        %1612 = vmatpush.xpose.msra.mxu0 0.0
        %1613 = vmatpush.xpose.msra.mxu0 0.0
        %1614 = vmatpush.xpose.msra.mxu0 0.0
        %1615 = vmatpush.xpose.msra.mxu0 %v1598
        %1616 = vmatmul.f32.gmra.mxu0 %v1596
        %v1617 = vpop.f32.mrf.mxu0
        %v1618 = vadd.f32 0.0, %v1617
        %1619 = vdwg.mxu0
        %v1620 = vmul.f32 %v1228, 0.35355338
        %v1621 = vmul.f32 %v1254, 0.35355338
        %v1622 = vmul.f32 %v1280, 0.35355338
        %v1623 = vmul.f32 %v1306, 0.35355338
        %v1624 = vmul.f32 %v1332, 0.35355338
        %v1625 = vmul.f32 %v1358, 0.35355338
        %v1626 = vmul.f32 %v1384, 0.35355338
        %v1627 = vmul.f32 %v1410, 0.35355338
        %v1628 = vmul.f32 %v1436, 0.35355338
        %v1629 = vmul.f32 %v1462, 0.35355338
        %v1630 = vmul.f32 %v1488, 0.35355338
        %v1631 = vmul.f32 %v1514, 0.35355338
        %v1632 = vmul.f32 %v1540, 0.35355338
        %v1633 = vmul.f32 %v1566, 0.35355338
        %v1634 = vmul.f32 %v1592, 0.35355338
        %v1635 = vmul.f32 %v1618, 0.35355338
        %v1640 = vperm.slane %v1010, 0
        %v1641 = vperm.slane %v1011, 0
        %v1642 = vperm.slane %v1012, 0
        %v1643 = vperm.slane %v1013, 0
        %v1648 = vadd.f32 %v1620, %v1640
        %v1649 = vadd.f32 %v1621, %v1641
        %v1650 = vadd.f32 %v1622, %v1642
        %v1651 = vadd.f32 %v1623, %v1643
        %v1652 = vadd.f32 %v1624, %v1640
        %v1653 = vadd.f32 %v1625, %v1641
        %v1654 = vadd.f32 %v1626, %v1642
        %v1655 = vadd.f32 %v1627, %v1643
        %v1656 = vadd.f32 %v1628, %v1640
        %v1657 = vadd.f32 %v1629, %v1641
        %v1658 = vadd.f32 %v1630, %v1642
        %v1659 = vadd.f32 %v1631, %v1643
        %v1660 = vadd.f32 %v1632, %v1640
        %v1661 = vadd.f32 %v1633, %v1641
        %v1662 = vadd.f32 %v1634, %v1642
        %v1663 = vadd.f32 %v1635, %v1643
        %v1664 = vsel %vm1205, %v1648, -inf
        %1665 = vmax.xlane.f32.xlu0 %v1664
        %v1666 = vpop.xlane.xlu0 %1665
        %v1667 = vsel %vm1205, %v1649, -inf
        %1668 = vmax.xlane.f32.xlu0 %v1667
        %v1669 = vpop.xlane.xlu0 %1668
        %v1670 = vsel %vm1205, %v1650, -inf
        %1671 = vmax.xlane.f32.xlu0 %v1670
        %v1672 = vpop.xlane.xlu0 %1671
        %v1673 = vsel %vm1205, %v1651, -inf
        %1674 = vmax.xlane.f32.xlu0 %v1673
        %v1675 = vpop.xlane.xlu0 %1674
        %v1676 = vsel %vm1205, %v1652, -inf
        %1677 = vmax.xlane.f32.xlu0 %v1676
        %v1678 = vpop.xlane.xlu0 %1677
        %v1679 = vsel %vm1205, %v1653, -inf
        %1680 = vmax.xlane.f32.xlu0 %v1679
        %v1681 = vpop.xlane.xlu0 %1680
        %v1682 = vsel %vm1205, %v1654, -inf
        %1683 = vmax.xlane.f32.xlu0 %v1682
        %v1684 = vpop.xlane.xlu0 %1683
        %v1685 = vsel %vm1205, %v1655, -inf
        %1686 = vmax.xlane.f32.xlu0 %v1685
        %v1687 = vpop.xlane.xlu0 %1686
        %v1688 = vsel %vm1205, %v1656, -inf
        %1689 = vmax.xlane.f32.xlu0 %v1688
        %v1690 = vpop.xlane.xlu0 %1689
        %v1691 = vsel %vm1205, %v1657, -inf
        %1692 = vmax.xlane.f32.xlu0 %v1691
        %v1693 = vpop.xlane.xlu0 %1692
        %v1694 = vsel %vm1205, %v1658, -inf
        %1695 = vmax.xlane.f32.xlu0 %v1694
        %v1696 = vpop.xlane.xlu0 %1695
        %v1697 = vsel %vm1205, %v1659, -inf
        %1698 = vmax.xlane.f32.xlu0 %v1697
        %v1699 = vpop.xlane.xlu0 %1698
        %v1700 = vsel %vm1205, %v1660, -inf
        %1701 = vmax.xlane.f32.xlu0 %v1700
        %v1702 = vpop.xlane.xlu0 %1701
        %v1703 = vsel %vm1205, %v1661, -inf
        %1704 = vmax.xlane.f32.xlu0 %v1703
        %v1705 = vpop.xlane.xlu0 %1704
        %v1706 = vsel %vm1205, %v1662, -inf
        %1707 = vmax.xlane.f32.xlu0 %v1706
        %v1708 = vpop.xlane.xlu0 %1707
        %v1709 = vsel %vm1205, %v1663, -inf
        %1710 = vmax.xlane.f32.xlu0 %v1709
        %v1711 = vpop.xlane.xlu0 %1710
        %v1712 = vsub.f32 %v1648, %v1666
        %v1713 = vsub.f32 %v1649, %v1669
        %v1714 = vsub.f32 %v1650, %v1672
        %v1715 = vsub.f32 %v1651, %v1675
        %v1716 = vsub.f32 %v1652, %v1678
        %v1717 = vsub.f32 %v1653, %v1681
        %v1718 = vsub.f32 %v1654, %v1684
        %v1719 = vsub.f32 %v1655, %v1687
        %v1720 = vsub.f32 %v1656, %v1690
        %v1721 = vsub.f32 %v1657, %v1693
        %v1722 = vsub.f32 %v1658, %v1696
        %v1723 = vsub.f32 %v1659, %v1699
        %v1724 = vsub.f32 %v1660, %v1702
        %v1725 = vsub.f32 %v1661, %v1705
        %v1726 = vsub.f32 %v1662, %v1708
        %v1727 = vsub.f32 %v1663, %v1711
        %v1728 = vmul.f32 %v1712, 1.442695
        %v1729 = vpow.pop %v1728
        %v1730 = vmul.f32 %v1713, 1.442695
        %v1731 = vpow.pop %v1730
        %v1732 = vmul.f32 %v1714, 1.442695
        %v1733 = vpow.pop %v1732
        %v1734 = vmul.f32 %v1715, 1.442695
        %v1735 = vpow.pop %v1734
        %v1736 = vmul.f32 %v1716, 1.442695
        %v1737 = vpow.pop %v1736
        %v1738 = vmul.f32 %v1717, 1.442695
        %v1739 = vpow.pop %v1738
        %v1740 = vmul.f32 %v1718, 1.442695
        %v1741 = vpow.pop %v1740
        %v1742 = vmul.f32 %v1719, 1.442695
        %v1743 = vpow.pop %v1742
        %v1744 = vmul.f32 %v1720, 1.442695
        %v1745 = vpow.pop %v1744
        %v1746 = vmul.f32 %v1721, 1.442695
        %v1747 = vpow.pop %v1746
        %v1748 = vmul.f32 %v1722, 1.442695
        %v1749 = vpow.pop %v1748
        %v1750 = vmul.f32 %v1723, 1.442695
        %v1751 = vpow.pop %v1750
        %v1752 = vmul.f32 %v1724, 1.442695
        %v1753 = vpow.pop %v1752
        %v1754 = vmul.f32 %v1725, 1.442695
        %v1755 = vpow.pop %v1754
        %v1756 = vmul.f32 %v1726, 1.442695
        %v1757 = vpow.pop %v1756
        %v1758 = vmul.f32 %v1727, 1.442695
        %v1759 = vpow.pop %v1758
        %v1760 = vsel %vm1205, %v1729, 0.0
        %1761 = vadd.xlane.f32.xlu0 %v1760
        %v1762 = vpop.xlane.xlu0 %1761
        %v1763 = vsel %vm1205, %v1731, 0.0
        %1764 = vadd.xlane.f32.xlu0 %v1763
        %v1765 = vpop.xlane.xlu0 %1764
        %v1766 = vsel %vm1205, %v1733, 0.0
        %1767 = vadd.xlane.f32.xlu0 %v1766
        %v1768 = vpop.xlane.xlu0 %1767
        %v1769 = vsel %vm1205, %v1735, 0.0
        %1770 = vadd.xlane.f32.xlu0 %v1769
        %v1771 = vpop.xlane.xlu0 %1770
        %v1772 = vsel %vm1205, %v1737, 0.0
        %1773 = vadd.xlane.f32.xlu0 %v1772
        %v1774 = vpop.xlane.xlu0 %1773
        %v1775 = vsel %vm1205, %v1739, 0.0
        %1776 = vadd.xlane.f32.xlu0 %v1775
        %v1777 = vpop.xlane.xlu0 %1776
        %v1778 = vsel %vm1205, %v1741, 0.0
        %1779 = vadd.xlane.f32.xlu0 %v1778
        %v1780 = vpop.xlane.xlu0 %1779
        %v1781 = vsel %vm1205, %v1743, 0.0
        %1782 = vadd.xlane.f32.xlu0 %v1781
        %v1783 = vpop.xlane.xlu0 %1782
        %v1784 = vsel %vm1205, %v1745, 0.0
        %1785 = vadd.xlane.f32.xlu0 %v1784
        %v1786 = vpop.xlane.xlu0 %1785
        %v1787 = vsel %vm1205, %v1747, 0.0
        %1788 = vadd.xlane.f32.xlu0 %v1787
        %v1789 = vpop.xlane.xlu0 %1788
        %v1790 = vsel %vm1205, %v1749, 0.0
        %1791 = vadd.xlane.f32.xlu0 %v1790
        %v1792 = vpop.xlane.xlu0 %1791
        %v1793 = vsel %vm1205, %v1751, 0.0
        %1794 = vadd.xlane.f32.xlu0 %v1793
        %v1795 = vpop.xlane.xlu0 %1794
        %v1796 = vsel %vm1205, %v1753, 0.0
        %1797 = vadd.xlane.f32.xlu0 %v1796
        %v1798 = vpop.xlane.xlu0 %1797
        %v1799 = vsel %vm1205, %v1755, 0.0
        %1800 = vadd.xlane.f32.xlu0 %v1799
        %v1801 = vpop.xlane.xlu0 %1800
        %v1802 = vsel %vm1205, %v1757, 0.0
        %1803 = vadd.xlane.f32.xlu0 %v1802
        %v1804 = vpop.xlane.xlu0 %1803
        %v1805 = vsel %vm1205, %v1759, 0.0
        %1806 = vadd.xlane.f32.xlu0 %v1805
        %v1807 = vpop.xlane.xlu0 %1806
        %v1808 = vrcp.pop %v1762
        %v1809 = vmul.f32 %v1762, %v1808
        %v1810 = vsub.f32 1.0, %v1809
        %v1811 = vmul.f32 %v1808, %v1810
        %v1812 = vadd.f32 %v1808, %v1811
        %vm1813 = vweird.f32 %v1762
        %vm1814 = vweird.f32 %v1808
        %vm1815 = vmor %vm1813, %vm1814
        %v1816 = vsel %vm1815, %v1808, %v1812
        %v1817 = vand.u32 2147483647, %v1762
        %vm1818 = vcmp.eq.f32.partialorder %v1817, 8.507059e+37
        %v1819 = vand.u32 %v1762, 2147483648
        %v1820 = vor.u32 1.1754944e-38, %v1819
        %v1821 = vsel %vm1818, %v1820, %v1816
        %v1822 = vmul.f32 %v1729, %v1821
        %v1823 = vrcp.pop %v1765
        %v1824 = vmul.f32 %v1765, %v1823
        %v1825 = vsub.f32 1.0, %v1824
        %v1826 = vmul.f32 %v1823, %v1825
        %v1827 = vadd.f32 %v1823, %v1826
        %vm1828 = vweird.f32 %v1765
        %vm1829 = vweird.f32 %v1823
        %vm1830 = vmor %vm1828, %vm1829
        %v1831 = vsel %vm1830, %v1823, %v1827
        %v1832 = vand.u32 2147483647, %v1765
        %vm1833 = vcmp.eq.f32.partialorder %v1832, 8.507059e+37
        %v1834 = vand.u32 %v1765, 2147483648
        %v1835 = vor.u32 1.1754944e-38, %v1834
        %v1836 = vsel %vm1833, %v1835, %v1831
        %v1837 = vmul.f32 %v1731, %v1836
        %v1838 = vrcp.pop %v1768
        %v1839 = vmul.f32 %v1768, %v1838
        %v1840 = vsub.f32 1.0, %v1839
        %v1841 = vmul.f32 %v1838, %v1840
        %v1842 = vadd.f32 %v1838, %v1841
        %vm1843 = vweird.f32 %v1768
        %vm1844 = vweird.f32 %v1838
        %vm1845 = vmor %vm1843, %vm1844
        %v1846 = vsel %vm1845, %v1838, %v1842
        %v1847 = vand.u32 2147483647, %v1768
        %vm1848 = vcmp.eq.f32.partialorder %v1847, 8.507059e+37
        %v1849 = vand.u32 %v1768, 2147483648
        %v1850 = vor.u32 1.1754944e-38, %v1849
        %v1851 = vsel %vm1848, %v1850, %v1846
        %v1852 = vmul.f32 %v1733, %v1851
        %v1853 = vrcp.pop %v1771
        %v1854 = vmul.f32 %v1771, %v1853
        %v1855 = vsub.f32 1.0, %v1854
        %v1856 = vmul.f32 %v1853, %v1855
        %v1857 = vadd.f32 %v1853, %v1856
        %vm1858 = vweird.f32 %v1771
        %vm1859 = vweird.f32 %v1853
        %vm1860 = vmor %vm1858, %vm1859
        %v1861 = vsel %vm1860, %v1853, %v1857
        %v1862 = vand.u32 2147483647, %v1771
        %vm1863 = vcmp.eq.f32.partialorder %v1862, 8.507059e+37
        %v1864 = vand.u32 %v1771, 2147483648
        %v1865 = vor.u32 1.1754944e-38, %v1864
        %v1866 = vsel %vm1863, %v1865, %v1861
        %v1867 = vmul.f32 %v1735, %v1866
        %v1868 = vrcp.pop %v1774
        %v1869 = vmul.f32 %v1774, %v1868
        %v1870 = vsub.f32 1.0, %v1869
        %v1871 = vmul.f32 %v1868, %v1870
        %v1872 = vadd.f32 %v1868, %v1871
        %vm1873 = vweird.f32 %v1774
        %vm1874 = vweird.f32 %v1868
        %vm1875 = vmor %vm1873, %vm1874
        %v1876 = vsel %vm1875, %v1868, %v1872
        %v1877 = vand.u32 2147483647, %v1774
        %vm1878 = vcmp.eq.f32.partialorder %v1877, 8.507059e+37
        %v1879 = vand.u32 %v1774, 2147483648
        %v1880 = vor.u32 1.1754944e-38, %v1879
        %v1881 = vsel %vm1878, %v1880, %v1876
        %v1882 = vmul.f32 %v1737, %v1881
        %v1883 = vrcp.pop %v1777
        %v1884 = vmul.f32 %v1777, %v1883
        %v1885 = vsub.f32 1.0, %v1884
        %v1886 = vmul.f32 %v1883, %v1885
        %v1887 = vadd.f32 %v1883, %v1886
        %vm1888 = vweird.f32 %v1777
        %vm1889 = vweird.f32 %v1883
        %vm1890 = vmor %vm1888, %vm1889
        %v1891 = vsel %vm1890, %v1883, %v1887
        %v1892 = vand.u32 2147483647, %v1777
        %vm1893 = vcmp.eq.f32.partialorder %v1892, 8.507059e+37
        %v1894 = vand.u32 %v1777, 2147483648
        %v1895 = vor.u32 1.1754944e-38, %v1894
        %v1896 = vsel %vm1893, %v1895, %v1891
        %v1897 = vmul.f32 %v1739, %v1896
        %v1898 = vrcp.pop %v1780
        %v1899 = vmul.f32 %v1780, %v1898
        %v1900 = vsub.f32 1.0, %v1899
        %v1901 = vmul.f32 %v1898, %v1900
        %v1902 = vadd.f32 %v1898, %v1901
        %vm1903 = vweird.f32 %v1780
        %vm1904 = vweird.f32 %v1898
        %vm1905 = vmor %vm1903, %vm1904
        %v1906 = vsel %vm1905, %v1898, %v1902
        %v1907 = vand.u32 2147483647, %v1780
        %vm1908 = vcmp.eq.f32.partialorder %v1907, 8.507059e+37
        %v1909 = vand.u32 %v1780, 2147483648
        %v1910 = vor.u32 1.1754944e-38, %v1909
        %v1911 = vsel %vm1908, %v1910, %v1906
        %v1912 = vmul.f32 %v1741, %v1911
        %v1913 = vrcp.pop %v1783
        %v1914 = vmul.f32 %v1783, %v1913
        %v1915 = vsub.f32 1.0, %v1914
        %v1916 = vmul.f32 %v1913, %v1915
        %v1917 = vadd.f32 %v1913, %v1916
        %vm1918 = vweird.f32 %v1783
        %vm1919 = vweird.f32 %v1913
        %vm1920 = vmor %vm1918, %vm1919
        %v1921 = vsel %vm1920, %v1913, %v1917
        %v1922 = vand.u32 2147483647, %v1783
        %vm1923 = vcmp.eq.f32.partialorder %v1922, 8.507059e+37
        %v1924 = vand.u32 %v1783, 2147483648
        %v1925 = vor.u32 1.1754944e-38, %v1924
        %v1926 = vsel %vm1923, %v1925, %v1921
        %v1927 = vmul.f32 %v1743, %v1926
        %v1928 = vrcp.pop %v1786
        %v1929 = vmul.f32 %v1786, %v1928
        %v1930 = vsub.f32 1.0, %v1929
        %v1931 = vmul.f32 %v1928, %v1930
        %v1932 = vadd.f32 %v1928, %v1931
        %vm1933 = vweird.f32 %v1786
        %vm1934 = vweird.f32 %v1928
        %vm1935 = vmor %vm1933, %vm1934
        %v1936 = vsel %vm1935, %v1928, %v1932
        %v1937 = vand.u32 2147483647, %v1786
        %vm1938 = vcmp.eq.f32.partialorder %v1937, 8.507059e+37
        %v1939 = vand.u32 %v1786, 2147483648
        %v1940 = vor.u32 1.1754944e-38, %v1939
        %v1941 = vsel %vm1938, %v1940, %v1936
        %v1942 = vmul.f32 %v1745, %v1941
        %v1943 = vrcp.pop %v1789
        %v1944 = vmul.f32 %v1789, %v1943
        %v1945 = vsub.f32 1.0, %v1944
        %v1946 = vmul.f32 %v1943, %v1945
        %v1947 = vadd.f32 %v1943, %v1946
        %vm1948 = vweird.f32 %v1789
        %vm1949 = vweird.f32 %v1943
        %vm1950 = vmor %vm1948, %vm1949
        %v1951 = vsel %vm1950, %v1943, %v1947
        %v1952 = vand.u32 2147483647, %v1789
        %vm1953 = vcmp.eq.f32.partialorder %v1952, 8.507059e+37
        %v1954 = vand.u32 %v1789, 2147483648
        %v1955 = vor.u32 1.1754944e-38, %v1954
        %v1956 = vsel %vm1953, %v1955, %v1951
        %v1957 = vmul.f32 %v1747, %v1956
        %v1958 = vrcp.pop %v1792
        %v1959 = vmul.f32 %v1792, %v1958
        %v1960 = vsub.f32 1.0, %v1959
        %v1961 = vmul.f32 %v1958, %v1960
        %v1962 = vadd.f32 %v1958, %v1961
        %vm1963 = vweird.f32 %v1792
        %vm1964 = vweird.f32 %v1958
        %vm1965 = vmor %vm1963, %vm1964
        %v1966 = vsel %vm1965, %v1958, %v1962
        %v1967 = vand.u32 2147483647, %v1792
        %vm1968 = vcmp.eq.f32.partialorder %v1967, 8.507059e+37
        %v1969 = vand.u32 %v1792, 2147483648
        %v1970 = vor.u32 1.1754944e-38, %v1969
        %v1971 = vsel %vm1968, %v1970, %v1966
        %v1972 = vmul.f32 %v1749, %v1971
        %v1973 = vrcp.pop %v1795
        %v1974 = vmul.f32 %v1795, %v1973
        %v1975 = vsub.f32 1.0, %v1974
        %v1976 = vmul.f32 %v1973, %v1975
        %v1977 = vadd.f32 %v1973, %v1976
        %vm1978 = vweird.f32 %v1795
        %vm1979 = vweird.f32 %v1973
        %vm1980 = vmor %vm1978, %vm1979
        %v1981 = vsel %vm1980, %v1973, %v1977
        %v1982 = vand.u32 2147483647, %v1795
        %vm1983 = vcmp.eq.f32.partialorder %v1982, 8.507059e+37
        %v1984 = vand.u32 %v1795, 2147483648
        %v1985 = vor.u32 1.1754944e-38, %v1984
        %v1986 = vsel %vm1983, %v1985, %v1981
        %v1987 = vmul.f32 %v1751, %v1986
        %v1988 = vrcp.pop %v1798
        %v1989 = vmul.f32 %v1798, %v1988
        %v1990 = vsub.f32 1.0, %v1989
        %v1991 = vmul.f32 %v1988, %v1990
        %v1992 = vadd.f32 %v1988, %v1991
        %vm1993 = vweird.f32 %v1798
        %vm1994 = vweird.f32 %v1988
        %vm1995 = vmor %vm1993, %vm1994
        %v1996 = vsel %vm1995, %v1988, %v1992
        %v1997 = vand.u32 2147483647, %v1798
        %vm1998 = vcmp.eq.f32.partialorder %v1997, 8.507059e+37
        %v1999 = vand.u32 %v1798, 2147483648
        %v2000 = vor.u32 1.1754944e-38, %v1999
        %v2001 = vsel %vm1998, %v2000, %v1996
        %v2002 = vmul.f32 %v1753, %v2001
        %v2003 = vrcp.pop %v1801
        %v2004 = vmul.f32 %v1801, %v2003
        %v2005 = vsub.f32 1.0, %v2004
        %v2006 = vmul.f32 %v2003, %v2005
        %v2007 = vadd.f32 %v2003, %v2006
        %vm2008 = vweird.f32 %v1801
        %vm2009 = vweird.f32 %v2003
        %vm2010 = vmor %vm2008, %vm2009
        %v2011 = vsel %vm2010, %v2003, %v2007
        %v2012 = vand.u32 2147483647, %v1801
        %vm2013 = vcmp.eq.f32.partialorder %v2012, 8.507059e+37
        %v2014 = vand.u32 %v1801, 2147483648
        %v2015 = vor.u32 1.1754944e-38, %v2014
        %v2016 = vsel %vm2013, %v2015, %v2011
        %v2017 = vmul.f32 %v1755, %v2016
        %v2018 = vrcp.pop %v1804
        %v2019 = vmul.f32 %v1804, %v2018
        %v2020 = vsub.f32 1.0, %v2019
        %v2021 = vmul.f32 %v2018, %v2020
        %v2022 = vadd.f32 %v2018, %v2021
        %vm2023 = vweird.f32 %v1804
        %vm2024 = vweird.f32 %v2018
        %vm2025 = vmor %vm2023, %vm2024
        %v2026 = vsel %vm2025, %v2018, %v2022
        %v2027 = vand.u32 2147483647, %v1804
        %vm2028 = vcmp.eq.f32.partialorder %v2027, 8.507059e+37
        %v2029 = vand.u32 %v1804, 2147483648
        %v2030 = vor.u32 1.1754944e-38, %v2029
        %v2031 = vsel %vm2028, %v2030, %v2026
        %v2032 = vmul.f32 %v1757, %v2031
        %v2033 = vrcp.pop %v1807
        %v2034 = vmul.f32 %v1807, %v2033
        %v2035 = vsub.f32 1.0, %v2034
        %v2036 = vmul.f32 %v2033, %v2035
        %v2037 = vadd.f32 %v2033, %v2036
        %vm2038 = vweird.f32 %v1807
        %vm2039 = vweird.f32 %v2033
        %vm2040 = vmor %vm2038, %vm2039
        %v2041 = vsel %vm2040, %v2033, %v2037
        %v2042 = vand.u32 2147483647, %v1807
        %vm2043 = vcmp.eq.f32.partialorder %v2042, 8.507059e+37
        %v2044 = vand.u32 %v1807, 2147483648
        %v2045 = vor.u32 1.1754944e-38, %v2044
        %v2046 = vsel %vm2043, %v2045, %v2041
        %v2047 = vmul.f32 %v1759, %v2046
        %2048 = vrot.lane.b32.xlu0 %v1164, 64
        %v2049 = vpop.permute.xlu0 %2048
        %v2052 = vsel %vm1205, %v1822, 0
        %2054 = vmatpush.msra.mxu0 0.0
        %2055 = vmatpush.msra.mxu0 0.0
        %2056 = vmatpush.msra.mxu0 0.0
        %2057 = vmatpush.msra.mxu0 0.0
        %2058 = vmatpush.msra.mxu0 0.0
        %2059 = vmatpush.msra.mxu0 0.0
        %2060 = vmatpush.msra.mxu0 0.0
        %2061 = vmatpush.msra.mxu0 0.0
        %2062 = vmatpush.msra.mxu0 0.0
        %2063 = vmatpush.msra.mxu0 0.0
        %2064 = vmatpush.msra.mxu0 0.0
        %2065 = vmatpush.msra.mxu0 0.0
        %2066 = vmatpush.msra.mxu0 0.0
        %2067 = vmatpush.msra.mxu0 0.0
        %2068 = vmatpush.msra.mxu0 0.0
        %2069 = vmatpush.msra.mxu0 %v2049
        %2070 = vmatmul.f32.gmra.mxu0 %v2052
        %v2071 = vpop.f32.mrf.mxu0
        %v2072 = vadd.f32 0.0, %v2071
        %2073 = vdwg.mxu0
        %2074 = vrot.lane.b32.xlu0 %v1167, 64
        %v2075 = vpop.permute.xlu0 %2074
        %v2078 = vsel %vm1205, %v1837, 0
        %2080 = vmatpush.msra.mxu0 0.0
        %2081 = vmatpush.msra.mxu0 0.0
        %2082 = vmatpush.msra.mxu0 0.0
        %2083 = vmatpush.msra.mxu0 0.0
        %2084 = vmatpush.msra.mxu0 0.0
        %2085 = vmatpush.msra.mxu0 0.0
        %2086 = vmatpush.msra.mxu0 0.0
        %2087 = vmatpush.msra.mxu0 0.0
        %2088 = vmatpush.msra.mxu0 0.0
        %2089 = vmatpush.msra.mxu0 0.0
        %2090 = vmatpush.msra.mxu0 0.0
        %2091 = vmatpush.msra.mxu0 0.0
        %2092 = vmatpush.msra.mxu0 0.0
        %2093 = vmatpush.msra.mxu0 0.0
        %2094 = vmatpush.msra.mxu0 0.0
        %2095 = vmatpush.msra.mxu0 %v2075
        %2096 = vmatmul.f32.gmra.mxu0 %v2078
        %v2097 = vpop.f32.mrf.mxu0
        %v2098 = vadd.f32 0.0, %v2097
        %2099 = vdwg.mxu0
        %2100 = vrot.lane.b32.xlu0 %v1170, 64
        %v2101 = vpop.permute.xlu0 %2100
        %v2104 = vsel %vm1205, %v1852, 0
        %2106 = vmatpush.msra.mxu0 0.0
        %2107 = vmatpush.msra.mxu0 0.0
        %2108 = vmatpush.msra.mxu0 0.0
        %2109 = vmatpush.msra.mxu0 0.0
        %2110 = vmatpush.msra.mxu0 0.0
        %2111 = vmatpush.msra.mxu0 0.0
        %2112 = vmatpush.msra.mxu0 0.0
        %2113 = vmatpush.msra.mxu0 0.0
        %2114 = vmatpush.msra.mxu0 0.0
        %2115 = vmatpush.msra.mxu0 0.0
        %2116 = vmatpush.msra.mxu0 0.0
        %2117 = vmatpush.msra.mxu0 0.0
        %2118 = vmatpush.msra.mxu0 0.0
        %2119 = vmatpush.msra.mxu0 0.0
        %2120 = vmatpush.msra.mxu0 0.0
        %2121 = vmatpush.msra.mxu0 %v2101
        %2122 = vmatmul.f32.gmra.mxu0 %v2104
        %v2123 = vpop.f32.mrf.mxu0
        %v2124 = vadd.f32 0.0, %v2123
        %2125 = vdwg.mxu0
        %2126 = vrot.lane.b32.xlu0 %v1173, 64
        %v2127 = vpop.permute.xlu0 %2126
        %v2130 = vsel %vm1205, %v1867, 0
        %2132 = vmatpush.msra.mxu0 0.0
        %2133 = vmatpush.msra.mxu0 0.0
        %2134 = vmatpush.msra.mxu0 0.0
        %2135 = vmatpush.msra.mxu0 0.0
        %2136 = vmatpush.msra.mxu0 0.0
        %2137 = vmatpush.msra.mxu0 0.0
        %2138 = vmatpush.msra.mxu0 0.0
        %2139 = vmatpush.msra.mxu0 0.0
        %2140 = vmatpush.msra.mxu0 0.0
        %2141 = vmatpush.msra.mxu0 0.0
        %2142 = vmatpush.msra.mxu0 0.0
        %2143 = vmatpush.msra.mxu0 0.0
        %2144 = vmatpush.msra.mxu0 0.0
        %2145 = vmatpush.msra.mxu0 0.0
        %2146 = vmatpush.msra.mxu0 0.0
        %2147 = vmatpush.msra.mxu0 %v2127
        %2148 = vmatmul.f32.gmra.mxu0 %v2130
        %v2149 = vpop.f32.mrf.mxu0
        %v2150 = vadd.f32 0.0, %v2149
        %2151 = vdwg.mxu0
        %2152 = vrot.lane.b32.xlu0 %v1180, 64
        %v2153 = vpop.permute.xlu0 %2152
        %v2156 = vsel %vm1205, %v1882, 0
        %2158 = vmatpush.msra.mxu0 0.0
        %2159 = vmatpush.msra.mxu0 0.0
        %2160 = vmatpush.msra.mxu0 0.0
        %2161 = vmatpush.msra.mxu0 0.0
        %2162 = vmatpush.msra.mxu0 0.0
        %2163 = vmatpush.msra.mxu0 0.0
        %2164 = vmatpush.msra.mxu0 0.0
        %2165 = vmatpush.msra.mxu0 0.0
        %2166 = vmatpush.msra.mxu0 0.0
        %2167 = vmatpush.msra.mxu0 0.0
        %2168 = vmatpush.msra.mxu0 0.0
        %2169 = vmatpush.msra.mxu0 0.0
        %2170 = vmatpush.msra.mxu0 0.0
        %2171 = vmatpush.msra.mxu0 0.0
        %2172 = vmatpush.msra.mxu0 0.0
        %2173 = vmatpush.msra.mxu0 %v2153
        %2174 = vmatmul.f32.gmra.mxu0 %v2156
        %v2175 = vpop.f32.mrf.mxu0
        %v2176 = vadd.f32 0.0, %v2175
        %2177 = vdwg.mxu0
        %2178 = vrot.lane.b32.xlu0 %v1182, 64
        %v2179 = vpop.permute.xlu0 %2178
        %v2182 = vsel %vm1205, %v1897, 0
        %2184 = vmatpush.msra.mxu0 0.0
        %2185 = vmatpush.msra.mxu0 0.0
        %2186 = vmatpush.msra.mxu0 0.0
        %2187 = vmatpush.msra.mxu0 0.0
        %2188 = vmatpush.msra.mxu0 0.0
        %2189 = vmatpush.msra.mxu0 0.0
        %2190 = vmatpush.msra.mxu0 0.0
        %2191 = vmatpush.msra.mxu0 0.0
        %2192 = vmatpush.msra.mxu0 0.0
        %2193 = vmatpush.msra.mxu0 0.0
        %2194 = vmatpush.msra.mxu0 0.0
        %2195 = vmatpush.msra.mxu0 0.0
        %2196 = vmatpush.msra.mxu0 0.0
        %2197 = vmatpush.msra.mxu0 0.0
        %2198 = vmatpush.msra.mxu0 0.0
        %2199 = vmatpush.msra.mxu0 %v2179
        %2200 = vmatmul.f32.gmra.mxu0 %v2182
        %v2201 = vpop.f32.mrf.mxu0
        %v2202 = vadd.f32 0.0, %v2201
        %2203 = vdwg.mxu0
        %2204 = vrot.lane.b32.xlu0 %v1184, 64
        %v2205 = vpop.permute.xlu0 %2204
        %v2208 = vsel %vm1205, %v1912, 0
        %2210 = vmatpush.msra.mxu0 0.0
        %2211 = vmatpush.msra.mxu0 0.0
        %2212 = vmatpush.msra.mxu0 0.0
        %2213 = vmatpush.msra.mxu0 0.0
        %2214 = vmatpush.msra.mxu0 0.0
        %2215 = vmatpush.msra.mxu0 0.0
        %2216 = vmatpush.msra.mxu0 0.0
        %2217 = vmatpush.msra.mxu0 0.0
        %2218 = vmatpush.msra.mxu0 0.0
        %2219 = vmatpush.msra.mxu0 0.0
        %2220 = vmatpush.msra.mxu0 0.0
        %2221 = vmatpush.msra.mxu0 0.0
        %2222 = vmatpush.msra.mxu0 0.0
        %2223 = vmatpush.msra.mxu0 0.0
        %2224 = vmatpush.msra.mxu0 0.0
        %2225 = vmatpush.msra.mxu0 %v2205
        %2226 = vmatmul.f32.gmra.mxu0 %v2208
        %v2227 = vpop.f32.mrf.mxu0
        %v2228 = vadd.f32 0.0, %v2227
        %2229 = vdwg.mxu0
        %2230 = vrot.lane.b32.xlu0 %v1186, 64
        %v2231 = vpop.permute.xlu0 %2230
        %v2234 = vsel %vm1205, %v1927, 0
        %2236 = vmatpush.msra.mxu0 0.0
        %2237 = vmatpush.msra.mxu0 0.0
        %2238 = vmatpush.msra.mxu0 0.0
        %2239 = vmatpush.msra.mxu0 0.0
        %2240 = vmatpush.msra.mxu0 0.0
        %2241 = vmatpush.msra.mxu0 0.0
        %2242 = vmatpush.msra.mxu0 0.0
        %2243 = vmatpush.msra.mxu0 0.0
        %2244 = vmatpush.msra.mxu0 0.0
        %2245 = vmatpush.msra.mxu0 0.0
        %2246 = vmatpush.msra.mxu0 0.0
        %2247 = vmatpush.msra.mxu0 0.0
        %2248 = vmatpush.msra.mxu0 0.0
        %2249 = vmatpush.msra.mxu0 0.0
        %2250 = vmatpush.msra.mxu0 0.0
        %2251 = vmatpush.msra.mxu0 %v2231
        %2252 = vmatmul.f32.gmra.mxu0 %v2234
        %v2253 = vpop.f32.mrf.mxu0
        %v2254 = vadd.f32 0.0, %v2253
        %2255 = vdwg.mxu0
        %2256 = vrot.lane.b32.xlu0 %v1188, 64
        %v2257 = vpop.permute.xlu0 %2256
        %v2260 = vsel %vm1205, %v1942, 0
        %2262 = vmatpush.msra.mxu0 0.0
        %2263 = vmatpush.msra.mxu0 0.0
        %2264 = vmatpush.msra.mxu0 0.0
        %2265 = vmatpush.msra.mxu0 0.0
        %2266 = vmatpush.msra.mxu0 0.0
        %2267 = vmatpush.msra.mxu0 0.0
        %2268 = vmatpush.msra.mxu0 0.0
        %2269 = vmatpush.msra.mxu0 0.0
        %2270 = vmatpush.msra.mxu0 0.0
        %2271 = vmatpush.msra.mxu0 0.0
        %2272 = vmatpush.msra.mxu0 0.0
        %2273 = vmatpush.msra.mxu0 0.0
        %2274 = vmatpush.msra.mxu0 0.0
        %2275 = vmatpush.msra.mxu0 0.0
        %2276 = vmatpush.msra.mxu0 0.0
        %2277 = vmatpush.msra.mxu0 %v2257
        %2278 = vmatmul.f32.gmra.mxu0 %v2260
        %v2279 = vpop.f32.mrf.mxu0
        %v2280 = vadd.f32 0.0, %v2279
        %2281 = vdwg.mxu0
        %2282 = vrot.lane.b32.xlu0 %v1190, 64
        %v2283 = vpop.permute.xlu0 %2282
        %v2286 = vsel %vm1205, %v1957, 0
        %2288 = vmatpush.msra.mxu0 0.0
        %2289 = vmatpush.msra.mxu0 0.0
        %2290 = vmatpush.msra.mxu0 0.0
        %2291 = vmatpush.msra.mxu0 0.0
        %2292 = vmatpush.msra.mxu0 0.0
        %2293 = vmatpush.msra.mxu0 0.0
        %2294 = vmatpush.msra.mxu0 0.0
        %2295 = vmatpush.msra.mxu0 0.0
        %2296 = vmatpush.msra.mxu0 0.0
        %2297 = vmatpush.msra.mxu0 0.0
        %2298 = vmatpush.msra.mxu0 0.0
        %2299 = vmatpush.msra.mxu0 0.0
        %2300 = vmatpush.msra.mxu0 0.0
        %2301 = vmatpush.msra.mxu0 0.0
        %2302 = vmatpush.msra.mxu0 0.0
        %2303 = vmatpush.msra.mxu0 %v2283
        %2304 = vmatmul.f32.gmra.mxu0 %v2286
        %v2305 = vpop.f32.mrf.mxu0
        %v2306 = vadd.f32 0.0, %v2305
        %2307 = vdwg.mxu0
        %2308 = vrot.lane.b32.xlu0 %v1192, 64
        %v2309 = vpop.permute.xlu0 %2308
        %v2312 = vsel %vm1205, %v1972, 0
        %2314 = vmatpush.msra.mxu0 0.0
        %2315 = vmatpush.msra.mxu0 0.0
        %2316 = vmatpush.msra.mxu0 0.0
        %2317 = vmatpush.msra.mxu0 0.0
        %2318 = vmatpush.msra.mxu0 0.0
        %2319 = vmatpush.msra.mxu0 0.0
        %2320 = vmatpush.msra.mxu0 0.0
        %2321 = vmatpush.msra.mxu0 0.0
        %2322 = vmatpush.msra.mxu0 0.0
        %2323 = vmatpush.msra.mxu0 0.0
        %2324 = vmatpush.msra.mxu0 0.0
        %2325 = vmatpush.msra.mxu0 0.0
        %2326 = vmatpush.msra.mxu0 0.0
        %2327 = vmatpush.msra.mxu0 0.0
        %2328 = vmatpush.msra.mxu0 0.0
        %2329 = vmatpush.msra.mxu0 %v2309
        %2330 = vmatmul.f32.gmra.mxu0 %v2312
        %v2331 = vpop.f32.mrf.mxu0
        %v2332 = vadd.f32 0.0, %v2331
        %2333 = vdwg.mxu0
        %2334 = vrot.lane.b32.xlu0 %v1194, 64
        %v2335 = vpop.permute.xlu0 %2334
        %v2338 = vsel %vm1205, %v1987, 0
        %2340 = vmatpush.msra.mxu0 0.0
        %2341 = vmatpush.msra.mxu0 0.0
        %2342 = vmatpush.msra.mxu0 0.0
        %2343 = vmatpush.msra.mxu0 0.0
        %2344 = vmatpush.msra.mxu0 0.0
        %2345 = vmatpush.msra.mxu0 0.0
        %2346 = vmatpush.msra.mxu0 0.0
        %2347 = vmatpush.msra.mxu0 0.0
        %2348 = vmatpush.msra.mxu0 0.0
        %2349 = vmatpush.msra.mxu0 0.0
        %2350 = vmatpush.msra.mxu0 0.0
        %2351 = vmatpush.msra.mxu0 0.0
        %2352 = vmatpush.msra.mxu0 0.0
        %2353 = vmatpush.msra.mxu0 0.0
        %2354 = vmatpush.msra.mxu0 0.0
        %2355 = vmatpush.msra.mxu0 %v2335
        %2356 = vmatmul.f32.gmra.mxu0 %v2338
        %v2357 = vpop.f32.mrf.mxu0
        %v2358 = vadd.f32 0.0, %v2357
        %2359 = vdwg.mxu0
        %2360 = vrot.lane.b32.xlu0 %v1196, 64
        %v2361 = vpop.permute.xlu0 %2360
        %v2364 = vsel %vm1205, %v2002, 0
        %2366 = vmatpush.msra.mxu0 0.0
        %2367 = vmatpush.msra.mxu0 0.0
        %2368 = vmatpush.msra.mxu0 0.0
        %2369 = vmatpush.msra.mxu0 0.0
        %2370 = vmatpush.msra.mxu0 0.0
        %2371 = vmatpush.msra.mxu0 0.0
        %2372 = vmatpush.msra.mxu0 0.0
        %2373 = vmatpush.msra.mxu0 0.0
        %2374 = vmatpush.msra.mxu0 0.0
        %2375 = vmatpush.msra.mxu0 0.0
        %2376 = vmatpush.msra.mxu0 0.0
        %2377 = vmatpush.msra.mxu0 0.0
        %2378 = vmatpush.msra.mxu0 0.0
        %2379 = vmatpush.msra.mxu0 0.0
        %2380 = vmatpush.msra.mxu0 0.0
        %2381 = vmatpush.msra.mxu0 %v2361
        %2382 = vmatmul.f32.gmra.mxu0 %v2364
        %v2383 = vpop.f32.mrf.mxu0
        %v2384 = vadd.f32 0.0, %v2383
        %2385 = vdwg.mxu0
        %2386 = vrot.lane.b32.xlu0 %v1198, 64
        %v2387 = vpop.permute.xlu0 %2386
        %v2390 = vsel %vm1205, %v2017, 0
        %2392 = vmatpush.msra.mxu0 0.0
        %2393 = vmatpush.msra.mxu0 0.0
        %2394 = vmatpush.msra.mxu0 0.0
        %2395 = vmatpush.msra.mxu0 0.0
        %2396 = vmatpush.msra.mxu0 0.0
        %2397 = vmatpush.msra.mxu0 0.0
        %2398 = vmatpush.msra.mxu0 0.0
        %2399 = vmatpush.msra.mxu0 0.0
        %2400 = vmatpush.msra.mxu0 0.0
        %2401 = vmatpush.msra.mxu0 0.0
        %2402 = vmatpush.msra.mxu0 0.0
        %2403 = vmatpush.msra.mxu0 0.0
        %2404 = vmatpush.msra.mxu0 0.0
        %2405 = vmatpush.msra.mxu0 0.0
        %2406 = vmatpush.msra.mxu0 0.0
        %2407 = vmatpush.msra.mxu0 %v2387
        %2408 = vmatmul.f32.gmra.mxu0 %v2390
        %v2409 = vpop.f32.mrf.mxu0
        %v2410 = vadd.f32 0.0, %v2409
        %2411 = vdwg.mxu0
        %2412 = vrot.lane.b32.xlu0 %v1200, 64
        %v2413 = vpop.permute.xlu0 %2412
        %v2416 = vsel %vm1205, %v2032, 0
        %2418 = vmatpush.msra.mxu0 0.0
        %2419 = vmatpush.msra.mxu0 0.0
        %2420 = vmatpush.msra.mxu0 0.0
        %2421 = vmatpush.msra.mxu0 0.0
        %2422 = vmatpush.msra.mxu0 0.0
        %2423 = vmatpush.msra.mxu0 0.0
        %2424 = vmatpush.msra.mxu0 0.0
        %2425 = vmatpush.msra.mxu0 0.0
        %2426 = vmatpush.msra.mxu0 0.0
        %2427 = vmatpush.msra.mxu0 0.0
        %2428 = vmatpush.msra.mxu0 0.0
        %2429 = vmatpush.msra.mxu0 0.0
        %2430 = vmatpush.msra.mxu0 0.0
        %2431 = vmatpush.msra.mxu0 0.0
        %2432 = vmatpush.msra.mxu0 0.0
        %2433 = vmatpush.msra.mxu0 %v2413
        %2434 = vmatmul.f32.gmra.mxu0 %v2416
        %v2435 = vpop.f32.mrf.mxu0
        %v2436 = vadd.f32 0.0, %v2435
        %2437 = vdwg.mxu0
        %2438 = vrot.lane.b32.xlu0 %v1202, 64
        %v2439 = vpop.permute.xlu0 %2438
        %v2442 = vsel %vm1205, %v2047, 0
        %2444 = vmatpush.msra.mxu0 0.0
        %2445 = vmatpush.msra.mxu0 0.0
        %2446 = vmatpush.msra.mxu0 0.0
        %2447 = vmatpush.msra.mxu0 0.0
        %2448 = vmatpush.msra.mxu0 0.0
        %2449 = vmatpush.msra.mxu0 0.0
        %2450 = vmatpush.msra.mxu0 0.0
        %2451 = vmatpush.msra.mxu0 0.0
        %2452 = vmatpush.msra.mxu0 0.0
        %2453 = vmatpush.msra.mxu0 0.0
        %2454 = vmatpush.msra.mxu0 0.0
        %2455 = vmatpush.msra.mxu0 0.0
        %2456 = vmatpush.msra.mxu0 0.0
        %2457 = vmatpush.msra.mxu0 0.0
        %2458 = vmatpush.msra.mxu0 0.0
        %2459 = vmatpush.msra.mxu0 %v2439
        %2460 = vmatmul.f32.gmra.mxu0 %v2442
        %v2461 = vpop.f32.mrf.mxu0
        %v2462 = vadd.f32 0.0, %v2461
        %2463 = vdwg.mxu0
        %2468 = vrot.lane.b32.xlu0 %v2176, 8
        %v2469 = vpop.permute.xlu0 %2468
        %2470 = vrot.lane.b32.xlu0 %v2202, 8
        %v2471 = vpop.permute.xlu0 %2470
        %2472 = vrot.lane.b32.xlu0 %v2228, 8
        %v2473 = vpop.permute.xlu0 %2472
        %2474 = vrot.lane.b32.xlu0 %v2254, 8
        %v2475 = vpop.permute.xlu0 %2474
        %2484 = vrot.lane.b32.xlu0 %v2280, 16
        %v2485 = vpop.permute.xlu0 %2484
        %2486 = vrot.lane.b32.xlu0 %v2306, 16
        %v2487 = vpop.permute.xlu0 %2486
        %2488 = vrot.lane.b32.xlu0 %v2332, 16
        %v2489 = vpop.permute.xlu0 %2488
        %2490 = vrot.lane.b32.xlu0 %v2358, 16
        %v2491 = vpop.permute.xlu0 %2490
        %2500 = vrot.lane.b32.xlu0 %v2384, 24
        %v2501 = vpop.permute.xlu0 %2500
        %2502 = vrot.lane.b32.xlu0 %v2410, 24
        %v2503 = vpop.permute.xlu0 %2502
        %2504 = vrot.lane.b32.xlu0 %v2436, 24
        %v2505 = vpop.permute.xlu0 %2504
        %2506 = vrot.lane.b32.xlu0 %v2462, 24
        %v2507 = vpop.permute.xlu0 %2506
        %v2512 = vsel %vm1205, %v2072, %v2469
        %v2513 = vsel %vm1205, %v2098, %v2471
        %v2514 = vsel %vm1205, %v2124, %v2473
        %v2515 = vsel %vm1205, %v2150, %v2475
        %vm2516 = vcmask 130048
        %v2517 = vsel %vm2516, %v2512, %v2485
        %v2518 = vsel %vm2516, %v2513, %v2487
        %v2519 = vsel %vm2516, %v2514, %v2489
        %v2520 = vsel %vm2516, %v2515, %v2491
        %vm2521 = vcmask 195584
        %v2522 = vsel %vm2521, %v2517, %v2501
        %v2523 = vsel %vm2521, %v2518, %v2503
        %v2524 = vsel %vm2521, %v2519, %v2505
        %v2525 = vsel %vm2521, %v2520, %v2507
        %v2526 = vld [vmem:[%s967] sm:$0xff]
        %v2527 = vld [vmem:[%s967 + $0x8] sm:$0xff]
        %v2528 = vld [vmem:[%s967 + $0x10] sm:$0xff]
        %v2529 = vld [vmem:[%s967 + $0x18] sm:$0xff]
        %v2531 = vsel %vm1016, %v2522, 0
        %v2534 = vsel %vm1016, %v2523, 0
        %v2537 = vsel %vm1016, %v2524, 0
        %v2540 = vsel %vm1016, %v2525, 0
        %2542 = vmatpush.msra.mxu0 0.0
        %2543 = vmatpush.msra.mxu0 0.0
        %2544 = vmatpush.msra.mxu0 0.0
        %2545 = vmatpush.msra.mxu0 0.0
        %2546 = vmatpush.msra.mxu0 0.0
        %2547 = vmatpush.msra.mxu0 0.0
        %2548 = vmatpush.msra.mxu0 0.0
        %2549 = vmatpush.msra.mxu0 0.0
        %2550 = vmatpush.msra.mxu0 0.0
        %2551 = vmatpush.msra.mxu0 0.0
        %2552 = vmatpush.msra.mxu0 0.0
        %2553 = vmatpush.msra.mxu0 0.0
        %2554 = vmatpush.msra.mxu0 %v2529
        %2555 = vmatpush.msra.mxu0 %v2528
        %2556 = vmatpush.msra.mxu0 %v2527
        %2557 = vmatpush.msra.mxu0 %v2526
        %2558 = vmatmul.f32.gmra.mxu0 %v2531
        %v2559 = vpop.f32.mrf.mxu0
        %v2560 = vadd.f32 0.0, %v2559
        %2561 = vmatmul.f32.gmra.mxu0 %v2534
        %v2562 = vpop.f32.mrf.mxu0
        %v2563 = vadd.f32 0.0, %v2562
        %2564 = vmatmul.f32.gmra.mxu0 %v2537
        %v2565 = vpop.f32.mrf.mxu0
        %v2566 = vadd.f32 0.0, %v2565
        %2567 = vmatmul.f32.gmra.mxu0 %v2540
        %v2568 = vpop.f32.mrf.mxu0
        %v2569 = vadd.f32 0.0, %v2568
        %2570 = vdwg.mxu0
        %v2571 = vadd.f32 %v998, %v2560
        %v2572 = vadd.f32 %v999, %v2563
        %v2573 = vadd.f32 %v1000, %v2566
        %v2574 = vadd.f32 %v1001, %v2569
        %v2575 = vld [vmem:[%s970] sm:$0x1]
        %v2577 = vperm.slane %v2575, 0
        %v2579 = vadd.f32 %v2571, %v2577
        %v2580 = vadd.f32 %v2572, %v2577
        %v2581 = vadd.f32 %v2573, %v2577
        %v2582 = vadd.f32 %v2574, %v2577
        %v2583 = vld [vmem:[%s820] sm:$0x1]
        %v2584 = vld [vmem:[%s973] sm:$0x1]
        %v2585 = vsel %vm1016, %v2579, 0.0
        %2586 = vadd.xlane.f32.xlu0 %v2585
        %v2587 = vpop.xlane.xlu0 %2586
        %v2588 = vsel %vm1016, %v2580, 0.0
        %2589 = vadd.xlane.f32.xlu0 %v2588
        %v2590 = vpop.xlane.xlu0 %2589
        %v2591 = vsel %vm1016, %v2581, 0.0
        %2592 = vadd.xlane.f32.xlu0 %v2591
        %v2593 = vpop.xlane.xlu0 %2592
        %v2594 = vsel %vm1016, %v2582, 0.0
        %2595 = vadd.xlane.f32.xlu0 %v2594
        %v2596 = vpop.xlane.xlu0 %2595
        %v2597 = vmul.f32 %v2587, %v1035
        %v2598 = vmul.f32 %v2590, %v1035
        %v2599 = vmul.f32 %v2593, %v1035
        %v2600 = vmul.f32 %v2596, %v1035
        %v2601 = vsub.f32 %v2579, %v2597
        %v2602 = vsub.f32 %v2580, %v2598
        %v2603 = vsub.f32 %v2581, %v2599
        %v2604 = vsub.f32 %v2582, %v2600
        %v2605 = vmul.f32 %v2601, %v2601
        %v2606 = vmul.f32 %v2602, %v2602
        %v2607 = vmul.f32 %v2603, %v2603
        %v2608 = vmul.f32 %v2604, %v2604
        %v2609 = vsel %vm1016, %v2605, 0.0
        %2610 = vadd.xlane.f32.xlu0 %v2609
        %v2611 = vpop.xlane.xlu0 %2610
        %v2612 = vsel %vm1016, %v2606, 0.0
        %2613 = vadd.xlane.f32.xlu0 %v2612
        %v2614 = vpop.xlane.xlu0 %2613
        %v2615 = vsel %vm1016, %v2607, 0.0
        %2616 = vadd.xlane.f32.xlu0 %v2615
        %v2617 = vpop.xlane.xlu0 %2616
        %v2618 = vsel %vm1016, %v2608, 0.0
        %2619 = vadd.xlane.f32.xlu0 %v2618
        %v2620 = vpop.xlane.xlu0 %2619
        %v2621 = vmul.f32 %v2611, %v1035
        %v2622 = vmul.f32 %v2614, %v1035
        %v2623 = vmul.f32 %v2617, %v1035
        %v2624 = vmul.f32 %v2620, %v1035
        %v2625 = vadd.f32 %v2621, 1e-05
        %v2626 = vadd.f32 %v2622, 1e-05
        %v2627 = vadd.f32 %v2623, 1e-05
        %v2628 = vadd.f32 %v2624, 1e-05
        %v2629 = vrsqrt.pop %v2625
        %v2630 = vmul.f32 %v2629, %v2625
        %v2631 = vmul.f32 %v2630, %v2629
        %v2632 = vmul.f32 0.5, %v2631
        %v2633 = vsub.f32 1.5, %v2632
        %v2634 = vmul.f32 %v2629, %v2633
        %vm2635 = vweird.f32 %v2625
        %vm2636 = vweird.f32 %v2629
        %vm2637 = vmor %vm2635, %vm2636
        %v2638 = vsel %vm2637, %v2629, %v2634
        %v2639 = vrsqrt.pop %v2626
        %v2640 = vmul.f32 %v2639, %v2626
        %v2641 = vmul.f32 %v2640, %v2639
        %v2642 = vmul.f32 0.5, %v2641
        %v2643 = vsub.f32 1.5, %v2642
        %v2644 = vmul.f32 %v2639, %v2643
        %vm2645 = vweird.f32 %v2626
        %vm2646 = vweird.f32 %v2639
        %vm2647 = vmor %vm2645, %vm2646
        %v2648 = vsel %vm2647, %v2639, %v2644
        %v2649 = vrsqrt.pop %v2627
        %v2650 = vmul.f32 %v2649, %v2627
        %v2651 = vmul.f32 %v2650, %v2649
        %v2652 = vmul.f32 0.5, %v2651
        %v2653 = vsub.f32 1.5, %v2652
        %v2654 = vmul.f32 %v2649, %v2653
        %vm2655 = vweird.f32 %v2627
        %vm2656 = vweird.f32 %v2649
        %vm2657 = vmor %vm2655, %vm2656
        %v2658 = vsel %vm2657, %v2649, %v2654
        %v2659 = vrsqrt.pop %v2628
        %v2660 = vmul.f32 %v2659, %v2628
        %v2661 = vmul.f32 %v2660, %v2659
        %v2662 = vmul.f32 0.5, %v2661
        %v2663 = vsub.f32 1.5, %v2662
        %v2664 = vmul.f32 %v2659, %v2663
        %vm2665 = vweird.f32 %v2628
        %vm2666 = vweird.f32 %v2659
        %vm2667 = vmor %vm2665, %vm2666
        %v2668 = vsel %vm2667, %v2659, %v2664
        %v2669 = vmul.f32 %v2601, %v2638
        %v2670 = vmul.f32 %v2602, %v2648
        %v2671 = vmul.f32 %v2603, %v2658
        %v2672 = vmul.f32 %v2604, %v2668
        %v2674 = vperm.slane %v2583, 0
        %v2676 = vmul.f32 %v2669, %v2674
        %v2677 = vmul.f32 %v2670, %v2674
        %v2678 = vmul.f32 %v2671, %v2674
        %v2679 = vmul.f32 %v2672, %v2674
        %v2681 = vperm.slane %v2584, 0
        %v2683 = vadd.f32 %v2676, %v2681
        %v2684 = vadd.f32 %v2677, %v2681
        %v2685 = vadd.f32 %v2678, %v2681
        %v2686 = vadd.f32 %v2679, %v2681
        %v2687 = vld [vmem:[%s830] sm:$0xff]
        %v2688 = vld [vmem:[%s830 + $0x8] sm:$0xff]
        %v2689 = vld [vmem:[%s830 + $0x10] sm:$0xff]
        %v2690 = vld [vmem:[%s830 + $0x18] sm:$0xff]
        %v2691 = vld [vmem:[%s976] sm:$0x1]
        %v2693 = vperm.slane %v2691, 0
        %v2696 = vsel %vm1016, %v2683, 0
        %v2699 = vsel %vm1016, %v2684, 0
        %v2702 = vsel %vm1016, %v2685, 0
        %v2705 = vsel %vm1016, %v2686, 0
        %2707 = vmatpush.msra.mxu0 0.0
        %2708 = vmatpush.msra.mxu0 0.0
        %2709 = vmatpush.msra.mxu0 0.0
        %2710 = vmatpush.msra.mxu0 0.0
        %2711 = vmatpush.msra.mxu0 0.0
        %2712 = vmatpush.msra.mxu0 0.0
        %2713 = vmatpush.msra.mxu0 0.0
        %2714 = vmatpush.msra.mxu0 0.0
        %2715 = vmatpush.msra.mxu0 0.0
        %2716 = vmatpush.msra.mxu0 0.0
        %2717 = vmatpush.msra.mxu0 0.0
        %2718 = vmatpush.msra.mxu0 0.0
        %2719 = vmatpush.msra.mxu0 %v2690
        %2720 = vmatpush.msra.mxu0 %v2689
        %2721 = vmatpush.msra.mxu0 %v2688
        %2722 = vmatpush.msra.mxu0 %v2687
        %2723 = vmatmul.f32.gmra.mxu0 %v2696
        %v2724 = vpop.f32.mrf.mxu0
        %v2725 = vadd.f32 %v2693, %v2724
        %2726 = vmatmul.f32.gmra.mxu0 %v2699
        %v2727 = vpop.f32.mrf.mxu0
        %v2728 = vadd.f32 %v2693, %v2727
        %2729 = vmatmul.f32.gmra.mxu0 %v2702
        %v2730 = vpop.f32.mrf.mxu0
        %v2731 = vadd.f32 %v2693, %v2730
        %2732 = vmatmul.f32.gmra.mxu0 %v2705
        %v2733 = vpop.f32.mrf.mxu0
        %v2734 = vadd.f32 %v2693, %v2733
        %2735 = vdwg.mxu0
        %v2736 = vmul.f32 %v2725, 0.5
        %v2737 = vmul.f32 %v2728, 0.5
        %v2738 = vmul.f32 %v2731, 0.5
        %v2739 = vmul.f32 %v2734, 0.5
        %v2740 = vmul.f32 %v2725, 0.70710677
        %v2741 = vmul.f32 %v2728, 0.70710677
        %v2742 = vmul.f32 %v2731, 0.70710677
        %v2743 = vmul.f32 %v2734, 0.70710677
        %vm2744 = vcmp.ge.f32.partialorder %v2740, 0.0
        %vm2745 = vcmp.ge.f32.partialorder %v2741, 0.0
        %vm2746 = vcmp.ge.f32.partialorder %v2742, 0.0
        %vm2747 = vcmp.ge.f32.partialorder %v2743, 0.0
        %v2748 = vsel %vm2744, 1.0, -1.0
        %v2749 = vsel %vm2745, 1.0, -1.0
        %v2750 = vsel %vm2746, 1.0, -1.0
        %v2751 = vsel %vm2747, 1.0, -1.0
        %v2752 = vand.u32 2147483647, %v2740
        %v2753 = vand.u32 2147483647, %v2741
        %v2754 = vand.u32 2147483647, %v2742
        %v2755 = vand.u32 2147483647, %v2743
        %v2756 = vmul.f32 %v2752, 0.3275911
        %v2757 = vmul.f32 %v2753, 0.3275911
        %v2758 = vmul.f32 %v2754, 0.3275911
        %v2759 = vmul.f32 %v2755, 0.3275911
        %v2760 = vadd.f32 %v2756, 1.0
        %v2761 = vadd.f32 %v2757, 1.0
        %v2762 = vadd.f32 %v2758, 1.0
        %v2763 = vadd.f32 %v2759, 1.0
        %v2764 = vrcp.pop %v2760
        %v2765 = vmul.f32 %v2760, %v2764
        %v2766 = vsub.f32 1.0, %v2765
        %v2767 = vmul.f32 %v2764, %v2766
        %v2768 = vadd.f32 %v2764, %v2767
        %vm2769 = vweird.f32 %v2760
        %vm2770 = vweird.f32 %v2764
        %vm2771 = vmor %vm2769, %vm2770
        %v2772 = vsel %vm2771, %v2764, %v2768
        %v2773 = vand.u32 2147483647, %v2760
        %vm2774 = vcmp.eq.f32.partialorder %v2773, 8.507059e+37
        %v2775 = vand.u32 %v2760, 2147483648
        %v2776 = vor.u32 1.1754944e-38, %v2775
        %v2777 = vsel %vm2774, %v2776, %v2772
        %v2778 = vmul.f32 1.0, %v2777
        %v2779 = vrcp.pop %v2761
        %v2780 = vmul.f32 %v2761, %v2779
        %v2781 = vsub.f32 1.0, %v2780
        %v2782 = vmul.f32 %v2779, %v2781
        %v2783 = vadd.f32 %v2779, %v2782
        %vm2784 = vweird.f32 %v2761
        %vm2785 = vweird.f32 %v2779
        %vm2786 = vmor %vm2784, %vm2785
        %v2787 = vsel %vm2786, %v2779, %v2783
        %v2788 = vand.u32 2147483647, %v2761
        %vm2789 = vcmp.eq.f32.partialorder %v2788, 8.507059e+37
        %v2790 = vand.u32 %v2761, 2147483648
        %v2791 = vor.u32 1.1754944e-38, %v2790
        %v2792 = vsel %vm2789, %v2791, %v2787
        %v2793 = vmul.f32 1.0, %v2792
        %v2794 = vrcp.pop %v2762
        %v2795 = vmul.f32 %v2762, %v2794
        %v2796 = vsub.f32 1.0, %v2795
        %v2797 = vmul.f32 %v2794, %v2796
        %v2798 = vadd.f32 %v2794, %v2797
        %vm2799 = vweird.f32 %v2762
        %vm2800 = vweird.f32 %v2794
        %vm2801 = vmor %vm2799, %vm2800
        %v2802 = vsel %vm2801, %v2794, %v2798
        %v2803 = vand.u32 2147483647, %v2762
        %vm2804 = vcmp.eq.f32.partialorder %v2803, 8.507059e+37
        %v2805 = vand.u32 %v2762, 2147483648
        %v2806 = vor.u32 1.1754944e-38, %v2805
        %v2807 = vsel %vm2804, %v2806, %v2802
        %v2808 = vmul.f32 1.0, %v2807
        %v2809 = vrcp.pop %v2763
        %v2810 = vmul.f32 %v2763, %v2809
        %v2811 = vsub.f32 1.0, %v2810
        %v2812 = vmul.f32 %v2809, %v2811
        %v2813 = vadd.f32 %v2809, %v2812
        %vm2814 = vweird.f32 %v2763
        %vm2815 = vweird.f32 %v2809
        %vm2816 = vmor %vm2814, %vm2815
        %v2817 = vsel %vm2816, %v2809, %v2813
        %v2818 = vand.u32 2147483647, %v2763
        %vm2819 = vcmp.eq.f32.partialorder %v2818, 8.507059e+37
        %v2820 = vand.u32 %v2763, 2147483648
        %v2821 = vor.u32 1.1754944e-38, %v2820
        %v2822 = vsel %vm2819, %v2821, %v2817
        %v2823 = vmul.f32 1.0, %v2822
        %v2824 = vmul.f32 %v2778, 1.0614054
        %v2825 = vmul.f32 %v2793, 1.0614054
        %v2826 = vmul.f32 %v2808, 1.0614054
        %v2827 = vmul.f32 %v2823, 1.0614054
        %v2828 = vadd.f32 %v2824, -1.4531521
        %v2829 = vadd.f32 %v2825, -1.4531521
        %v2830 = vadd.f32 %v2826, -1.4531521
        %v2831 = vadd.f32 %v2827, -1.4531521
        %v2832 = vmul.f32 %v2828, %v2778
        %v2833 = vmul.f32 %v2829, %v2793
        %v2834 = vmul.f32 %v2830, %v2808
        %v2835 = vmul.f32 %v2831, %v2823
        %v2836 = vadd.f32 %v2832, 1.4214138
        %v2837 = vadd.f32 %v2833, 1.4214138
        %v2838 = vadd.f32 %v2834, 1.4214138
        %v2839 = vadd.f32 %v2835, 1.4214138
        %v2840 = vmul.f32 %v2836, %v2778
        %v2841 = vmul.f32 %v2837, %v2793
        %v2842 = vmul.f32 %v2838, %v2808
        %v2843 = vmul.f32 %v2839, %v2823
        %v2844 = vadd.f32 %v2840, -0.28449672
        %v2845 = vadd.f32 %v2841, -0.28449672
        %v2846 = vadd.f32 %v2842, -0.28449672
        %v2847 = vadd.f32 %v2843, -0.28449672
        %v2848 = vmul.f32 %v2844, %v2778
        %v2849 = vmul.f32 %v2845, %v2793
        %v2850 = vmul.f32 %v2846, %v2808
        %v2851 = vmul.f32 %v2847, %v2823
        %v2852 = vadd.f32 %v2848, 0.2548296
        %v2853 = vadd.f32 %v2849, 0.2548296
        %v2854 = vadd.f32 %v2850, 0.2548296
        %v2855 = vadd.f32 %v2851, 0.2548296
        %v2856 = vmul.f32 %v2852, %v2778
        %v2857 = vmul.f32 %v2853, %v2793
        %v2858 = vmul.f32 %v2854, %v2808
        %v2859 = vmul.f32 %v2855, %v2823
        %v2860 = vsub.f32 0.0, %v2752
        %v2861 = vsub.f32 0.0, %v2753
        %v2862 = vsub.f32 0.0, %v2754
        %v2863 = vsub.f32 0.0, %v2755
        %v2864 = vmul.f32 %v2860, %v2752
        %v2865 = vmul.f32 %v2861, %v2753
        %v2866 = vmul.f32 %v2862, %v2754
        %v2867 = vmul.f32 %v2863, %v2755
        %v2868 = vmul.f32 %v2864, 1.442695
        %v2869 = vpow.pop %v2868
        %v2870 = vmul.f32 %v2865, 1.442695
        %v2871 = vpow.pop %v2870
        %v2872 = vmul.f32 %v2866, 1.442695
        %v2873 = vpow.pop %v2872
        %v2874 = vmul.f32 %v2867, 1.442695
        %v2875 = vpow.pop %v2874
        %v2876 = vmul.f32 %v2856, %v2869
        %v2877 = vmul.f32 %v2857, %v2871
        %v2878 = vmul.f32 %v2858, %v2873
        %v2879 = vmul.f32 %v2859, %v2875
        %v2880 = vsub.f32 1.0, %v2876
        %v2881 = vsub.f32 1.0, %v2877
        %v2882 = vsub.f32 1.0, %v2878
        %v2883 = vsub.f32 1.0, %v2879
        %v2884 = vmul.f32 %v2748, %v2880
        %v2885 = vmul.f32 %v2749, %v2881
        %v2886 = vmul.f32 %v2750, %v2882
        %v2887 = vmul.f32 %v2751, %v2883
        %v2888 = vadd.f32 %v2884, 1.0
        %v2889 = vadd.f32 %v2885, 1.0
        %v2890 = vadd.f32 %v2886, 1.0
        %v2891 = vadd.f32 %v2887, 1.0
        %v2892 = vmul.f32 %v2736, %v2888
        %v2893 = vmul.f32 %v2737, %v2889
        %v2894 = vmul.f32 %v2738, %v2890
        %v2895 = vmul.f32 %v2739, %v2891
        %v2896 = vld [vmem:[%s981] sm:$0xff]
        %v2897 = vld [vmem:[%s981 + $0x8] sm:$0xff]
        %v2898 = vld [vmem:[%s981 + $0x10] sm:$0xff]
        %v2899 = vld [vmem:[%s981 + $0x18] sm:$0xff]
        %v2900 = vld [vmem:[%s981 + $0x20] sm:$0xff]
        %v2901 = vld [vmem:[%s981 + $0x28] sm:$0xff]
        %v2902 = vld [vmem:[%s981 + $0x30] sm:$0xff]
        %v2903 = vld [vmem:[%s981 + $0x38] sm:$0xff]
        %vm2904 = vcmask 523264
        %v2906 = vsel %vm2904, %v2892, 0
        %v2909 = vsel %vm2904, %v2893, 0
        %v2912 = vsel %vm2904, %v2894, 0
        %v2915 = vsel %vm2904, %v2895, 0
        %2917 = vmatpush.msra.mxu0 0.0
        %2918 = vmatpush.msra.mxu0 0.0
        %2919 = vmatpush.msra.mxu0 0.0
        %2920 = vmatpush.msra.mxu0 0.0
        %2921 = vmatpush.msra.mxu0 0.0
        %2922 = vmatpush.msra.mxu0 0.0
        %2923 = vmatpush.msra.mxu0 0.0
        %2924 = vmatpush.msra.mxu0 0.0
        %2925 = vmatpush.msra.mxu0 %v2903
        %2926 = vmatpush.msra.mxu0 %v2902
        %2927 = vmatpush.msra.mxu0 %v2901
        %2928 = vmatpush.msra.mxu0 %v2900
        %2929 = vmatpush.msra.mxu0 %v2899
        %2930 = vmatpush.msra.mxu0 %v2898
        %2931 = vmatpush.msra.mxu0 %v2897
        %2932 = vmatpush.msra.mxu0 %v2896
        %2933 = vmatmul.f32.gmra.mxu0 %v2906
        %v2934 = vpop.f32.mrf.mxu0
        %v2935 = vadd.f32 0.0, %v2934
        %2936 = vmatmul.f32.gmra.mxu0 %v2909
        %v2937 = vpop.f32.mrf.mxu0
        %v2938 = vadd.f32 0.0, %v2937
        %2939 = vmatmul.f32.gmra.mxu0 %v2912
        %v2940 = vpop.f32.mrf.mxu0
        %v2941 = vadd.f32 0.0, %v2940
        %2942 = vmatmul.f32.gmra.mxu0 %v2915
        %v2943 = vpop.f32.mrf.mxu0
        %v2944 = vadd.f32 0.0, %v2943
        %2945 = vdwg.mxu0
        %v2946 = vadd.f32 %v2579, %v2935
        %v2947 = vadd.f32 %v2580, %v2938
        %v2948 = vadd.f32 %v2581, %v2941
        %v2949 = vadd.f32 %v2582, %v2944
        %v2950 = vld [vmem:[%s984] sm:$0x1]
        %v2952 = vperm.slane %v2950, 0
        %v2954 = vadd.f32 %v2946, %v2952
        %v2955 = vadd.f32 %v2947, %v2952
        %v2956 = vadd.f32 %v2948, %v2952
        %v2957 = vadd.f32 %v2949, %v2952
        %2958 = vst.msk [vmem:[#allocation2] sm:$0xff] %vm1016, %v2954
        %2959 = vst.msk [vmem:[#allocation2 + $0x8] sm:$0xff] %vm1016, %v2955
        %2960 = vst.msk [vmem:[#allocation2 + $0x10] sm:$0xff] %vm1016, %v2956
        %2961 = vst.msk [vmem:[#allocation2 + $0x18] sm:$0xff] %vm1016, %v2957
        %p2962 = scmp.eq.s32.totalorder %s49, 1
        // Predicated region
        $region133: #{tpu_custom_call.1} parent=99 // pred_check
          %p2963 = pneg %p2962
        $region134: #{tpu_custom_call.1} parent=99 // pred_check_branch
          %2965 = sbr.rel (%p2963) target = $region136
        $region135: #{tpu_custom_call.1} parent=99 // pred_region
          %v2966 = vlaneseq
          %v2967 = vand.u32 %v2966, 127
          %v2968 = vlaneseq
          %v2969 = vshrl.u32 %v2968, 7
          %v2970 = vmul.u32 %v2969, 8
          %vm2971 = vcmp.eq.s32.totalorder %v2967, %v2970
          %v2972 = vsel %vm2971, 1, 0
          %v2973 = vcvt.s32.f32 %v2972
          %v2975 = vsel %vm1016, %v2973, 0
          %2977 = vmatpush.msra.mxu0 0.0
          %2978 = vmatpush.msra.mxu0 0.0
          %2979 = vmatpush.msra.mxu0 0.0
          %2980 = vmatpush.msra.mxu0 0.0
          %2981 = vmatpush.msra.mxu0 0.0
          %2982 = vmatpush.msra.mxu0 0.0
          %2983 = vmatpush.msra.mxu0 0.0
          %2984 = vmatpush.msra.mxu0 0.0
          %2985 = vmatpush.msra.mxu0 0.0
          %2986 = vmatpush.msra.mxu0 0.0
          %2987 = vmatpush.msra.mxu0 0.0
          %2988 = vmatpush.msra.mxu0 0.0
          %2989 = vmatpush.msra.mxu0 %v2957
          %2990 = vmatpush.msra.mxu0 %v2956
          %2991 = vmatpush.msra.mxu0 %v2955
          %2992 = vmatpush.msra.mxu0 %v2954
          %2993 = vmatmul.f32.gmra.mxu0 %v2975
          %v2994 = vpop.f32.mrf.mxu0
          %v2995 = vadd.f32 0.0, %v2994
          %2996 = vdwg.mxu0
          %v2997 = vld [vmem:[%s14] sm:$0x1]
          %v2998 = vld [vmem:[%s15] sm:$0x1]
          %vm2999 = vcmask 257024
          %v3000 = vsel %vm2999, %v2995, 0.0
          %3001 = vadd.xlane.f32.xlu0 %v3000
          %v3002 = vpop.xlane.xlu0 %3001
          %v3003 = vmul.f32 %v3002, %v1035
          %v3004 = vsub.f32 %v2995, %v3003
          %v3005 = vmul.f32 %v3004, %v3004
          %v3006 = vsel %vm2999, %v3005, 0.0
          %3007 = vadd.xlane.f32.xlu0 %v3006
          %v3008 = vpop.xlane.xlu0 %3007
          %v3009 = vmul.f32 %v3008, %v1035
          %v3010 = vadd.f32 %v3009, 1e-05
          %v3011 = vrsqrt.pop %v3010
          %v3012 = vmul.f32 %v3011, %v3010
          %v3013 = vmul.f32 %v3012, %v3011
          %v3014 = vmul.f32 0.5, %v3013
          %v3015 = vsub.f32 1.5, %v3014
          %v3016 = vmul.f32 %v3011, %v3015
          %vm3017 = vweird.f32 %v3010
          %vm3018 = vweird.f32 %v3011
          %vm3019 = vmor %vm3017, %vm3018
          %v3020 = vsel %vm3019, %v3011, %v3016
          %v3021 = vmul.f32 %v3004, %v3020
          %v3023 = vperm.slane %v2997, 0
          %v3025 = vmul.f32 %v3021, %v3023
          %v3027 = vperm.slane %v2998, 0
          %v3029 = vadd.f32 %v3025, %v3027
          %v3030 = vld [vmem:[#allocation12] sm:$0xff]
          %v3031 = vld [vmem:[#allocation12 + $0x8] sm:$0xff]
          %v3032 = vld [vmem:[#allocation12 + $0x10] sm:$0xff]
          %v3033 = vld [vmem:[#allocation12 + $0x18] sm:$0xff]
          %v3034 = vld [vmem:[%s17] sm:$0x1]
          %v3036 = vperm.slane %v3034, 0
          %v3039 = vsel %vm1016, %v3029, 0
          %3041 = vmatpush.msra.mxu0 0.0
          %3042 = vmatpush.msra.mxu0 0.0
          %3043 = vmatpush.msra.mxu0 0.0
          %3044 = vmatpush.msra.mxu0 0.0
          %3045 = vmatpush.msra.mxu0 0.0
          %3046 = vmatpush.msra.mxu0 0.0
          %3047 = vmatpush.msra.mxu0 0.0
          %3048 = vmatpush.msra.mxu0 0.0
          %3049 = vmatpush.msra.mxu0 0.0
          %3050 = vmatpush.msra.mxu0 0.0
          %3051 = vmatpush.msra.mxu0 0.0
          %3052 = vmatpush.msra.mxu0 0.0
          %3053 = vmatpush.msra.mxu0 %v3033
          %3054 = vmatpush.msra.mxu0 %v3032
          %3055 = vmatpush.msra.mxu0 %v3031
          %3056 = vmatpush.msra.mxu0 %v3030
          %3057 = vmatmul.f32.gmra.mxu0 %v3039
          %v3058 = vpop.f32.mrf.mxu0
          %v3059 = vadd.f32 %v3036, %v3058
          %3060 = vdwg.mxu0
          %v3061 = vmul.f32 %v3059, 0.5
          %v3062 = vmul.f32 %v3059, 0.70710677
          %vm3063 = vcmp.ge.f32.partialorder %v3062, 0.0
          %v3064 = vsel %vm3063, 1.0, -1.0
          %v3065 = vand.u32 2147483647, %v3062
          %v3066 = vmul.f32 %v3065, 0.3275911
          %v3067 = vadd.f32 %v3066, 1.0
          %v3068 = vrcp.pop %v3067
          %v3069 = vmul.f32 %v3067, %v3068
          %v3070 = vsub.f32 1.0, %v3069
          %v3071 = vmul.f32 %v3068, %v3070
          %v3072 = vadd.f32 %v3068, %v3071
          %vm3073 = vweird.f32 %v3067
          %vm3074 = vweird.f32 %v3068
          %vm3075 = vmor %vm3073, %vm3074
          %v3076 = vsel %vm3075, %v3068, %v3072
          %v3077 = vand.u32 2147483647, %v3067
          %vm3078 = vcmp.eq.f32.partialorder %v3077, 8.507059e+37
          %v3079 = vand.u32 %v3067, 2147483648
          %v3080 = vor.u32 1.1754944e-38, %v3079
          %v3081 = vsel %vm3078, %v3080, %v3076
          %v3082 = vmul.f32 1.0, %v3081
          %v3083 = vmul.f32 %v3082, 1.0614054
          %v3084 = vadd.f32 %v3083, -1.4531521
          %v3085 = vmul.f32 %v3084, %v3082
          %v3086 = vadd.f32 %v3085, 1.4214138
          %v3087 = vmul.f32 %v3086, %v3082
          %v3088 = vadd.f32 %v3087, -0.28449672
          %v3089 = vmul.f32 %v3088, %v3082
          %v3090 = vadd.f32 %v3089, 0.2548296
          %v3091 = vmul.f32 %v3090, %v3082
          %v3092 = vsub.f32 0.0, %v3065
          %v3093 = vmul.f32 %v3092, %v3065
          %v3094 = vmul.f32 %v3093, 1.442695
          %v3095 = vpow.pop %v3094
          %v3096 = vmul.f32 %v3091, %v3095
          %v3097 = vsub.f32 1.0, %v3096
          %v3098 = vmul.f32 %v3064, %v3097
          %v3099 = vadd.f32 %v3098, 1.0
          %v3100 = vmul.f32 %v3061, %v3099
          %v3101 = vld [vmem:[#allocation14] sm:$0xff]
          %v3102 = vld [vmem:[#allocation14 + $0x8] sm:$0xff]
          %v3103 = vld [vmem:[#allocation14 + $0x10] sm:$0xff]
          %v3104 = vld [vmem:[#allocation14 + $0x18] sm:$0xff]
          %v3105 = vld [vmem:[#allocation14 + $0x20] sm:$0xff]
          %v3106 = vld [vmem:[#allocation14 + $0x28] sm:$0xff]
          %v3107 = vld [vmem:[#allocation14 + $0x30] sm:$0xff]
          %v3108 = vld [vmem:[#allocation14 + $0x38] sm:$0xff]
          %v3109 = vld [vmem:[%s19] sm:$0x1]
          %v3111 = vperm.slane %v3109, 0
          %v3114 = vsel %vm2904, %v3100, 0
          %3116 = vmatpush.msra.mxu0 0.0
          %3117 = vmatpush.msra.mxu0 0.0
          %3118 = vmatpush.msra.mxu0 0.0
          %3119 = vmatpush.msra.mxu0 0.0
          %3120 = vmatpush.msra.mxu0 0.0
          %3121 = vmatpush.msra.mxu0 0.0
          %3122 = vmatpush.msra.mxu0 0.0
          %3123 = vmatpush.msra.mxu0 0.0
          %3124 = vmatpush.msra.mxu0 %v3108
          %3125 = vmatpush.msra.mxu0 %v3107
          %3126 = vmatpush.msra.mxu0 %v3106
          %3127 = vmatpush.msra.mxu0 %v3105
          %3128 = vmatpush.msra.mxu0 %v3104
          %3129 = vmatpush.msra.mxu0 %v3103
          %3130 = vmatpush.msra.mxu0 %v3102
          %3131 = vmatpush.msra.mxu0 %v3101
          %3132 = vmatmul.f32.gmra.mxu0 %v3114
          %v3133 = vpop.f32.mrf.mxu0
          %v3134 = vadd.f32 %v3111, %v3133
          %3135 = vdwg.mxu0
          %v3136 = vmul.f32 %v3134, %v3134
          %vm3137 = vcmask 1043456
          %v3138 = vsel %vm3137, %v3136, 0.0
          %3139 = vadd.xlane.f32.xlu0 %v3138
          %v3140 = vpop.xlane.xlu0 %3139
          %v3141 = vmax.f32 %v3140, 1e-24
          %v3142 = vrsqrt.pop %v3141
          %v3143 = vmul.f32 %v3142, %v3141
          %v3144 = vmul.f32 %v3143, %v3142
          %v3145 = vmul.f32 0.5, %v3144
          %v3146 = vsub.f32 1.5, %v3145
          %v3147 = vmul.f32 %v3142, %v3146
          %vm3148 = vweird.f32 %v3141
          %vm3149 = vweird.f32 %v3142
          %vm3150 = vmor %vm3148, %vm3149
          %v3151 = vsel %vm3150, %v3142, %v3147
          %v3152 = vmul.f32 %v3134, %v3151
          %v3153 = vmul.u32 %v2969, 2
          %vm3154 = vcmp.ge.s32.totalorder %v2967, %v3153
          %v3155 = vadd.s32 %v2969, 1
          %v3156 = vmul.u32 %v3155, 2
          %vm3157 = vcmp.lt.s32.totalorder %v2967, %v3156
          %vm3158 = vmand %vm3154, %vm3157
          %v3159 = vsel %vm3158, 0.5, 0.0
          %vm3160 = vcmask 31744
          %v3162 = vsel %vm3160, %v3159, 0
          %v3165 = vsel %vm3137, %v3152, 0
          %3167 = vmatpush.msra.mxu0 0.0
          %3168 = vmatpush.msra.mxu0 0.0
          %3169 = vmatpush.msra.mxu0 0.0
          %3170 = vmatpush.msra.mxu0 0.0
          %3171 = vmatpush.msra.mxu0 0.0
          %3172 = vmatpush.msra.mxu0 0.0
          %3173 = vmatpush.msra.mxu0 0.0
          %3174 = vmatpush.msra.mxu0 0.0
          %3175 = vmatpush.msra.mxu0 0.0
          %3176 = vmatpush.msra.mxu0 0.0
          %3177 = vmatpush.msra.mxu0 0.0
          %3178 = vmatpush.msra.mxu0 0.0
          %3179 = vmatpush.msra.mxu0 0.0
          %3180 = vmatpush.msra.mxu0 0.0
          %3181 = vmatpush.msra.mxu0 0.0
          %3182 = vmatpush.msra.mxu0 %v3165
          %3183 = vmatmul.f32.gmra.mxu0 %v3162
          %v3184 = vpop.f32.mrf.mxu0
          %v3185 = vadd.f32 0.0, %v3184
          %3186 = vdwg.mxu0
          %v3187 = vmul.f32 %v3185, %v3185
          %vm3188 = vcmask 1041408
          %v3189 = vsel %vm3188, %v3187, 0.0
          %3190 = vadd.xlane.f32.xlu0 %v3189
          %v3191 = vpop.xlane.xlu0 %3190
          %v3192 = vmax.f32 %v3191, 1e-24
          %v3193 = vrsqrt.pop %v3192
          %v3194 = vmul.f32 %v3193, %v3192
          %v3195 = vmul.f32 %v3194, %v3193
          %v3196 = vmul.f32 0.5, %v3195
          %v3197 = vsub.f32 1.5, %v3196
          %v3198 = vmul.f32 %v3193, %v3197
          %vm3199 = vweird.f32 %v3192
          %vm3200 = vweird.f32 %v3193
          %vm3201 = vmor %vm3199, %vm3200
          %v3202 = vsel %vm3201, %v3193, %v3198
          %v3203 = vmul.f32 %v3185, %v3202
          %3204 = vst [vmem:[%s949] sm:$0x3] %v3203
        $region136: #{tpu_custom_call.1} parent=99 // pred_fallthru
          _
        %s3205 = sand.u32 %s554, 1
        %s3206 = scalar_lea.sflag [#allocation5], %s3205
        %s3207 = sand.u32 %s554, 1
        %s3208 = smul.addr %s3207, 2
        %s3209 = scalar_lea.vmem [#allocation15], %s3208
        // Predicated region
        $region137: #{tpu_custom_call.1} parent=99 // pred_check
          %p3210 = pneg %p564
        $region138: #{tpu_custom_call.1} parent=99 // pred_check_branch
          %3212 = sbr.rel (%p3210) target = $region140
        $region139: #{tpu_custom_call.1} parent=99 // pred_region
          %3214 = vsyncadd %s3206, 0
          %s3215 = smul.addr %s48, 2
          %s3216 = scalar_lea.hbm %s20, %s3215
          %s3218 = sshll.u32 %s3209, 4
          %s3219 = int_to_ptr.vmem [resolvable:$true] %s3218
          %s3220 = sshll.u32 %s3216, 4
          %s3221 = int_to_ptr.hbm [resolvable:$true] %s3220
          %3223 = dma.vmem_to_hbm [thread:$0]  %s3219, 32, %s3221, %s3206
        $region140: #{tpu_custom_call.1} parent=99 // pred_fallthru
          _
      $region100: #{tpu_custom_call.1} parent=5 // pred_fallthru
        _
      %p3224 = scmp.le.s32.totalorder 2, %s39
      // Predicated region
      $region141: #{tpu_custom_call.1} parent=5 // pred_check
        %p3225 = pneg %p3224
      $region142: #{tpu_custom_call.1} parent=5 // pred_check_branch
        %3227 = sbr.rel (%p3225) target = $region144
      $region143: #{tpu_custom_call.1} parent=5 // pred_region
        %s3228 = ssub.s32 %s39, 2
        // Predicated region
        $region145: #{tpu_custom_call.1} parent=143 // pred_check
          %p3229 = pneg %p570
        $region146: #{tpu_custom_call.1} parent=143 // pred_check_branch
          %3231 = sbr.rel (%p3229) target = $region148
        $region147: #{tpu_custom_call.1} parent=143 // pred_region
          %s3232 = sand.u32 %s555, 1
          %s3233 = scalar_lea.sflag [#allocation5], %s3232
          %s3234 = sand.u32 %s555, 1
          %s3235 = smul.addr %s3234, 2
          %s3236 = scalar_lea.vmem [#allocation15], %s3235
          %3238 = dma.done %s3233, 32
        $region148: #{tpu_custom_call.1} parent=143 // pred_fallthru
          _
      $region144: #{tpu_custom_call.1} parent=5 // pred_fallthru
        _
    $region6: #{tpu_custom_call.1} parent=1 // loop_footer
      %s43 = sadd.s32 1, %s39
    $region7: #{tpu_custom_call.1} parent=1 // loop_footer_branch
      %38 = sbr.rel target = $region3
    $region8: #{tpu_custom_call.1} parent=1 // loop_exit
      _
    %3239 = vsyncpa [#allocation4], 1
    %s3240 = scalar_lea.sflag [#allocation4], 1
    %3241 = vsyncpa %s3240, 1
    %3242 = vsyncpa [#allocation7], 1
    %s3243 = scalar_lea.sflag [#allocation7], 1
    %3244 = vsyncpa %s3243, 1
    %3245 = vsyncpa [#allocation10], 1
    %s3246 = scalar_lea.sflag [#allocation10], 1
    %3247 = vsyncpa %s3246, 1
    %3248 = vsyncpa [#allocation13], 1
    %3249 = vsyncpa [#allocation5], 1
    %s3250 = scalar_lea.sflag [#allocation5], 1
    %3251 = vsyncpa %s3250, 1

</llo_original>
